<compile_context>
chip_gen: v7x
topology: tpu7x:2x2x1
jax: 0.10.0
libtpu: 0.0.40
codegen_flags: <defaults>
</compile_context>

<pallas_src>
import functools

import jax
import jax.numpy as jnp
from jax.experimental import pallas as pl
from jax.experimental.pallas import tpu as pltpu

DECODER_DIMS = [200, 600, 20108]
TN = 2048  # tile width along the wide 2nd-layer output dim (multiple of 128)


def _decoder_kernel(x_ref, w1_ref, b1_ref, w2_ref, b2_ref, out_ref):
    # Layer 1 (tiny). Recomputed each grid step -> no cross-step state,
    # grid axis can be "parallel" (megacore-safe on v7x).
    h = jnp.tanh(
        jnp.dot(x_ref[...], w1_ref[...], preferred_element_type=jnp.float32)
        + b1_ref[...]
    )
    # Layer 2 tile: bf16 x bf16 on the MXU, fp32 accumulation, fp32 output.
    out_ref[...] = (
        jnp.dot(h.astype(jnp.bfloat16), w2_ref[...],
                preferred_element_type=jnp.float32)
        + b2_ref[...]
    )


@functools.partial(jax.jit, static_argnames=("d2",))
def decoder_forward(x, w1_t, b1_2d, w2p_bf16, b2p_2d, *, d2):
    """x: (B, D0) fp32.  w1_t: (D0, D1) fp32.  b1_2d: (1, D1) fp32.
    w2p_bf16: (D1, D2_pad) bf16 (pre-padded).  b2p_2d: (1, D2_pad) fp32."""
    B, D0 = x.shape
    D1 = w1_t.shape[1]
    D2_pad = w2p_bf16.shape[1]
    n_tiles = D2_pad // TN

    out_padded = pl.pallas_call(
        _decoder_kernel,
        out_shape=jax.ShapeDtypeStruct((B, D2_pad), jnp.float32),
        grid_spec=pltpu.PrefetchScalarGridSpec(
            num_scalar_prefetch=0,
            grid=(n_tiles,),
            in_specs=[
                pl.BlockSpec((B, D0), lambda j: (0, 0)),    # x       (resident)
                pl.BlockSpec((D0, D1), lambda j: (0, 0)),   # W1^T    (resident)
                pl.BlockSpec((1, D1), lambda j: (0, 0)),    # b1      (resident)
                pl.BlockSpec((D1, TN), lambda j: (0, j)),   # W2^T tile (bf16)
                pl.BlockSpec((1, TN), lambda j: (0, j)),    # b2 tile
            ],
            out_specs=pl.BlockSpec((B, TN), lambda j: (0, j)),
        ),
        compiler_params=pltpu.CompilerParams(
            dimension_semantics=("parallel",),
        ),
    )(x, w1_t, b1_2d, w2p_bf16, b2p_2d)

    return out_padded[:, :d2]


def init_params(key, dims=DECODER_DIMS):
    """Deterministic init matching the PyTorch module:
    Xavier-uniform weights, N(0, 0.001) biases. Weights stored transposed."""
    d0, d1, d2 = dims
    k1, k2, k3, k4 = jax.random.split(key, 4)

    def xavier(k, fan_in, fan_out):
        bound = jnp.sqrt(6.0 / (fan_in + fan_out))
        return jax.random.uniform(
            k, (fan_in, fan_out), dtype=jnp.float32, minval=-bound, maxval=bound
        )

    w1_t = xavier(k1, d0, d1)
    b1 = 0.001 * jax.random.normal(k2, (d1,), dtype=jnp.float32)
    w2_t = xavier(k3, d1, d2)
    b2 = 0.001 * jax.random.normal(k4, (d2,), dtype=jnp.float32)
    return w1_t, b1, w2_t, b2


def prepare_params(w1_t, b1, w2_t, b2, tn=TN):
    """One-time (not per-forward) padding + bf16 cast of the streaming weight."""
    d2 = w2_t.shape[1]
    d2_pad = pl.cdiv(d2, tn) * tn
    w2p_bf16 = jnp.pad(w2_t, ((0, 0), (0, d2_pad - d2))).astype(jnp.bfloat16)
    b2p_2d = jnp.pad(b2.reshape(1, -1), ((0, 0), (0, d2_pad - d2)))
    b1_2d = b1.reshape(1, -1)
    return w1_t, b1_2d, w2p_bf16, b2p_2d


def reference_forward_fp32(x, w1_t, b1, w2_t, b2):
    h = jnp.tanh(x @ w1_t + b1)
    return h @ w2_t + b2


def reference_forward_bf16w(x, w1_t, b1, w2p_bf16, b2, d2):
    """Same numerics as the kernel (bf16 weights / bf16 h, fp32 accumulate)."""
    h = jnp.tanh(x @ w1_t + b1)
    out = jnp.dot(h.astype(jnp.bfloat16), w2p_bf16,
                  preferred_element_type=jnp.float32)[:, :d2]
    return out + b2


if __name__ == "__main__":
    key = jax.random.PRNGKey(0)
    k_params, k_x = jax.random.split(key)

    w1_t, b1, w2_t, b2 = init_params(k_params)
    w1_t, b1_2d, w2p_bf16, b2p_2d = prepare_params(w1_t, b1, w2_t, b2)

    B = 8  # small batch
    D0, _, D2 = DECODER_DIMS
    x = jax.random.normal(k_x, (B, D0), dtype=jnp.float32)

    out = decoder_forward(x, w1_t, b1_2d, w2p_bf16, b2p_2d, d2=D2)
    out = jax.block_until_ready(out)
    assert out.shape == (B, D2), out.shape

    # Tight check against a reference with identical bf16-weight numerics.
    ref_bf16 = jax.block_until_ready(
        reference_forward_bf16w(x, w1_t, b1, w2p_bf16, b2, D2))
    assert jnp.allclose(out, ref_bf16, atol=1e-3, rtol=1e-3), \
        "mismatch vs bf16-weight reference"

    # Loose check against the full fp32 reference (bf16 weight quantization).
    ref_fp32 = jax.block_until_ready(
        reference_forward_fp32(x, w1_t, b1, w2_t, b2))
    assert jnp.allclose(out, ref_fp32, atol=3e-2, rtol=3e-2), \
        "mismatch vs fp32 reference"

    print("KERNEL_OK")
</pallas_src>

<mosaic_0001>
module attributes {stable_mosaic.version = 11 : i64} {
  func.func @_decoder_kernel(%arg0: i32, %arg1: memref<8x200xf32, #tpu.memory_space<vmem>>, %arg2: memref<200x600xf32, #tpu.memory_space<vmem>>, %arg3: memref<1x600xf32, #tpu.memory_space<vmem>>, %arg4: memref<600x2048xbf16, #tpu.memory_space<vmem>>, %arg5: memref<1x2048xf32, #tpu.memory_space<vmem>>, %arg6: memref<8x2048xf32, #tpu.memory_space<vmem>>) attributes {dimension_semantics = [#tpu.dimension_semantics<parallel>], iteration_bounds = array<i64: 10>, scalar_prefetch = 0 : i64, scratch_operands = 0 : i64, tpu.core_type = #tpu.core_type<tc>, window_params = [{pipeline_mode = #tpu.pipeline_mode<synchronous>, transform_indices = @transform_0, window_bounds = array<i64: 8, 200>}, {pipeline_mode = #tpu.pipeline_mode<synchronous>, transform_indices = @transform_1, window_bounds = array<i64: 200, 600>}, {pipeline_mode = #tpu.pipeline_mode<synchronous>, transform_indices = @transform_2, window_bounds = array<i64: 1, 600>}, {transform_indices = @transform_3, window_bounds = array<i64: 600, 2048>}, {transform_indices = @transform_4, window_bounds = array<i64: 1, 2048>}, {transform_indices = @transform_5, window_bounds = array<i64: 8, 2048>}]} {
    %c0 = arith.constant 0 : index
    %c0_0 = arith.constant 0 : index
    %0 = vector.load %arg1[%c0, %c0_0] : memref<8x200xf32, #tpu.memory_space<vmem>>, vector<8x200xf32>
    %c0_1 = arith.constant 0 : index
    %c0_2 = arith.constant 0 : index
    %1 = vector.load %arg2[%c0_1, %c0_2] : memref<200x600xf32, #tpu.memory_space<vmem>>, vector<200x600xf32>
    %cst = arith.constant dense<0.000000e+00> : vector<8x600xf32>
    %2 = tpu.matmul %0, %1, %cst {dimension_numbers = #tpu.dot_dimension_numbers<[1], [0], [0], [1], [0, 0, 1, 1], [], []>} : vector<8x200xf32>, vector<200x600xf32>, vector<8x600xf32> -> vector<8x600xf32>
    %c0_3 = arith.constant 0 : index
    %c0_4 = arith.constant 0 : index
    %3 = vector.load %arg3[%c0_3, %c0_4] : memref<1x600xf32, #tpu.memory_space<vmem>>, vector<1x600xf32>
    %4 = vector.broadcast %3 : vector<1x600xf32> to vector<8x600xf32>
    %5 = arith.addf %2, %4 : vector<8x600xf32>
    %6 = math.tanh %5 : vector<8x600xf32>
    %7 = arith.truncf %6 : vector<8x600xf32> to vector<8x600xbf16>
    %c0_5 = arith.constant 0 : index
    %c0_6 = arith.constant 0 : index
    %8 = vector.load %arg4[%c0_5, %c0_6] : memref<600x2048xbf16, #tpu.memory_space<vmem>>, vector<600x2048xbf16>
    %cst_7 = arith.constant dense<0.000000e+00> : vector<8x2048xf32>
    %9 = tpu.matmul %7, %8, %cst_7 {dimension_numbers = #tpu.dot_dimension_numbers<[1], [0], [0], [1], [0, 0, 1, 1], [], []>} : vector<8x600xbf16>, vector<600x2048xbf16>, vector<8x2048xf32> -> vector<8x2048xf32>
    %c0_8 = arith.constant 0 : index
    %c0_9 = arith.constant 0 : index
    %10 = vector.load %arg5[%c0_8, %c0_9] : memref<1x2048xf32, #tpu.memory_space<vmem>>, vector<1x2048xf32>
    %11 = vector.broadcast %10 : vector<1x2048xf32> to vector<8x2048xf32>
    %12 = arith.addf %9, %11 : vector<8x2048xf32>
    %c0_10 = arith.constant 0 : index
    %c0_11 = arith.constant 0 : index
    %13 = vector.load %arg6[%c0_10, %c0_11] : memref<8x2048xf32, #tpu.memory_space<vmem>>, vector<8x2048xf32>
    tpu.vector_store %arg6[%c0_10, %c0_11], %12 {strides = array<i32>} : memref<8x2048xf32, #tpu.memory_space<vmem>>, vector<8x2048xf32>,
    return
  }
  func.func @transform_0(%arg0: i32) -> (i32, i32) {
    %c0_i32 = arith.constant 0 : i32
    %c0_i32_0 = arith.constant 0 : i32
    %c0_i32_1 = arith.constant 0 : i32
    return %c0_i32, %c0_i32_0 : i32, i32
  }
  func.func @transform_1(%arg0: i32) -> (i32, i32) {
    %c0_i32 = arith.constant 0 : i32
    %c0_i32_0 = arith.constant 0 : i32
    %c0_i32_1 = arith.constant 0 : i32
    return %c0_i32, %c0_i32_0 : i32, i32
  }
  func.func @transform_2(%arg0: i32) -> (i32, i32) {
    %c0_i32 = arith.constant 0 : i32
    %c0_i32_0 = arith.constant 0 : i32
    %c0_i32_1 = arith.constant 0 : i32
    return %c0_i32, %c0_i32_0 : i32, i32
  }
  func.func @transform_3(%arg0: i32) -> (i32, i32) {
    %c0_i32 = arith.constant 0 : i32
    %c0_i32_0 = arith.constant 0 : i32
    return %c0_i32, %arg0 : i32, i32
  }
  func.func @transform_4(%arg0: i32) -> (i32, i32) {
    %c0_i32 = arith.constant 0 : i32
    %c0_i32_0 = arith.constant 0 : i32
    return %c0_i32, %arg0 : i32, i32
  }
  func.func @transform_5(%arg0: i32) -> (i32, i32) {
    %c0_i32 = arith.constant 0 : i32
    %c0_i32_0 = arith.constant 0 : i32
    return %c0_i32, %arg0 : i32, i32
  }
}

</mosaic_0001>

<llo_original>
// kernel: decoder_forward.1
$region0: #{decoder_forward.1}
  #allocation0 [shape = 'u32[]', space=smem, size = 0x4, offset = 0x4, fixed_abs, tag = 'smem constant byte address 0x4 - core index']
  #allocation1 [shape = 'u32[144,128]{1,0:T(1,128)}', space=vmem, size = 0x12000, scoped, tag = 'internal scratch']
  %s0 = inlined_call_operand.hbm [shape: f32[8,200], index: 0, kind: input, shape index: {}]
  %s1 = inlined_call_operand.hbm [shape: f32[200,600], index: 1, kind: input, shape index: {}]
  %s2 = inlined_call_operand.hbm [shape: f32[1,600], index: 2, kind: input, shape index: {}]
  %s3 = inlined_call_operand.hbm [shape: bf16[600,20480], index: 3, kind: input, shape index: {}]
  %s4 = inlined_call_operand.hbm [shape: f32[1,20480], index: 4, kind: input, shape index: {}]
  %s5 = inlined_call_operand.vmem [shape: f32[8,20480], index: 5, kind: output, shape index: {}]
  %s6 = sld [smem:[#allocation0]]
  $region73: #{decoder_forward.1} parent=0
    _
  %s8 = ssub.s32 1, %s6
  %s9 = scalar_select 0, %s8, %s6
  $region1: #{decoder_forward.1} parent=0
    #allocation2 [shape = 'u8[8192]{0}', space=vmem, size = 0x2000, scoped, tag = 'input window, operand 0, single buffered']
    #allocation3 [shape = 's32[2]{0}', space=sflag, size = 0x8, scoped, tag = 'scoped memory for decoder_forward.1']
    #allocation4 [shape = 'u8[512000]{0}', space=vmem, size = 0x7d000, scoped, tag = 'input window, operand 1, single buffered']
    #allocation5 [shape = 's32[1]{0}', space=sflag, size = 0x4, scoped, tag = 'scoped memory for decoder_forward.1']
    #allocation6 [shape = 'u8[2560]{0}', space=vmem, size = 0xc00, scoped, tag = 'input window, operand 2, single buffered']
    #allocation7 [shape = 'u8[4915200]{0}', space=vmem, size = 0x4b0000, scoped, tag = 'input window, operand 3']
    #allocation8 [shape = 's32[2]{0}', space=sflag, size = 0x8, scoped, tag = 'scoped memory for decoder_forward.1']
    #allocation9 [shape = 'u8[16384]{0}', space=vmem, size = 0x4000, scoped, tag = 'input window, operand 4']
    %10 = vsyncpa [#allocation3], 0
    %11 = vsyncpa [#allocation5], 0
    %12 = vsyncpa [#allocation8], 0
    %s13 = scalar_lea.sflag [#allocation8], 1
    %14 = vsyncpa %s13, 0
    loop: start=0, step=1, limit=12
    $region2: #{decoder_forward.1} parent=1 // loop_pre_header
      _
    $region3: #{decoder_forward.1} parent=1 // loop_header
      %s16 = sphi 0, %s20
      %p17 = scmp.ge.s32.totalorder %s16, 12
      %s24 = sphi 0, %s24
      %s26 = sphi 0, %s24
      %s27 = sphi 0, %s26
      %s41 = sphi 0, %s27
      %s45 = sphi 0, %s45
      %s47 = sphi 0, %s45
      %s48 = sphi 0, %s47
      %s62 = sphi 0, %s48
      %s66 = sphi 0, %s66
      %s68 = sphi 0, %s66
      %s69 = sphi 0, %s68
      %s83 = sphi 0, %s69
      %s89 = sphi 0, %s91
      %s92 = sphi 0, %s89
      %s93 = sphi 0, %s92
      %s109 = sphi 0, %s93
      %s115 = sphi 0, %s117
      %s118 = sphi 0, %s115
      %s119 = sphi 0, %s118
      %s135 = sphi 0, %s119
      %s141 = sphi 0, %s143
      %s144 = sphi 0, %s141
      %s145 = sphi 0, %s144
      %s161 = sphi 0, %s145
    $region4: #{decoder_forward.1} parent=1 // loop_header_branch
      %19 = sbr.rel (%p17) target = $region8
    $region5: #{decoder_forward.1} parent=1 // loop_body
      %s21 = ssub.s32 %s16, 1
      %s22 = ssub.s32 %s16, 2
      %s23 = sadd.s32 %s16, 1
      %s25 = sadd.s32 %s24, 1
      %p28 = scmp.eq.s32.totalorder %s16, 9
      %p29 = scmp.ne.s32.totalorder %s24, %s26
      %p30 = scmp.eq.s32.totalorder %s16, 0
      %p31 = por %p29, %p30
      %p32 = scmp.ne.s32.totalorder %s24, %s26
      %p33 = scmp.eq.s32.totalorder %s21, 9
      %p34 = por %p32, %p33
      %p35 = scmp.ne.s32.totalorder %s26, %s27
      %p36 = scmp.eq.s32.totalorder %s21, 0
      %p37 = por %p35, %p36
      %p38 = scmp.ne.s32.totalorder %s26, %s27
      %p39 = scmp.eq.s32.totalorder %s22, 9
      %p40 = por %p38, %p39
      %p42 = scmp.ne.s32.totalorder %s27, %s41
      %p43 = scmp.eq.s32.totalorder %s22, 0
      %p44 = por %p42, %p43
      %s46 = sadd.s32 %s45, 1
      %p49 = scmp.eq.s32.totalorder %s16, 9
      %p50 = scmp.ne.s32.totalorder %s45, %s47
      %p51 = scmp.eq.s32.totalorder %s16, 0
      %p52 = por %p50, %p51
      %p53 = scmp.ne.s32.totalorder %s45, %s47
      %p54 = scmp.eq.s32.totalorder %s21, 9
      %p55 = por %p53, %p54
      %p56 = scmp.ne.s32.totalorder %s47, %s48
      %p57 = scmp.eq.s32.totalorder %s21, 0
      %p58 = por %p56, %p57
      %p59 = scmp.ne.s32.totalorder %s47, %s48
      %p60 = scmp.eq.s32.totalorder %s22, 9
      %p61 = por %p59, %p60
      %p63 = scmp.ne.s32.totalorder %s48, %s62
      %p64 = scmp.eq.s32.totalorder %s22, 0
      %p65 = por %p63, %p64
      %s67 = sadd.s32 %s66, 1
      %p70 = scmp.eq.s32.totalorder %s16, 9
      %p71 = scmp.ne.s32.totalorder %s66, %s68
      %p72 = scmp.eq.s32.totalorder %s16, 0
      %p73 = por %p71, %p72
      %p74 = scmp.ne.s32.totalorder %s66, %s68
      %p75 = scmp.eq.s32.totalorder %s21, 9
      %p76 = por %p74, %p75
      %p77 = scmp.ne.s32.totalorder %s68, %s69
      %p78 = scmp.eq.s32.totalorder %s21, 0
      %p79 = por %p77, %p78
      %p80 = scmp.ne.s32.totalorder %s68, %s69
      %p81 = scmp.eq.s32.totalorder %s22, 9
      %p82 = por %p80, %p81
      %p84 = scmp.ne.s32.totalorder %s69, %s83
      %p85 = scmp.eq.s32.totalorder %s22, 0
      %p86 = por %p84, %p85
      %s87 = ssub.s32 %s16, %s23
      %p88 = scmp.eq.s32.totalorder %s87, 0
      %s90 = sadd.s32 %s89, 1
      %s91 = scalar_select %p88, %s89, %s90
      %p94 = pneg %p88
      %p95 = scmp.eq.s32.totalorder %s16, 9
      %p96 = por %p94, %p95
      %p97 = scmp.ne.s32.totalorder %s89, %s92
      %p98 = scmp.eq.s32.totalorder %s16, 0
      %p99 = por %p97, %p98
      %p100 = scmp.ne.s32.totalorder %s89, %s92
      %p101 = scmp.eq.s32.totalorder %s21, 9
      %p102 = por %p100, %p101
      %p103 = scmp.ne.s32.totalorder %s92, %s93
      %p104 = scmp.eq.s32.totalorder %s21, 0
      %p105 = por %p103, %p104
      %p106 = scmp.ne.s32.totalorder %s92, %s93
      %p107 = scmp.eq.s32.totalorder %s22, 9
      %p108 = por %p106, %p107
      %p110 = scmp.ne.s32.totalorder %s93, %s109
      %p111 = scmp.eq.s32.totalorder %s22, 0
      %p112 = por %p110, %p111
      %s113 = ssub.s32 %s16, %s23
      %p114 = scmp.eq.s32.totalorder %s113, 0
      %s116 = sadd.s32 %s115, 1
      %s117 = scalar_select %p114, %s115, %s116
      %p120 = pneg %p114
      %p121 = scmp.eq.s32.totalorder %s16, 9
      %p122 = por %p120, %p121
      %p123 = scmp.ne.s32.totalorder %s115, %s118
      %p124 = scmp.eq.s32.totalorder %s16, 0
      %p125 = por %p123, %p124
      %p126 = scmp.ne.s32.totalorder %s115, %s118
      %p127 = scmp.eq.s32.totalorder %s21, 9
      %p128 = por %p126, %p127
      %p129 = scmp.ne.s32.totalorder %s118, %s119
      %p130 = scmp.eq.s32.totalorder %s21, 0
      %p131 = por %p129, %p130
      %p132 = scmp.ne.s32.totalorder %s118, %s119
      %p133 = scmp.eq.s32.totalorder %s22, 9
      %p134 = por %p132, %p133
      %p136 = scmp.ne.s32.totalorder %s119, %s135
      %p137 = scmp.eq.s32.totalorder %s22, 0
      %p138 = por %p136, %p137
      %s139 = ssub.s32 %s16, %s23
      %p140 = scmp.eq.s32.totalorder %s139, 0
      %s142 = sadd.s32 %s141, 1
      %s143 = scalar_select %p140, %s141, %s142
      %p146 = pneg %p140
      %p147 = scmp.eq.s32.totalorder %s16, 9
      %p148 = por %p146, %p147
      %p149 = scmp.ne.s32.totalorder %s141, %s144
      %p150 = scmp.eq.s32.totalorder %s16, 0
      %p151 = por %p149, %p150
      %p152 = scmp.ne.s32.totalorder %s141, %s144
      %p153 = scmp.eq.s32.totalorder %s21, 9
      %p154 = por %p152, %p153
      %p155 = scmp.ne.s32.totalorder %s144, %s145
      %p156 = scmp.eq.s32.totalorder %s21, 0
      %p157 = por %p155, %p156
      %p158 = scmp.ne.s32.totalorder %s144, %s145
      %p159 = scmp.eq.s32.totalorder %s22, 9
      %p160 = por %p158, %p159
      %p162 = scmp.ne.s32.totalorder %s145, %s161
      %p163 = scmp.eq.s32.totalorder %s22, 0
      %p164 = por %p162, %p163
      %p165 = scmp.le.s32.totalorder 1, %s16
      %p166 = scmp.lt.s32.totalorder %s16, 11
      %p167 = pnand %p165, %p166
      %p168 = pneg %p167
      // Predicated region
      $region9: #{decoder_forward.1} parent=5 // pred_check
        _
      $region10: #{decoder_forward.1} parent=5 // pred_check_branch
        %170 = sbr.rel (%p167) target = $region12
      $region11: #{decoder_forward.1} parent=5 // pred_region
        %s171 = ssub.s32 %s16, 1
        // Predicated region
        $region13: #{decoder_forward.1} parent=11 // pred_check
          %p172 = pneg %p37
        $region14: #{decoder_forward.1} parent=11 // pred_check_branch
          %174 = sbr.rel (%p172) target = $region16
        $region15: #{decoder_forward.1} parent=11 // pred_region
          %s176 = ssub.s32 256, 256
          %177 = vsyncadd [#allocation3], %s176
          %s179 = sshll.u32 [#allocation2], 4
          %s180 = int_to_ptr.vmem [resolvable:$true] %s179
          %182 = dma.hbm_to_vmem [thread:$0]  %s0, 256, %s180, [#allocation3]
        $region16: #{decoder_forward.1} parent=11 // pred_fallthru
          _
        // Predicated region
        $region17: #{decoder_forward.1} parent=11 // pred_check
          %p183 = pneg %p58
        $region18: #{decoder_forward.1} parent=11 // pred_check_branch
          %185 = sbr.rel (%p183) target = $region20
        $region19: #{decoder_forward.1} parent=11 // pred_region
          %s187 = ssub.s32 16000, 16000
          %188 = vsyncadd [#allocation5], %s187
          %s189 = sshll.u32 [#allocation4], 4
          %s190 = int_to_ptr.vmem [resolvable:$true] %s189
          %195 = dma.hbm_to_vmem [thread:$0]  %s1, 16000, %s190, [#allocation5], 640, 640, 40
        $region20: #{decoder_forward.1} parent=11 // pred_fallthru
          _
        // Predicated region
        $region21: #{decoder_forward.1} parent=11 // pred_check
          %p196 = pneg %p79
        $region22: #{decoder_forward.1} parent=11 // pred_check_branch
          %198 = sbr.rel (%p196) target = $region24
        $region23: #{decoder_forward.1} parent=11 // pred_region
          %s200 = ssub.s32 80, 80
          %201 = vsyncadd [#allocation5], %s200
          %s203 = sshll.u32 [#allocation6], 4
          %s204 = int_to_ptr.vmem [resolvable:$true] %s203
          %206 = dma.hbm_to_vmem [thread:$0]  %s2, 80, %s204, [#allocation5]
        $region24: #{decoder_forward.1} parent=11 // pred_fallthru
          _
      $region12: #{decoder_forward.1} parent=5 // pred_fallthru
        _
      %p207 = scmp.lt.s32.totalorder %s16, 10
      // Predicated region
      $region25: #{decoder_forward.1} parent=5 // pred_check
        %p208 = pneg %p207
      $region26: #{decoder_forward.1} parent=5 // pred_check_branch
        %210 = sbr.rel (%p208) target = $region28
      $region27: #{decoder_forward.1} parent=5 // pred_region
        // Predicated region
        $region29: #{decoder_forward.1} parent=27 // pred_check
          %p211 = pneg %p99
        $region30: #{decoder_forward.1} parent=27 // pred_check_branch
          %213 = sbr.rel (%p211) target = $region32
        $region31: #{decoder_forward.1} parent=27 // pred_region
          %s214 = sand.u32 %s16, 1
          %s215 = scalar_lea.sflag [#allocation8], %s214
          %s216 = sand.u32 %s89, 1
          %s217 = smul.addr %s216, 4800
          %s218 = scalar_lea.vmem [#allocation7], %s217
          %s219 = smul.u32 16, %s16
          %s221 = ssub.s32 76800, 76800
          %222 = vsyncadd %s215, %s221
          %s223 = smul.addr %s219, 64
          %s224 = scalar_lea.hbm %s3, %s223
          %s225 = sshll.u32 %s218, 4
          %s226 = int_to_ptr.vmem [resolvable:$true] %s225
          %231 = dma.hbm_to_vmem [thread:$0]  %s224, 76800, %s226, %s215, 10240, 1024, 64
        $region32: #{decoder_forward.1} parent=27 // pred_fallthru
          _
        // Predicated region
        $region33: #{decoder_forward.1} parent=27 // pred_check
          %p232 = pneg %p125
        $region34: #{decoder_forward.1} parent=27 // pred_check_branch
          %234 = sbr.rel (%p232) target = $region36
        $region35: #{decoder_forward.1} parent=27 // pred_region
          %s235 = sand.u32 %s16, 1
          %s236 = scalar_lea.sflag [#allocation8], %s235
          %s237 = sand.u32 %s115, 1
          %s238 = smul.addr %s237, 16
          %s239 = scalar_lea.vmem [#allocation9], %s238
          %s240 = smul.u32 16, %s16
          %s242 = ssub.s32 256, 256
          %243 = vsyncadd %s236, %s242
          %s244 = smul.addr %s240, 16
          %s245 = scalar_lea.hbm %s4, %s244
          %s247 = sshll.u32 %s239, 4
          %s248 = int_to_ptr.vmem [resolvable:$true] %s247
          %250 = dma.hbm_to_vmem [thread:$0]  %s245, 256, %s248, %s236
        $region36: #{decoder_forward.1} parent=27 // pred_fallthru
          _
      $region28: #{decoder_forward.1} parent=5 // pred_fallthru
        _
      %p251 = scmp.le.s32.totalorder 1, %s16
      %p252 = scmp.lt.s32.totalorder %s16, 11
      %p253 = pnand %p251, %p252
      %p254 = pneg %p253
      // Predicated region
      $region37: #{decoder_forward.1} parent=5 // pred_check
        _
      $region38: #{decoder_forward.1} parent=5 // pred_check_branch
        %256 = sbr.rel (%p253) target = $region40
      $region39: #{decoder_forward.1} parent=5 // pred_region
        %s257 = ssub.s32 %s16, 1
        // Predicated region
        $region41: #{decoder_forward.1} parent=39 // pred_check
          %p258 = pneg %p37
        $region42: #{decoder_forward.1} parent=39 // pred_check_branch
          %260 = sbr.rel (%p258) target = $region44
        $region43: #{decoder_forward.1} parent=39 // pred_region
          %261 = dma.done [#allocation3], 256
        $region44: #{decoder_forward.1} parent=39 // pred_fallthru
          _
        // Predicated region
        $region45: #{decoder_forward.1} parent=39 // pred_check
          %p262 = pneg %p58
        $region46: #{decoder_forward.1} parent=39 // pred_check_branch
          %264 = sbr.rel (%p262) target = $region48
        $region47: #{decoder_forward.1} parent=39 // pred_region
          %265 = dma.done [#allocation5], 16000
        $region48: #{decoder_forward.1} parent=39 // pred_fallthru
          _
        // Predicated region
        $region49: #{decoder_forward.1} parent=39 // pred_check
          %p266 = pneg %p79
        $region50: #{decoder_forward.1} parent=39 // pred_check_branch
          %268 = sbr.rel (%p266) target = $region52
        $region51: #{decoder_forward.1} parent=39 // pred_region
          %269 = dma.done [#allocation5], 80
        $region52: #{decoder_forward.1} parent=39 // pred_fallthru
          _
        %s270 = sand.u32 %s21, 1
        %s271 = scalar_lea.sflag [#allocation8], %s270
        %s272 = sand.u32 %s92, 1
        %s273 = smul.addr %s272, 4800
        %s274 = scalar_lea.vmem [#allocation7], %s273
        // Predicated region
        $region53: #{decoder_forward.1} parent=39 // pred_check
          %p275 = pneg %p105
        $region54: #{decoder_forward.1} parent=39 // pred_check_branch
          %277 = sbr.rel (%p275) target = $region56
        $region55: #{decoder_forward.1} parent=39 // pred_region
          %278 = dma.done %s271, 76800
        $region56: #{decoder_forward.1} parent=39 // pred_fallthru
          _
        %s279 = sand.u32 %s21, 1
        %s280 = scalar_lea.sflag [#allocation8], %s279
        %s281 = sand.u32 %s118, 1
        %s282 = smul.addr %s281, 16
        %s283 = scalar_lea.vmem [#allocation9], %s282
        // Predicated region
        $region57: #{decoder_forward.1} parent=39 // pred_check
          %p284 = pneg %p131
        $region58: #{decoder_forward.1} parent=39 // pred_check_branch
          %286 = sbr.rel (%p284) target = $region60
        $region59: #{decoder_forward.1} parent=39 // pred_region
          %287 = dma.done %s280, 256
        $region60: #{decoder_forward.1} parent=39 // pred_fallthru
          _
        %p288 = pneg %p37
        %p289 = pneg %p34
        %p290 = pneg %p58
        %p291 = pneg %p55
        %p292 = pneg %p79
        %p293 = pneg %p76
        %s294 = sand.u32 %s21, 1
        %s295 = scalar_lea.sflag [#allocation8], %s294
        %s296 = sand.u32 %s92, 1
        %s297 = smul.addr %s296, 4800
        %s298 = scalar_lea.vmem [#allocation7], %s297
        %p299 = pneg %p105
        %p300 = pneg %p102
        %s301 = sand.u32 %s21, 1
        %s302 = scalar_lea.sflag [#allocation8], %s301
        %s303 = sand.u32 %s118, 1
        %s304 = smul.addr %s303, 16
        %s305 = scalar_lea.vmem [#allocation9], %s304
        %p306 = pneg %p131
        %p307 = pneg %p128
        %p308 = pneg %p157
        %p309 = pneg %p154
        %s310 = smul.u32 16, %s21
        %p311 = scmp.lt.s32.totalorder %s310, 159
        %s312 = scalar_select %p311, %s310, 159
        %s313 = smul.addr %s312, 8
        %s314 = scalar_lea.vmem %s5, %s313
        %s315 = smul.u32 16, %s21
        %s316 = smul.u32 16, %s21
        %s317 = smul.u32 16, %s21
        %p318 = scmp.lt.s32.totalorder %s317, 159
        %s319 = scalar_select %p318, %s317, 159
        %s320 = smul.addr %s319, 8
        %s321 = scalar_lea.vmem %s5, %s320
        %s322 = smul.u32 16, %s21
        %v324 = vld [vmem:[#allocation2] sm:$0xff]
        %v325 = vld [vmem:[#allocation2 + $0x8] sm:$0xff]
        %v326 = vld [vmem:[#allocation4] sm:$0xff]
        %v327 = vld [vmem:[#allocation4 + $0x8] sm:$0xff]
        %v328 = vld [vmem:[#allocation4 + $0x10] sm:$0xff]
        %v329 = vld [vmem:[#allocation4 + $0x18] sm:$0xff]
        %v330 = vld [vmem:[#allocation4 + $0x20] sm:$0xff]
        %v331 = vld [vmem:[#allocation4 + $0x28] sm:$0xff]
        %v332 = vld [vmem:[#allocation4 + $0x30] sm:$0xff]
        %v333 = vld [vmem:[#allocation4 + $0x38] sm:$0xff]
        %v334 = vld [vmem:[#allocation4 + $0x40] sm:$0xff]
        %v335 = vld [vmem:[#allocation4 + $0x48] sm:$0xff]
        %v336 = vld [vmem:[#allocation4 + $0x50] sm:$0xff]
        %v337 = vld [vmem:[#allocation4 + $0x58] sm:$0xff]
        %v338 = vld [vmem:[#allocation4 + $0x60] sm:$0xff]
        %v339 = vld [vmem:[#allocation4 + $0x68] sm:$0xff]
        %v340 = vld [vmem:[#allocation4 + $0x70] sm:$0xff]
        %v341 = vld [vmem:[#allocation4 + $0x78] sm:$0xff]
        %v342 = vld [vmem:[#allocation4 + $0x80] sm:$0xff]
        %v343 = vld [vmem:[#allocation4 + $0x88] sm:$0xff]
        %v344 = vld [vmem:[#allocation4 + $0x90] sm:$0xff]
        %v345 = vld [vmem:[#allocation4 + $0x98] sm:$0xff]
        %v346 = vld [vmem:[#allocation4 + $0xa0] sm:$0xff]
        %v347 = vld [vmem:[#allocation4 + $0xa8] sm:$0xff]
        %v348 = vld [vmem:[#allocation4 + $0xb0] sm:$0xff]
        %v349 = vld [vmem:[#allocation4 + $0xb8] sm:$0xff]
        %v350 = vld [vmem:[#allocation4 + $0xc0] sm:$0xff]
        %v351 = vld [vmem:[#allocation4 + $0xc8] sm:$0xff]
        %v352 = vld [vmem:[#allocation4 + $0xd0] sm:$0xff]
        %v353 = vld [vmem:[#allocation4 + $0xd8] sm:$0xff]
        %v354 = vld [vmem:[#allocation4 + $0xe0] sm:$0xff]
        %v355 = vld [vmem:[#allocation4 + $0xe8] sm:$0xff]
        %v356 = vld [vmem:[#allocation4 + $0xf0] sm:$0xff]
        %v357 = vld [vmem:[#allocation4 + $0xf8] sm:$0xff]
        %v358 = vld [vmem:[#allocation4 + $0x100] sm:$0xff]
        %v359 = vld [vmem:[#allocation4 + $0x108] sm:$0xff]
        %v360 = vld [vmem:[#allocation4 + $0x110] sm:$0xff]
        %v361 = vld [vmem:[#allocation4 + $0x118] sm:$0xff]
        %v362 = vld [vmem:[#allocation4 + $0x120] sm:$0xff]
        %v363 = vld [vmem:[#allocation4 + $0x128] sm:$0xff]
        %v364 = vld [vmem:[#allocation4 + $0x130] sm:$0xff]
        %v365 = vld [vmem:[#allocation4 + $0x138] sm:$0xff]
        %v366 = vld [vmem:[#allocation4 + $0x140] sm:$0xff]
        %v367 = vld [vmem:[#allocation4 + $0x148] sm:$0xff]
        %v368 = vld [vmem:[#allocation4 + $0x150] sm:$0xff]
        %v369 = vld [vmem:[#allocation4 + $0x158] sm:$0xff]
        %v370 = vld [vmem:[#allocation4 + $0x160] sm:$0xff]
        %v371 = vld [vmem:[#allocation4 + $0x168] sm:$0xff]
        %v372 = vld [vmem:[#allocation4 + $0x170] sm:$0xff]
        %v373 = vld [vmem:[#allocation4 + $0x178] sm:$0xff]
        %v374 = vld [vmem:[#allocation4 + $0x180] sm:$0xff]
        %v375 = vld [vmem:[#allocation4 + $0x188] sm:$0xff]
        %v376 = vld [vmem:[#allocation4 + $0x190] sm:$0xff]
        %v377 = vld [vmem:[#allocation4 + $0x198] sm:$0xff]
        %v378 = vld [vmem:[#allocation4 + $0x1a0] sm:$0xff]
        %v379 = vld [vmem:[#allocation4 + $0x1a8] sm:$0xff]
        %v380 = vld [vmem:[#allocation4 + $0x1b0] sm:$0xff]
        %v381 = vld [vmem:[#allocation4 + $0x1b8] sm:$0xff]
        %v382 = vld [vmem:[#allocation4 + $0x1c0] sm:$0xff]
        %v383 = vld [vmem:[#allocation4 + $0x1c8] sm:$0xff]
        %v384 = vld [vmem:[#allocation4 + $0x1d0] sm:$0xff]
        %v385 = vld [vmem:[#allocation4 + $0x1d8] sm:$0xff]
        %v386 = vld [vmem:[#allocation4 + $0x1e0] sm:$0xff]
        %v387 = vld [vmem:[#allocation4 + $0x1e8] sm:$0xff]
        %v388 = vld [vmem:[#allocation4 + $0x1f0] sm:$0xff]
        %v389 = vld [vmem:[#allocation4 + $0x1f8] sm:$0xff]
        %v390 = vld [vmem:[#allocation4 + $0x200] sm:$0xff]
        %v391 = vld [vmem:[#allocation4 + $0x208] sm:$0xff]
        %v392 = vld [vmem:[#allocation4 + $0x210] sm:$0xff]
        %v393 = vld [vmem:[#allocation4 + $0x218] sm:$0xff]
        %v394 = vld [vmem:[#allocation4 + $0x220] sm:$0xff]
        %v395 = vld [vmem:[#allocation4 + $0x228] sm:$0xff]
        %v396 = vld [vmem:[#allocation4 + $0x230] sm:$0xff]
        %v397 = vld [vmem:[#allocation4 + $0x238] sm:$0xff]
        %v398 = vld [vmem:[#allocation4 + $0x240] sm:$0xff]
        %v399 = vld [vmem:[#allocation4 + $0x248] sm:$0xff]
        %v400 = vld [vmem:[#allocation4 + $0x250] sm:$0xff]
        %v401 = vld [vmem:[#allocation4 + $0x258] sm:$0xff]
        %v402 = vld [vmem:[#allocation4 + $0x260] sm:$0xff]
        %v403 = vld [vmem:[#allocation4 + $0x268] sm:$0xff]
        %v404 = vld [vmem:[#allocation4 + $0x270] sm:$0xff]
        %v405 = vld [vmem:[#allocation4 + $0x278] sm:$0xff]
        %v406 = vld [vmem:[#allocation4 + $0x280] sm:$0xff]
        %v407 = vld [vmem:[#allocation4 + $0x288] sm:$0xff]
        %v408 = vld [vmem:[#allocation4 + $0x290] sm:$0xff]
        %v409 = vld [vmem:[#allocation4 + $0x298] sm:$0xff]
        %v410 = vld [vmem:[#allocation4 + $0x2a0] sm:$0xff]
        %v411 = vld [vmem:[#allocation4 + $0x2a8] sm:$0xff]
        %v412 = vld [vmem:[#allocation4 + $0x2b0] sm:$0xff]
        %v413 = vld [vmem:[#allocation4 + $0x2b8] sm:$0xff]
        %v414 = vld [vmem:[#allocation4 + $0x2c0] sm:$0xff]
        %v415 = vld [vmem:[#allocation4 + $0x2c8] sm:$0xff]
        %v416 = vld [vmem:[#allocation4 + $0x2d0] sm:$0xff]
        %v417 = vld [vmem:[#allocation4 + $0x2d8] sm:$0xff]
        %v418 = vld [vmem:[#allocation4 + $0x2e0] sm:$0xff]
        %v419 = vld [vmem:[#allocation4 + $0x2e8] sm:$0xff]
        %v420 = vld [vmem:[#allocation4 + $0x2f0] sm:$0xff]
        %v421 = vld [vmem:[#allocation4 + $0x2f8] sm:$0xff]
        %v422 = vld [vmem:[#allocation4 + $0x300] sm:$0xff]
        %v423 = vld [vmem:[#allocation4 + $0x308] sm:$0xff]
        %v424 = vld [vmem:[#allocation4 + $0x310] sm:$0xff]
        %v425 = vld [vmem:[#allocation4 + $0x318] sm:$0xff]
        %v426 = vld [vmem:[#allocation4 + $0x320] sm:$0xff]
        %v427 = vld [vmem:[#allocation4 + $0x328] sm:$0xff]
        %v428 = vld [vmem:[#allocation4 + $0x330] sm:$0xff]
        %v429 = vld [vmem:[#allocation4 + $0x338] sm:$0xff]
        %v430 = vld [vmem:[#allocation4 + $0x340] sm:$0xff]
        %v431 = vld [vmem:[#allocation4 + $0x348] sm:$0xff]
        %v432 = vld [vmem:[#allocation4 + $0x350] sm:$0xff]
        %v433 = vld [vmem:[#allocation4 + $0x358] sm:$0xff]
        %v434 = vld [vmem:[#allocation4 + $0x360] sm:$0xff]
        %v435 = vld [vmem:[#allocation4 + $0x368] sm:$0xff]
        %v436 = vld [vmem:[#allocation4 + $0x370] sm:$0xff]
        %v437 = vld [vmem:[#allocation4 + $0x378] sm:$0xff]
        %v438 = vld [vmem:[#allocation4 + $0x380] sm:$0xff]
        %v439 = vld [vmem:[#allocation4 + $0x388] sm:$0xff]
        %v440 = vld [vmem:[#allocation4 + $0x390] sm:$0xff]
        %v441 = vld [vmem:[#allocation4 + $0x398] sm:$0xff]
        %v442 = vld [vmem:[#allocation4 + $0x3a0] sm:$0xff]
        %v443 = vld [vmem:[#allocation4 + $0x3a8] sm:$0xff]
        %v444 = vld [vmem:[#allocation4 + $0x3b0] sm:$0xff]
        %v445 = vld [vmem:[#allocation4 + $0x3b8] sm:$0xff]
        %v446 = vld [vmem:[#allocation4 + $0x3c0] sm:$0xff]
        %v447 = vld [vmem:[#allocation4 + $0x3c8] sm:$0xff]
        %v448 = vld [vmem:[#allocation4 + $0x3d0] sm:$0xff]
        %v449 = vld [vmem:[#allocation4 + $0x3d8] sm:$0xff]
        %v450 = vld [vmem:[#allocation4 + $0x3e0] sm:$0xff]
        %v451 = vld [vmem:[#allocation6] sm:$0x1f]
        %v453 = vlaneseq
        %v454 = vshrl.u32 %v453, 7
        %v455 = vsub.s32 0, %v454
        %v456 = vrot.slane %v451, %v455
        %v457 = vlaneseq
        %v458 = vshrl.u32 %v457, 7
        %v459 = vsub.s32 1, %v458
        %v460 = vrot.slane %v451, %v459
        %v461 = vlaneseq
        %v462 = vshrl.u32 %v461, 7
        %v463 = vsub.s32 2, %v462
        %v464 = vrot.slane %v451, %v463
        %v465 = vlaneseq
        %v466 = vshrl.u32 %v465, 7
        %v467 = vsub.s32 3, %v466
        %v468 = vrot.slane %v451, %v467
        %v469 = vlaneseq
        %v470 = vshrl.u32 %v469, 7
        %v471 = vsub.s32 4, %v470
        %v472 = vrot.slane %v451, %v471
        %vm478 = vcmask 588800
        %v480 = vsel %vm478, %v325, 0
        %482 = vmatprep.subr.mxu0 %v327
        %483 = vmatpush1.msra.mxu0 %v326
        %484 = vmatprep.subr.mxu0 %v332
        %485 = vmatpush1.msra.mxu0 %v331
        %486 = vmatprep.subr.mxu0 %v337
        %487 = vmatpush1.msra.mxu0 %v336
        %488 = vmatprep.subr.mxu0 %v342
        %489 = vmatpush1.msra.mxu0 %v341
        %490 = vmatprep.subr.mxu0 %v347
        %491 = vmatpush1.msra.mxu0 %v346
        %492 = vmatprep.subr.mxu0 %v352
        %493 = vmatpush1.msra.mxu0 %v351
        %494 = vmatprep.subr.mxu0 %v357
        %495 = vmatpush1.msra.mxu0 %v356
        %496 = vmatprep.subr.mxu0 %v362
        %497 = vmatpush1.msra.mxu0 %v361
        %498 = vmatprep.subr.mxu0 %v367
        %499 = vmatpush1.msra.mxu0 %v366
        %500 = vmatprep.subr.mxu0 %v372
        %501 = vmatpush1.msra.mxu0 %v371
        %502 = vmatprep.subr.mxu0 %v377
        %503 = vmatpush1.msra.mxu0 %v376
        %504 = vmatprep.subr.mxu0 %v382
        %505 = vmatpush1.msra.mxu0 %v381
        %506 = vmatprep.subr.mxu0 %v387
        %507 = vmatpush1.msra.mxu0 %v386
        %508 = vmatprep.subr.mxu0 %v392
        %509 = vmatpush1.msra.mxu0 %v391
        %510 = vmatprep.subr.mxu0 %v397
        %511 = vmatpush1.msra.mxu0 %v396
        %512 = vmatprep.subr.mxu0 %v402
        %513 = vmatpush1.msra.mxu0 %v401
        %514 = vmatprep.subr.mxu0 %v407
        %515 = vmatpush1.msra.mxu0 %v406
        %516 = vmatprep.subr.mxu0 %v412
        %517 = vmatpush1.msra.mxu0 %v411
        %518 = vmatprep.subr.mxu0 %v417
        %519 = vmatpush1.msra.mxu0 %v416
        %520 = vmatprep.subr.mxu0 %v422
        %521 = vmatpush1.msra.mxu0 %v421
        %522 = vmatprep.subr.mxu0 %v427
        %523 = vmatpush1.msra.mxu0 %v426
        %524 = vmatprep.subr.mxu0 %v432
        %525 = vmatpush1.msra.mxu0 %v431
        %526 = vmatprep.subr.mxu0 %v437
        %527 = vmatpush1.msra.mxu0 %v436
        %528 = vmatprep.subr.mxu0 %v442
        %529 = vmatpush1.msra.mxu0 %v441
        %530 = vmatprep.subr.mxu0 %v447
        %531 = vmatpush1.msra.mxu0 %v446
        %532 = vmatprep.subr.mxu0 0.0
        %533 = vmatpush1.msra.mxu0 0.0
        %534 = vmatprep.subr.mxu0 0.0
        %535 = vmatpush1.msra.mxu0 0.0
        %536 = vmatprep.subr.mxu0 0.0
        %537 = vmatpush1.msra.mxu0 0.0
        %538 = vmatprep.subr.mxu0 0.0
        %539 = vmatpush1.msra.mxu0 0.0
        %540 = vmatprep.subr.mxu0 0.0
        %541 = vmatpush1.msra.mxu0 0.0
        %542 = vmatprep.subr.mxu0 0.0
        %543 = vmatpush1.msra.mxu0 0.0
        %544 = vmatprep.subr.mxu0 0.0
        %545 = vmatpush1.msra.mxu0 0.0
        %546 = vmatprep.mubr.f32.mxu0 %v480
        %547 = vmatmul.mubr.f32.gmra.mrb[0].mxu0 %v324
        %v548 = vpop.f32.mrb[0].mxu0
        %v549 = vadd.f32 %v456, %v548
        %v550 = vpop.f32.mrb[0].mxu0
        %v551 = vadd.f32 %v460, %v550
        %552 = vdwg.mxu0
        %553 = vmatprep.subr.mxu0 %v329
        %554 = vmatpush1.msra.mxu0 %v328
        %555 = vmatprep.subr.mxu0 %v334
        %556 = vmatpush1.msra.mxu0 %v333
        %557 = vmatprep.subr.mxu0 %v339
        %558 = vmatpush1.msra.mxu0 %v338
        %559 = vmatprep.subr.mxu0 %v344
        %560 = vmatpush1.msra.mxu0 %v343
        %561 = vmatprep.subr.mxu0 %v349
        %562 = vmatpush1.msra.mxu0 %v348
        %563 = vmatprep.subr.mxu0 %v354
        %564 = vmatpush1.msra.mxu0 %v353
        %565 = vmatprep.subr.mxu0 %v359
        %566 = vmatpush1.msra.mxu0 %v358
        %567 = vmatprep.subr.mxu0 %v364
        %568 = vmatpush1.msra.mxu0 %v363
        %569 = vmatprep.subr.mxu0 %v369
        %570 = vmatpush1.msra.mxu0 %v368
        %571 = vmatprep.subr.mxu0 %v374
        %572 = vmatpush1.msra.mxu0 %v373
        %573 = vmatprep.subr.mxu0 %v379
        %574 = vmatpush1.msra.mxu0 %v378
        %575 = vmatprep.subr.mxu0 %v384
        %576 = vmatpush1.msra.mxu0 %v383
        %577 = vmatprep.subr.mxu0 %v389
        %578 = vmatpush1.msra.mxu0 %v388
        %579 = vmatprep.subr.mxu0 %v394
        %580 = vmatpush1.msra.mxu0 %v393
        %581 = vmatprep.subr.mxu0 %v399
        %582 = vmatpush1.msra.mxu0 %v398
        %583 = vmatprep.subr.mxu0 %v404
        %584 = vmatpush1.msra.mxu0 %v403
        %585 = vmatprep.subr.mxu0 %v409
        %586 = vmatpush1.msra.mxu0 %v408
        %587 = vmatprep.subr.mxu0 %v414
        %588 = vmatpush1.msra.mxu0 %v413
        %589 = vmatprep.subr.mxu0 %v419
        %590 = vmatpush1.msra.mxu0 %v418
        %591 = vmatprep.subr.mxu0 %v424
        %592 = vmatpush1.msra.mxu0 %v423
        %593 = vmatprep.subr.mxu0 %v429
        %594 = vmatpush1.msra.mxu0 %v428
        %595 = vmatprep.subr.mxu0 %v434
        %596 = vmatpush1.msra.mxu0 %v433
        %597 = vmatprep.subr.mxu0 %v439
        %598 = vmatpush1.msra.mxu0 %v438
        %599 = vmatprep.subr.mxu0 %v444
        %600 = vmatpush1.msra.mxu0 %v443
        %601 = vmatprep.subr.mxu0 %v449
        %602 = vmatpush1.msra.mxu0 %v448
        %603 = vmatprep.subr.mxu0 0.0
        %604 = vmatpush1.msra.mxu0 0.0
        %605 = vmatprep.subr.mxu0 0.0
        %606 = vmatpush1.msra.mxu0 0.0
        %607 = vmatprep.subr.mxu0 0.0
        %608 = vmatpush1.msra.mxu0 0.0
        %609 = vmatprep.subr.mxu0 0.0
        %610 = vmatpush1.msra.mxu0 0.0
        %611 = vmatprep.subr.mxu0 0.0
        %612 = vmatpush1.msra.mxu0 0.0
        %613 = vmatprep.subr.mxu0 0.0
        %614 = vmatpush1.msra.mxu0 0.0
        %615 = vmatprep.subr.mxu0 0.0
        %616 = vmatpush1.msra.mxu0 0.0
        %617 = vmatprep.mubr.f32.mxu0 %v480
        %618 = vmatmul.mubr.f32.gmra.mrb[0].mxu0 %v324
        %v619 = vpop.f32.mrb[0].mxu0
        %v620 = vadd.f32 %v464, %v619
        %v621 = vpop.f32.mrb[0].mxu0
        %v622 = vadd.f32 %v468, %v621
        %623 = vdwg.mxu0
        %624 = vmatprep.subr.mxu0 0.0
        %625 = vmatpush1.msra.mxu0 %v330
        %626 = vmatprep.subr.mxu0 0.0
        %627 = vmatpush1.msra.mxu0 %v335
        %628 = vmatprep.subr.mxu0 0.0
        %629 = vmatpush1.msra.mxu0 %v340
        %630 = vmatprep.subr.mxu0 0.0
        %631 = vmatpush1.msra.mxu0 %v345
        %632 = vmatprep.subr.mxu0 0.0
        %633 = vmatpush1.msra.mxu0 %v350
        %634 = vmatprep.subr.mxu0 0.0
        %635 = vmatpush1.msra.mxu0 %v355
        %636 = vmatprep.subr.mxu0 0.0
        %637 = vmatpush1.msra.mxu0 %v360
        %638 = vmatprep.subr.mxu0 0.0
        %639 = vmatpush1.msra.mxu0 %v365
        %640 = vmatprep.subr.mxu0 0.0
        %641 = vmatpush1.msra.mxu0 %v370
        %642 = vmatprep.subr.mxu0 0.0
        %643 = vmatpush1.msra.mxu0 %v375
        %644 = vmatprep.subr.mxu0 0.0
        %645 = vmatpush1.msra.mxu0 %v380
        %646 = vmatprep.subr.mxu0 0.0
        %647 = vmatpush1.msra.mxu0 %v385
        %648 = vmatprep.subr.mxu0 0.0
        %649 = vmatpush1.msra.mxu0 %v390
        %650 = vmatprep.subr.mxu0 0.0
        %651 = vmatpush1.msra.mxu0 %v395
        %652 = vmatprep.subr.mxu0 0.0
        %653 = vmatpush1.msra.mxu0 %v400
        %654 = vmatprep.subr.mxu0 0.0
        %655 = vmatpush1.msra.mxu0 %v405
        %656 = vmatprep.subr.mxu0 0.0
        %657 = vmatpush1.msra.mxu0 %v410
        %658 = vmatprep.subr.mxu0 0.0
        %659 = vmatpush1.msra.mxu0 %v415
        %660 = vmatprep.subr.mxu0 0.0
        %661 = vmatpush1.msra.mxu0 %v420
        %662 = vmatprep.subr.mxu0 0.0
        %663 = vmatpush1.msra.mxu0 %v425
        %664 = vmatprep.subr.mxu0 0.0
        %665 = vmatpush1.msra.mxu0 %v430
        %666 = vmatprep.subr.mxu0 0.0
        %667 = vmatpush1.msra.mxu0 %v435
        %668 = vmatprep.subr.mxu0 0.0
        %669 = vmatpush1.msra.mxu0 %v440
        %670 = vmatprep.subr.mxu0 0.0
        %671 = vmatpush1.msra.mxu0 %v445
        %672 = vmatprep.subr.mxu0 0.0
        %673 = vmatpush1.msra.mxu0 %v450
        %674 = vmatprep.subr.mxu0 0.0
        %675 = vmatpush1.msra.mxu0 0.0
        %676 = vmatprep.subr.mxu0 0.0
        %677 = vmatpush1.msra.mxu0 0.0
        %678 = vmatprep.subr.mxu0 0.0
        %679 = vmatpush1.msra.mxu0 0.0
        %680 = vmatprep.subr.mxu0 0.0
        %681 = vmatpush1.msra.mxu0 0.0
        %682 = vmatprep.subr.mxu0 0.0
        %683 = vmatpush1.msra.mxu0 0.0
        %684 = vmatprep.subr.mxu0 0.0
        %685 = vmatpush1.msra.mxu0 0.0
        %686 = vmatprep.subr.mxu0 0.0
        %687 = vmatpush1.msra.mxu0 0.0
        %688 = vmatprep.mubr.f32.mxu0 %v480
        %689 = vmatmul.mubr.f32.gmra.mrb[0].mxu0 %v324
        %v690 = vpop.f32.mrb[0].mxu0
        %v691 = vadd.f32 %v472, %v690
        %v692 = vpop.f32.mrb[0].mxu0
        %693 = vdwg.mxu0
        %v694 = vtanh.pop %v549
        %v695 = vtanh.pop %v551
        %v696 = vtanh.pop %v620
        %v697 = vtanh.pop %v622
        %v698 = vtanh.pop %v691
        %v699 = vpack.c.bf16 %v694, %v694
        %v700 = vpack.c.bf16 %v695, %v695
        %v701 = vpack.c.bf16 %v696, %v696
        %v702 = vpack.c.bf16 %v697, %v697
        %v703 = vpack.c.bf16 %v698, %v698
        %v704 = vld [vmem:[%s274] sm:$0xff]
        %v705 = vld [vmem:[%s274 + $0x8] sm:$0xff]
        %v706 = vld [vmem:[%s274 + $0x10] sm:$0xff]
        %v707 = vld [vmem:[%s274 + $0x18] sm:$0xff]
        %v708 = vld [vmem:[%s274 + $0x20] sm:$0xff]
        %v709 = vld [vmem:[%s274 + $0x28] sm:$0xff]
        %v710 = vld [vmem:[%s274 + $0x30] sm:$0xff]
        %v711 = vld [vmem:[%s274 + $0x38] sm:$0xff]
        %v712 = vld [vmem:[%s274 + $0x40] sm:$0xff]
        %v713 = vld [vmem:[%s274 + $0x48] sm:$0xff]
        %v714 = vld [vmem:[%s274 + $0x50] sm:$0xff]
        %v715 = vld [vmem:[%s274 + $0x58] sm:$0xff]
        %v716 = vld [vmem:[%s274 + $0x60] sm:$0xff]
        %v717 = vld [vmem:[%s274 + $0x68] sm:$0xff]
        %v718 = vld [vmem:[%s274 + $0x70] sm:$0xff]
        %v719 = vld [vmem:[%s274 + $0x78] sm:$0xff]
        %v720 = vld [vmem:[%s274 + $0x80] sm:$0xff]
        %v721 = vld [vmem:[%s274 + $0x88] sm:$0xff]
        %v722 = vld [vmem:[%s274 + $0x90] sm:$0xff]
        %v723 = vld [vmem:[%s274 + $0x98] sm:$0xff]
        %v724 = vld [vmem:[%s274 + $0xa0] sm:$0xff]
        %v725 = vld [vmem:[%s274 + $0xa8] sm:$0xff]
        %v726 = vld [vmem:[%s274 + $0xb0] sm:$0xff]
        %v727 = vld [vmem:[%s274 + $0xb8] sm:$0xff]
        %v728 = vld [vmem:[%s274 + $0xc0] sm:$0xff]
        %v729 = vld [vmem:[%s274 + $0xc8] sm:$0xff]
        %v730 = vld [vmem:[%s274 + $0xd0] sm:$0xff]
        %v731 = vld [vmem:[%s274 + $0xd8] sm:$0xff]
        %v732 = vld [vmem:[%s274 + $0xe0] sm:$0xff]
        %v733 = vld [vmem:[%s274 + $0xe8] sm:$0xff]
        %v734 = vld [vmem:[%s274 + $0xf0] sm:$0xff]
        %v735 = vld [vmem:[%s274 + $0xf8] sm:$0xff]
        %v736 = vld [vmem:[%s274 + $0x100] sm:$0xff]
        %v737 = vld [vmem:[%s274 + $0x108] sm:$0xff]
        %v738 = vld [vmem:[%s274 + $0x110] sm:$0xff]
        %v739 = vld [vmem:[%s274 + $0x118] sm:$0xff]
        %v740 = vld [vmem:[%s274 + $0x120] sm:$0xff]
        %v741 = vld [vmem:[%s274 + $0x128] sm:$0xff]
        %v742 = vld [vmem:[%s274 + $0x130] sm:$0xff]
        %v743 = vld [vmem:[%s274 + $0x138] sm:$0xff]
        %v744 = vld [vmem:[%s274 + $0x140] sm:$0xff]
        %v745 = vld [vmem:[%s274 + $0x148] sm:$0xff]
        %v746 = vld [vmem:[%s274 + $0x150] sm:$0xff]
        %v747 = vld [vmem:[%s274 + $0x158] sm:$0xff]
        %v748 = vld [vmem:[%s274 + $0x160] sm:$0xff]
        %v749 = vld [vmem:[%s274 + $0x168] sm:$0xff]
        %v750 = vld [vmem:[%s274 + $0x170] sm:$0xff]
        %v751 = vld [vmem:[%s274 + $0x178] sm:$0xff]
        %v752 = vld [vmem:[%s274 + $0x180] sm:$0xff]
        %v753 = vld [vmem:[%s274 + $0x188] sm:$0xff]
        %v754 = vld [vmem:[%s274 + $0x190] sm:$0xff]
        %v755 = vld [vmem:[%s274 + $0x198] sm:$0xff]
        %v756 = vld [vmem:[%s274 + $0x1a0] sm:$0xff]
        %v757 = vld [vmem:[%s274 + $0x1a8] sm:$0xff]
        %v758 = vld [vmem:[%s274 + $0x1b0] sm:$0xff]
        %v759 = vld [vmem:[%s274 + $0x1b8] sm:$0xff]
        %v760 = vld [vmem:[%s274 + $0x1c0] sm:$0xff]
        %v761 = vld [vmem:[%s274 + $0x1c8] sm:$0xff]
        %v762 = vld [vmem:[%s274 + $0x1d0] sm:$0xff]
        %v763 = vld [vmem:[%s274 + $0x1d8] sm:$0xff]
        %v764 = vld [vmem:[%s274 + $0x1e0] sm:$0xff]
        %v765 = vld [vmem:[%s274 + $0x1e8] sm:$0xff]
        %v766 = vld [vmem:[%s274 + $0x1f0] sm:$0xff]
        %v767 = vld [vmem:[%s274 + $0x1f8] sm:$0xff]
        %v768 = vld [vmem:[%s274 + $0x200] sm:$0xff]
        %v769 = vld [vmem:[%s274 + $0x208] sm:$0xff]
        %v770 = vld [vmem:[%s274 + $0x210] sm:$0xff]
        %v771 = vld [vmem:[%s274 + $0x218] sm:$0xff]
        %v772 = vld [vmem:[%s274 + $0x220] sm:$0xff]
        %v773 = vld [vmem:[%s274 + $0x228] sm:$0xff]
        %v774 = vld [vmem:[%s274 + $0x230] sm:$0xff]
        %v775 = vld [vmem:[%s274 + $0x238] sm:$0xff]
        %v776 = vld [vmem:[%s274 + $0x240] sm:$0xff]
        %v777 = vld [vmem:[%s274 + $0x248] sm:$0xff]
        %v778 = vld [vmem:[%s274 + $0x250] sm:$0xff]
        %v779 = vld [vmem:[%s274 + $0x258] sm:$0xff]
        %v780 = vld [vmem:[%s274 + $0x260] sm:$0xff]
        %v781 = vld [vmem:[%s274 + $0x268] sm:$0xff]
        %v782 = vld [vmem:[%s274 + $0x270] sm:$0xff]
        %v783 = vld [vmem:[%s274 + $0x278] sm:$0xff]
        %v784 = vld [vmem:[%s274 + $0x280] sm:$0xff]
        %v785 = vld [vmem:[%s274 + $0x288] sm:$0xff]
        %v786 = vld [vmem:[%s274 + $0x290] sm:$0xff]
        %v787 = vld [vmem:[%s274 + $0x298] sm:$0xff]
        %v788 = vld [vmem:[%s274 + $0x2a0] sm:$0xff]
        %v789 = vld [vmem:[%s274 + $0x2a8] sm:$0xff]
        %v790 = vld [vmem:[%s274 + $0x2b0] sm:$0xff]
        %v791 = vld [vmem:[%s274 + $0x2b8] sm:$0xff]
        %v792 = vld [vmem:[%s274 + $0x2c0] sm:$0xff]
        %v793 = vld [vmem:[%s274 + $0x2c8] sm:$0xff]
        %v794 = vld [vmem:[%s274 + $0x2d0] sm:$0xff]
        %v795 = vld [vmem:[%s274 + $0x2d8] sm:$0xff]
        %v796 = vld [vmem:[%s274 + $0x2e0] sm:$0xff]
        %v797 = vld [vmem:[%s274 + $0x2e8] sm:$0xff]
        %v798 = vld [vmem:[%s274 + $0x2f0] sm:$0xff]
        %v799 = vld [vmem:[%s274 + $0x2f8] sm:$0xff]
        %v800 = vld [vmem:[%s274 + $0x300] sm:$0xff]
        %v801 = vld [vmem:[%s274 + $0x308] sm:$0xff]
        %v802 = vld [vmem:[%s274 + $0x310] sm:$0xff]
        %v803 = vld [vmem:[%s274 + $0x318] sm:$0xff]
        %v804 = vld [vmem:[%s274 + $0x320] sm:$0xff]
        %v805 = vld [vmem:[%s274 + $0x328] sm:$0xff]
        %v806 = vld [vmem:[%s274 + $0x330] sm:$0xff]
        %v807 = vld [vmem:[%s274 + $0x338] sm:$0xff]
        %v808 = vld [vmem:[%s274 + $0x340] sm:$0xff]
        %v809 = vld [vmem:[%s274 + $0x348] sm:$0xff]
        %v810 = vld [vmem:[%s274 + $0x350] sm:$0xff]
        %v811 = vld [vmem:[%s274 + $0x358] sm:$0xff]
        %v812 = vld [vmem:[%s274 + $0x360] sm:$0xff]
        %v813 = vld [vmem:[%s274 + $0x368] sm:$0xff]
        %v814 = vld [vmem:[%s274 + $0x370] sm:$0xff]
        %v815 = vld [vmem:[%s274 + $0x378] sm:$0xff]
        %v816 = vld [vmem:[%s274 + $0x380] sm:$0xff]
        %v817 = vld [vmem:[%s274 + $0x388] sm:$0xff]
        %v818 = vld [vmem:[%s274 + $0x390] sm:$0xff]
        %v819 = vld [vmem:[%s274 + $0x398] sm:$0xff]
        %v820 = vld [vmem:[%s274 + $0x3a0] sm:$0xff]
        %v821 = vld [vmem:[%s274 + $0x3a8] sm:$0xff]
        %v822 = vld [vmem:[%s274 + $0x3b0] sm:$0xff]
        %v823 = vld [vmem:[%s274 + $0x3b8] sm:$0xff]
        %v824 = vld [vmem:[%s274 + $0x3c0] sm:$0xff]
        %v825 = vld [vmem:[%s274 + $0x3c8] sm:$0xff]
        %v826 = vld [vmem:[%s274 + $0x3d0] sm:$0xff]
        %v827 = vld [vmem:[%s274 + $0x3d8] sm:$0xff]
        %v828 = vld [vmem:[%s274 + $0x3e0] sm:$0xff]
        %v829 = vld [vmem:[%s274 + $0x3e8] sm:$0xff]
        %v830 = vld [vmem:[%s274 + $0x3f0] sm:$0xff]
        %v831 = vld [vmem:[%s274 + $0x3f8] sm:$0xff]
        %v832 = vld [vmem:[%s274 + $0x400] sm:$0xff]
        %v833 = vld [vmem:[%s274 + $0x408] sm:$0xff]
        %v834 = vld [vmem:[%s274 + $0x410] sm:$0xff]
        %v835 = vld [vmem:[%s274 + $0x418] sm:$0xff]
        %v836 = vld [vmem:[%s274 + $0x420] sm:$0xff]
        %v837 = vld [vmem:[%s274 + $0x428] sm:$0xff]
        %v838 = vld [vmem:[%s274 + $0x430] sm:$0xff]
        %v839 = vld [vmem:[%s274 + $0x438] sm:$0xff]
        %v840 = vld [vmem:[%s274 + $0x440] sm:$0xff]
        %v841 = vld [vmem:[%s274 + $0x448] sm:$0xff]
        %v842 = vld [vmem:[%s274 + $0x450] sm:$0xff]
        %v843 = vld [vmem:[%s274 + $0x458] sm:$0xff]
        %v844 = vld [vmem:[%s274 + $0x460] sm:$0xff]
        %v845 = vld [vmem:[%s274 + $0x468] sm:$0xff]
        %v846 = vld [vmem:[%s274 + $0x470] sm:$0xff]
        %v847 = vld [vmem:[%s274 + $0x478] sm:$0xff]
        %v848 = vld [vmem:[%s274 + $0x480] sm:$0xff]
        %v849 = vld [vmem:[%s274 + $0x488] sm:$0xff]
        %v850 = vld [vmem:[%s274 + $0x490] sm:$0xff]
        %v851 = vld [vmem:[%s274 + $0x498] sm:$0xff]
        %v852 = vld [vmem:[%s274 + $0x4a0] sm:$0xff]
        %v853 = vld [vmem:[%s274 + $0x4a8] sm:$0xff]
        %v854 = vld [vmem:[%s274 + $0x4b0] sm:$0xff]
        %v855 = vld [vmem:[%s274 + $0x4b8] sm:$0xff]
        %v856 = vld [vmem:[%s274 + $0x4c0] sm:$0xff]
        %v857 = vld [vmem:[%s274 + $0x4c8] sm:$0xff]
        %v858 = vld [vmem:[%s274 + $0x4d0] sm:$0xff]
        %v859 = vld [vmem:[%s274 + $0x4d8] sm:$0xff]
        %v860 = vld [vmem:[%s274 + $0x4e0] sm:$0xff]
        %v861 = vld [vmem:[%s274 + $0x4e8] sm:$0xff]
        %v862 = vld [vmem:[%s274 + $0x4f0] sm:$0xff]
        %v863 = vld [vmem:[%s274 + $0x4f8] sm:$0xff]
        %v864 = vld [vmem:[%s274 + $0x500] sm:$0xff]
        %v865 = vld [vmem:[%s274 + $0x508] sm:$0xff]
        %v866 = vld [vmem:[%s274 + $0x510] sm:$0xff]
        %v867 = vld [vmem:[%s274 + $0x518] sm:$0xff]
        %v868 = vld [vmem:[%s274 + $0x520] sm:$0xff]
        %v869 = vld [vmem:[%s274 + $0x528] sm:$0xff]
        %v870 = vld [vmem:[%s274 + $0x530] sm:$0xff]
        %v871 = vld [vmem:[%s274 + $0x538] sm:$0xff]
        %v872 = vld [vmem:[%s274 + $0x540] sm:$0xff]
        %v873 = vld [vmem:[%s274 + $0x548] sm:$0xff]
        %v874 = vld [vmem:[%s274 + $0x550] sm:$0xff]
        %v875 = vld [vmem:[%s274 + $0x558] sm:$0xff]
        %v876 = vld [vmem:[%s274 + $0x560] sm:$0xff]
        %v877 = vld [vmem:[%s274 + $0x568] sm:$0xff]
        %v878 = vld [vmem:[%s274 + $0x570] sm:$0xff]
        %v879 = vld [vmem:[%s274 + $0x578] sm:$0xff]
        %v880 = vld [vmem:[%s274 + $0x580] sm:$0xff]
        %v881 = vld [vmem:[%s274 + $0x588] sm:$0xff]
        %v882 = vld [vmem:[%s274 + $0x590] sm:$0xff]
        %v883 = vld [vmem:[%s274 + $0x598] sm:$0xff]
        %v884 = vld [vmem:[%s274 + $0x5a0] sm:$0xff]
        %v885 = vld [vmem:[%s274 + $0x5a8] sm:$0xff]
        %v886 = vld [vmem:[%s274 + $0x5b0] sm:$0xff]
        %v887 = vld [vmem:[%s274 + $0x5b8] sm:$0xff]
        %v888 = vld [vmem:[%s274 + $0x5c0] sm:$0xff]
        %v889 = vld [vmem:[%s274 + $0x5c8] sm:$0xff]
        %v890 = vld [vmem:[%s274 + $0x5d0] sm:$0xff]
        %v891 = vld [vmem:[%s274 + $0x5d8] sm:$0xff]
        %v892 = vld [vmem:[%s274 + $0x5e0] sm:$0xff]
        %v893 = vld [vmem:[%s274 + $0x5e8] sm:$0xff]
        %v894 = vld [vmem:[%s274 + $0x5f0] sm:$0xff]
        %v895 = vld [vmem:[%s274 + $0x5f8] sm:$0xff]
        %v896 = vld [vmem:[%s274 + $0x600] sm:$0xff]
        %v897 = vld [vmem:[%s274 + $0x608] sm:$0xff]
        %v898 = vld [vmem:[%s274 + $0x610] sm:$0xff]
        %v899 = vld [vmem:[%s274 + $0x618] sm:$0xff]
        %v900 = vld [vmem:[%s274 + $0x620] sm:$0xff]
        %v901 = vld [vmem:[%s274 + $0x628] sm:$0xff]
        %v902 = vld [vmem:[%s274 + $0x630] sm:$0xff]
        %v903 = vld [vmem:[%s274 + $0x638] sm:$0xff]
        %v904 = vld [vmem:[%s274 + $0x640] sm:$0xff]
        %v905 = vld [vmem:[%s274 + $0x648] sm:$0xff]
        %v906 = vld [vmem:[%s274 + $0x650] sm:$0xff]
        %v907 = vld [vmem:[%s274 + $0x658] sm:$0xff]
        %v908 = vld [vmem:[%s274 + $0x660] sm:$0xff]
        %v909 = vld [vmem:[%s274 + $0x668] sm:$0xff]
        %v910 = vld [vmem:[%s274 + $0x670] sm:$0xff]
        %v911 = vld [vmem:[%s274 + $0x678] sm:$0xff]
        %v912 = vld [vmem:[%s274 + $0x680] sm:$0xff]
        %v913 = vld [vmem:[%s274 + $0x688] sm:$0xff]
        %v914 = vld [vmem:[%s274 + $0x690] sm:$0xff]
        %v915 = vld [vmem:[%s274 + $0x698] sm:$0xff]
        %v916 = vld [vmem:[%s274 + $0x6a0] sm:$0xff]
        %v917 = vld [vmem:[%s274 + $0x6a8] sm:$0xff]
        %v918 = vld [vmem:[%s274 + $0x6b0] sm:$0xff]
        %v919 = vld [vmem:[%s274 + $0x6b8] sm:$0xff]
        %v920 = vld [vmem:[%s274 + $0x6c0] sm:$0xff]
        %v921 = vld [vmem:[%s274 + $0x6c8] sm:$0xff]
        %v922 = vld [vmem:[%s274 + $0x6d0] sm:$0xff]
        %v923 = vld [vmem:[%s274 + $0x6d8] sm:$0xff]
        %v924 = vld [vmem:[%s274 + $0x6e0] sm:$0xff]
        %v925 = vld [vmem:[%s274 + $0x6e8] sm:$0xff]
        %v926 = vld [vmem:[%s274 + $0x6f0] sm:$0xff]
        %v927 = vld [vmem:[%s274 + $0x6f8] sm:$0xff]
        %v928 = vld [vmem:[%s274 + $0x700] sm:$0xff]
        %v929 = vld [vmem:[%s274 + $0x708] sm:$0xff]
        %v930 = vld [vmem:[%s274 + $0x710] sm:$0xff]
        %v931 = vld [vmem:[%s274 + $0x718] sm:$0xff]
        %v932 = vld [vmem:[%s274 + $0x720] sm:$0xff]
        %v933 = vld [vmem:[%s274 + $0x728] sm:$0xff]
        %v934 = vld [vmem:[%s274 + $0x730] sm:$0xff]
        %v935 = vld [vmem:[%s274 + $0x738] sm:$0xff]
        %v936 = vld [vmem:[%s274 + $0x740] sm:$0xff]
        %v937 = vld [vmem:[%s274 + $0x748] sm:$0xff]
        %v938 = vld [vmem:[%s274 + $0x750] sm:$0xff]
        %v939 = vld [vmem:[%s274 + $0x758] sm:$0xff]
        %v940 = vld [vmem:[%s274 + $0x760] sm:$0xff]
        %v941 = vld [vmem:[%s274 + $0x768] sm:$0xff]
        %v942 = vld [vmem:[%s274 + $0x770] sm:$0xff]
        %v943 = vld [vmem:[%s274 + $0x778] sm:$0xff]
        %v944 = vld [vmem:[%s274 + $0x780] sm:$0xff]
        %v945 = vld [vmem:[%s274 + $0x788] sm:$0xff]
        %v946 = vld [vmem:[%s274 + $0x790] sm:$0xff]
        %v947 = vld [vmem:[%s274 + $0x798] sm:$0xff]
        %v948 = vld [vmem:[%s274 + $0x7a0] sm:$0xff]
        %v949 = vld [vmem:[%s274 + $0x7a8] sm:$0xff]
        %v950 = vld [vmem:[%s274 + $0x7b0] sm:$0xff]
        %v951 = vld [vmem:[%s274 + $0x7b8] sm:$0xff]
        %v952 = vld [vmem:[%s274 + $0x7c0] sm:$0xff]
        %v953 = vld [vmem:[%s274 + $0x7c8] sm:$0xff]
        %v954 = vld [vmem:[%s274 + $0x7d0] sm:$0xff]
        %v955 = vld [vmem:[%s274 + $0x7d8] sm:$0xff]
        %v956 = vld [vmem:[%s274 + $0x7e0] sm:$0xff]
        %v957 = vld [vmem:[%s274 + $0x7e8] sm:$0xff]
        %v958 = vld [vmem:[%s274 + $0x7f0] sm:$0xff]
        %v959 = vld [vmem:[%s274 + $0x7f8] sm:$0xff]
        %v960 = vld [vmem:[%s274 + $0x800] sm:$0xff]
        %v961 = vld [vmem:[%s274 + $0x808] sm:$0xff]
        %v962 = vld [vmem:[%s274 + $0x810] sm:$0xff]
        %v963 = vld [vmem:[%s274 + $0x818] sm:$0xff]
        %v964 = vld [vmem:[%s274 + $0x820] sm:$0xff]
        %v965 = vld [vmem:[%s274 + $0x828] sm:$0xff]
        %v966 = vld [vmem:[%s274 + $0x830] sm:$0xff]
        %v967 = vld [vmem:[%s274 + $0x838] sm:$0xff]
        %v968 = vld [vmem:[%s274 + $0x840] sm:$0xff]
        %v969 = vld [vmem:[%s274 + $0x848] sm:$0xff]
        %v970 = vld [vmem:[%s274 + $0x850] sm:$0xff]
        %v971 = vld [vmem:[%s274 + $0x858] sm:$0xff]
        %v972 = vld [vmem:[%s274 + $0x860] sm:$0xff]
        %v973 = vld [vmem:[%s274 + $0x868] sm:$0xff]
        %v974 = vld [vmem:[%s274 + $0x870] sm:$0xff]
        %v975 = vld [vmem:[%s274 + $0x878] sm:$0xff]
        %v976 = vld [vmem:[%s274 + $0x880] sm:$0xff]
        %v977 = vld [vmem:[%s274 + $0x888] sm:$0xff]
        %v978 = vld [vmem:[%s274 + $0x890] sm:$0xff]
        %v979 = vld [vmem:[%s274 + $0x898] sm:$0xff]
        %v980 = vld [vmem:[%s274 + $0x8a0] sm:$0xff]
        %v981 = vld [vmem:[%s274 + $0x8a8] sm:$0xff]
        %v982 = vld [vmem:[%s274 + $0x8b0] sm:$0xff]
        %v983 = vld [vmem:[%s274 + $0x8b8] sm:$0xff]
        %v984 = vld [vmem:[%s274 + $0x8c0] sm:$0xff]
        %v985 = vld [vmem:[%s274 + $0x8c8] sm:$0xff]
        %v986 = vld [vmem:[%s274 + $0x8d0] sm:$0xff]
        %v987 = vld [vmem:[%s274 + $0x8d8] sm:$0xff]
        %v988 = vld [vmem:[%s274 + $0x8e0] sm:$0xff]
        %v989 = vld [vmem:[%s274 + $0x8e8] sm:$0xff]
        %v990 = vld [vmem:[%s274 + $0x8f0] sm:$0xff]
        %v991 = vld [vmem:[%s274 + $0x8f8] sm:$0xff]
        %v992 = vld [vmem:[%s274 + $0x900] sm:$0xff]
        %v993 = vld [vmem:[%s274 + $0x908] sm:$0xff]
        %v994 = vld [vmem:[%s274 + $0x910] sm:$0xff]
        %v995 = vld [vmem:[%s274 + $0x918] sm:$0xff]
        %v996 = vld [vmem:[%s274 + $0x920] sm:$0xff]
        %v997 = vld [vmem:[%s274 + $0x928] sm:$0xff]
        %v998 = vld [vmem:[%s274 + $0x930] sm:$0xff]
        %v999 = vld [vmem:[%s274 + $0x938] sm:$0xff]
        %v1000 = vld [vmem:[%s274 + $0x940] sm:$0xff]
        %v1001 = vld [vmem:[%s274 + $0x948] sm:$0xff]
        %v1002 = vld [vmem:[%s274 + $0x950] sm:$0xff]
        %v1003 = vld [vmem:[%s274 + $0x958] sm:$0xff]
        %v1004 = vld [vmem:[%s274 + $0x960] sm:$0xff]
        %v1005 = vld [vmem:[%s274 + $0x968] sm:$0xff]
        %v1006 = vld [vmem:[%s274 + $0x970] sm:$0xff]
        %v1007 = vld [vmem:[%s274 + $0x978] sm:$0xff]
        %v1008 = vld [vmem:[%s274 + $0x980] sm:$0xff]
        %v1009 = vld [vmem:[%s274 + $0x988] sm:$0xff]
        %v1010 = vld [vmem:[%s274 + $0x990] sm:$0xff]
        %v1011 = vld [vmem:[%s274 + $0x998] sm:$0xff]
        %v1012 = vld [vmem:[%s274 + $0x9a0] sm:$0xff]
        %v1013 = vld [vmem:[%s274 + $0x9a8] sm:$0xff]
        %v1014 = vld [vmem:[%s274 + $0x9b0] sm:$0xff]
        %v1015 = vld [vmem:[%s274 + $0x9b8] sm:$0xff]
        %v1016 = vld [vmem:[%s274 + $0x9c0] sm:$0xff]
        %v1017 = vld [vmem:[%s274 + $0x9c8] sm:$0xff]
        %v1018 = vld [vmem:[%s274 + $0x9d0] sm:$0xff]
        %v1019 = vld [vmem:[%s274 + $0x9d8] sm:$0xff]
        %v1020 = vld [vmem:[%s274 + $0x9e0] sm:$0xff]
        %v1021 = vld [vmem:[%s274 + $0x9e8] sm:$0xff]
        %v1022 = vld [vmem:[%s274 + $0x9f0] sm:$0xff]
        %v1023 = vld [vmem:[%s274 + $0x9f8] sm:$0xff]
        %v1024 = vld [vmem:[%s274 + $0xa00] sm:$0xff]
        %v1025 = vld [vmem:[%s274 + $0xa08] sm:$0xff]
        %v1026 = vld [vmem:[%s274 + $0xa10] sm:$0xff]
        %v1027 = vld [vmem:[%s274 + $0xa18] sm:$0xff]
        %v1028 = vld [vmem:[%s274 + $0xa20] sm:$0xff]
        %v1029 = vld [vmem:[%s274 + $0xa28] sm:$0xff]
        %v1030 = vld [vmem:[%s274 + $0xa30] sm:$0xff]
        %v1031 = vld [vmem:[%s274 + $0xa38] sm:$0xff]
        %v1032 = vld [vmem:[%s274 + $0xa40] sm:$0xff]
        %v1033 = vld [vmem:[%s274 + $0xa48] sm:$0xff]
        %v1034 = vld [vmem:[%s274 + $0xa50] sm:$0xff]
        %v1035 = vld [vmem:[%s274 + $0xa58] sm:$0xff]
        %v1036 = vld [vmem:[%s274 + $0xa60] sm:$0xff]
        %v1037 = vld [vmem:[%s274 + $0xa68] sm:$0xff]
        %v1038 = vld [vmem:[%s274 + $0xa70] sm:$0xff]
        %v1039 = vld [vmem:[%s274 + $0xa78] sm:$0xff]
        %v1040 = vld [vmem:[%s274 + $0xa80] sm:$0xff]
        %v1041 = vld [vmem:[%s274 + $0xa88] sm:$0xff]
        %v1042 = vld [vmem:[%s274 + $0xa90] sm:$0xff]
        %v1043 = vld [vmem:[%s274 + $0xa98] sm:$0xff]
        %v1044 = vld [vmem:[%s274 + $0xaa0] sm:$0xff]
        %v1045 = vld [vmem:[%s274 + $0xaa8] sm:$0xff]
        %v1046 = vld [vmem:[%s274 + $0xab0] sm:$0xff]
        %v1047 = vld [vmem:[%s274 + $0xab8] sm:$0xff]
        %v1048 = vld [vmem:[%s274 + $0xac0] sm:$0xff]
        %v1049 = vld [vmem:[%s274 + $0xac8] sm:$0xff]
        %v1050 = vld [vmem:[%s274 + $0xad0] sm:$0xff]
        %v1051 = vld [vmem:[%s274 + $0xad8] sm:$0xff]
        %v1052 = vld [vmem:[%s274 + $0xae0] sm:$0xff]
        %v1053 = vld [vmem:[%s274 + $0xae8] sm:$0xff]
        %v1054 = vld [vmem:[%s274 + $0xaf0] sm:$0xff]
        %v1055 = vld [vmem:[%s274 + $0xaf8] sm:$0xff]
        %v1056 = vld [vmem:[%s274 + $0xb00] sm:$0xff]
        %v1057 = vld [vmem:[%s274 + $0xb08] sm:$0xff]
        %v1058 = vld [vmem:[%s274 + $0xb10] sm:$0xff]
        %v1059 = vld [vmem:[%s274 + $0xb18] sm:$0xff]
        %v1060 = vld [vmem:[%s274 + $0xb20] sm:$0xff]
        %v1061 = vld [vmem:[%s274 + $0xb28] sm:$0xff]
        %v1062 = vld [vmem:[%s274 + $0xb30] sm:$0xff]
        %v1063 = vld [vmem:[%s274 + $0xb38] sm:$0xff]
        %v1064 = vld [vmem:[%s274 + $0xb40] sm:$0xff]
        %v1065 = vld [vmem:[%s274 + $0xb48] sm:$0xff]
        %v1066 = vld [vmem:[%s274 + $0xb50] sm:$0xff]
        %v1067 = vld [vmem:[%s274 + $0xb58] sm:$0xff]
        %v1068 = vld [vmem:[%s274 + $0xb60] sm:$0xff]
        %v1069 = vld [vmem:[%s274 + $0xb68] sm:$0xff]
        %v1070 = vld [vmem:[%s274 + $0xb70] sm:$0xff]
        %v1071 = vld [vmem:[%s274 + $0xb78] sm:$0xff]
        %v1072 = vld [vmem:[%s274 + $0xb80] sm:$0xff]
        %v1073 = vld [vmem:[%s274 + $0xb88] sm:$0xff]
        %v1074 = vld [vmem:[%s274 + $0xb90] sm:$0xff]
        %v1075 = vld [vmem:[%s274 + $0xb98] sm:$0xff]
        %v1076 = vld [vmem:[%s274 + $0xba0] sm:$0xff]
        %v1077 = vld [vmem:[%s274 + $0xba8] sm:$0xff]
        %v1078 = vld [vmem:[%s274 + $0xbb0] sm:$0xff]
        %v1079 = vld [vmem:[%s274 + $0xbb8] sm:$0xff]
        %v1080 = vld [vmem:[%s274 + $0xbc0] sm:$0xff]
        %v1081 = vld [vmem:[%s274 + $0xbc8] sm:$0xff]
        %v1082 = vld [vmem:[%s274 + $0xbd0] sm:$0xff]
        %v1083 = vld [vmem:[%s274 + $0xbd8] sm:$0xff]
        %v1084 = vld [vmem:[%s274 + $0xbe0] sm:$0xff]
        %v1085 = vld [vmem:[%s274 + $0xbe8] sm:$0xff]
        %v1086 = vld [vmem:[%s274 + $0xbf0] sm:$0xff]
        %v1087 = vld [vmem:[%s274 + $0xbf8] sm:$0xff]
        %v1088 = vld [vmem:[%s274 + $0xc00] sm:$0xff]
        %v1089 = vld [vmem:[%s274 + $0xc08] sm:$0xff]
        %v1090 = vld [vmem:[%s274 + $0xc10] sm:$0xff]
        %v1091 = vld [vmem:[%s274 + $0xc18] sm:$0xff]
        %v1092 = vld [vmem:[%s274 + $0xc20] sm:$0xff]
        %v1093 = vld [vmem:[%s274 + $0xc28] sm:$0xff]
        %v1094 = vld [vmem:[%s274 + $0xc30] sm:$0xff]
        %v1095 = vld [vmem:[%s274 + $0xc38] sm:$0xff]
        %v1096 = vld [vmem:[%s274 + $0xc40] sm:$0xff]
        %v1097 = vld [vmem:[%s274 + $0xc48] sm:$0xff]
        %v1098 = vld [vmem:[%s274 + $0xc50] sm:$0xff]
        %v1099 = vld [vmem:[%s274 + $0xc58] sm:$0xff]
        %v1100 = vld [vmem:[%s274 + $0xc60] sm:$0xff]
        %v1101 = vld [vmem:[%s274 + $0xc68] sm:$0xff]
        %v1102 = vld [vmem:[%s274 + $0xc70] sm:$0xff]
        %v1103 = vld [vmem:[%s274 + $0xc78] sm:$0xff]
        %v1104 = vld [vmem:[%s274 + $0xc80] sm:$0xff]
        %v1105 = vld [vmem:[%s274 + $0xc88] sm:$0xff]
        %v1106 = vld [vmem:[%s274 + $0xc90] sm:$0xff]
        %v1107 = vld [vmem:[%s274 + $0xc98] sm:$0xff]
        %v1108 = vld [vmem:[%s274 + $0xca0] sm:$0xff]
        %v1109 = vld [vmem:[%s274 + $0xca8] sm:$0xff]
        %v1110 = vld [vmem:[%s274 + $0xcb0] sm:$0xff]
        %v1111 = vld [vmem:[%s274 + $0xcb8] sm:$0xff]
        %v1112 = vld [vmem:[%s274 + $0xcc0] sm:$0xff]
        %v1113 = vld [vmem:[%s274 + $0xcc8] sm:$0xff]
        %v1114 = vld [vmem:[%s274 + $0xcd0] sm:$0xff]
        %v1115 = vld [vmem:[%s274 + $0xcd8] sm:$0xff]
        %v1116 = vld [vmem:[%s274 + $0xce0] sm:$0xff]
        %v1117 = vld [vmem:[%s274 + $0xce8] sm:$0xff]
        %v1118 = vld [vmem:[%s274 + $0xcf0] sm:$0xff]
        %v1119 = vld [vmem:[%s274 + $0xcf8] sm:$0xff]
        %v1120 = vld [vmem:[%s274 + $0xd00] sm:$0xff]
        %v1121 = vld [vmem:[%s274 + $0xd08] sm:$0xff]
        %v1122 = vld [vmem:[%s274 + $0xd10] sm:$0xff]
        %v1123 = vld [vmem:[%s274 + $0xd18] sm:$0xff]
        %v1124 = vld [vmem:[%s274 + $0xd20] sm:$0xff]
        %v1125 = vld [vmem:[%s274 + $0xd28] sm:$0xff]
        %v1126 = vld [vmem:[%s274 + $0xd30] sm:$0xff]
        %v1127 = vld [vmem:[%s274 + $0xd38] sm:$0xff]
        %v1128 = vld [vmem:[%s274 + $0xd40] sm:$0xff]
        %v1129 = vld [vmem:[%s274 + $0xd48] sm:$0xff]
        %v1130 = vld [vmem:[%s274 + $0xd50] sm:$0xff]
        %v1131 = vld [vmem:[%s274 + $0xd58] sm:$0xff]
        %v1132 = vld [vmem:[%s274 + $0xd60] sm:$0xff]
        %v1133 = vld [vmem:[%s274 + $0xd68] sm:$0xff]
        %v1134 = vld [vmem:[%s274 + $0xd70] sm:$0xff]
        %v1135 = vld [vmem:[%s274 + $0xd78] sm:$0xff]
        %v1136 = vld [vmem:[%s274 + $0xd80] sm:$0xff]
        %v1137 = vld [vmem:[%s274 + $0xd88] sm:$0xff]
        %v1138 = vld [vmem:[%s274 + $0xd90] sm:$0xff]
        %v1139 = vld [vmem:[%s274 + $0xd98] sm:$0xff]
        %v1140 = vld [vmem:[%s274 + $0xda0] sm:$0xff]
        %v1141 = vld [vmem:[%s274 + $0xda8] sm:$0xff]
        %v1142 = vld [vmem:[%s274 + $0xdb0] sm:$0xff]
        %v1143 = vld [vmem:[%s274 + $0xdb8] sm:$0xff]
        %v1144 = vld [vmem:[%s274 + $0xdc0] sm:$0xff]
        %v1145 = vld [vmem:[%s274 + $0xdc8] sm:$0xff]
        %v1146 = vld [vmem:[%s274 + $0xdd0] sm:$0xff]
        %v1147 = vld [vmem:[%s274 + $0xdd8] sm:$0xff]
        %v1148 = vld [vmem:[%s274 + $0xde0] sm:$0xff]
        %v1149 = vld [vmem:[%s274 + $0xde8] sm:$0xff]
        %v1150 = vld [vmem:[%s274 + $0xdf0] sm:$0xff]
        %v1151 = vld [vmem:[%s274 + $0xdf8] sm:$0xff]
        %v1152 = vld [vmem:[%s274 + $0xe00] sm:$0xff]
        %v1153 = vld [vmem:[%s274 + $0xe08] sm:$0xff]
        %v1154 = vld [vmem:[%s274 + $0xe10] sm:$0xff]
        %v1155 = vld [vmem:[%s274 + $0xe18] sm:$0xff]
        %v1156 = vld [vmem:[%s274 + $0xe20] sm:$0xff]
        %v1157 = vld [vmem:[%s274 + $0xe28] sm:$0xff]
        %v1158 = vld [vmem:[%s274 + $0xe30] sm:$0xff]
        %v1159 = vld [vmem:[%s274 + $0xe38] sm:$0xff]
        %v1160 = vld [vmem:[%s274 + $0xe40] sm:$0xff]
        %v1161 = vld [vmem:[%s274 + $0xe48] sm:$0xff]
        %v1162 = vld [vmem:[%s274 + $0xe50] sm:$0xff]
        %v1163 = vld [vmem:[%s274 + $0xe58] sm:$0xff]
        %v1164 = vld [vmem:[%s274 + $0xe60] sm:$0xff]
        %v1165 = vld [vmem:[%s274 + $0xe68] sm:$0xff]
        %v1166 = vld [vmem:[%s274 + $0xe70] sm:$0xff]
        %v1167 = vld [vmem:[%s274 + $0xe78] sm:$0xff]
        %v1168 = vld [vmem:[%s274 + $0xe80] sm:$0xff]
        %v1169 = vld [vmem:[%s274 + $0xe88] sm:$0xff]
        %v1170 = vld [vmem:[%s274 + $0xe90] sm:$0xff]
        %v1171 = vld [vmem:[%s274 + $0xe98] sm:$0xff]
        %v1172 = vld [vmem:[%s274 + $0xea0] sm:$0xff]
        %v1173 = vld [vmem:[%s274 + $0xea8] sm:$0xff]
        %v1174 = vld [vmem:[%s274 + $0xeb0] sm:$0xff]
        %v1175 = vld [vmem:[%s274 + $0xeb8] sm:$0xff]
        %v1176 = vld [vmem:[%s274 + $0xec0] sm:$0xff]
        %v1177 = vld [vmem:[%s274 + $0xec8] sm:$0xff]
        %v1178 = vld [vmem:[%s274 + $0xed0] sm:$0xff]
        %v1179 = vld [vmem:[%s274 + $0xed8] sm:$0xff]
        %v1180 = vld [vmem:[%s274 + $0xee0] sm:$0xff]
        %v1181 = vld [vmem:[%s274 + $0xee8] sm:$0xff]
        %v1182 = vld [vmem:[%s274 + $0xef0] sm:$0xff]
        %v1183 = vld [vmem:[%s274 + $0xef8] sm:$0xff]
        %v1184 = vld [vmem:[%s274 + $0xf00] sm:$0xff]
        %v1185 = vld [vmem:[%s274 + $0xf08] sm:$0xff]
        %v1186 = vld [vmem:[%s274 + $0xf10] sm:$0xff]
        %v1187 = vld [vmem:[%s274 + $0xf18] sm:$0xff]
        %v1188 = vld [vmem:[%s274 + $0xf20] sm:$0xff]
        %v1189 = vld [vmem:[%s274 + $0xf28] sm:$0xff]
        %v1190 = vld [vmem:[%s274 + $0xf30] sm:$0xff]
        %v1191 = vld [vmem:[%s274 + $0xf38] sm:$0xff]
        %v1192 = vld [vmem:[%s274 + $0xf40] sm:$0xff]
        %v1193 = vld [vmem:[%s274 + $0xf48] sm:$0xff]
        %v1194 = vld [vmem:[%s274 + $0xf50] sm:$0xff]
        %v1195 = vld [vmem:[%s274 + $0xf58] sm:$0xff]
        %v1196 = vld [vmem:[%s274 + $0xf60] sm:$0xff]
        %v1197 = vld [vmem:[%s274 + $0xf68] sm:$0xff]
        %v1198 = vld [vmem:[%s274 + $0xf70] sm:$0xff]
        %v1199 = vld [vmem:[%s274 + $0xf78] sm:$0xff]
        %v1200 = vld [vmem:[%s274 + $0xf80] sm:$0xff]
        %v1201 = vld [vmem:[%s274 + $0xf88] sm:$0xff]
        %v1202 = vld [vmem:[%s274 + $0xf90] sm:$0xff]
        %v1203 = vld [vmem:[%s274 + $0xf98] sm:$0xff]
        %v1204 = vld [vmem:[%s274 + $0xfa0] sm:$0xff]
        %v1205 = vld [vmem:[%s274 + $0xfa8] sm:$0xff]
        %v1206 = vld [vmem:[%s274 + $0xfb0] sm:$0xff]
        %v1207 = vld [vmem:[%s274 + $0xfb8] sm:$0xff]
        %v1208 = vld [vmem:[%s274 + $0xfc0] sm:$0xff]
        %v1209 = vld [vmem:[%s274 + $0xfc8] sm:$0xff]
        %v1210 = vld [vmem:[%s274 + $0xfd0] sm:$0xff]
        %v1211 = vld [vmem:[%s274 + $0xfd8] sm:$0xff]
        %v1212 = vld [vmem:[%s274 + $0xfe0] sm:$0xff]
        %v1213 = vld [vmem:[%s274 + $0xfe8] sm:$0xff]
        %v1214 = vld [vmem:[%s274 + $0xff0] sm:$0xff]
        %v1215 = vld [vmem:[%s274 + $0xff8] sm:$0xff]
        %v1216 = vld [vmem:[%s274 + $0x1000] sm:$0xff]
        %v1217 = vld [vmem:[%s274 + $0x1008] sm:$0xff]
        %v1218 = vld [vmem:[%s274 + $0x1010] sm:$0xff]
        %v1219 = vld [vmem:[%s274 + $0x1018] sm:$0xff]
        %v1220 = vld [vmem:[%s274 + $0x1020] sm:$0xff]
        %v1221 = vld [vmem:[%s274 + $0x1028] sm:$0xff]
        %v1222 = vld [vmem:[%s274 + $0x1030] sm:$0xff]
        %v1223 = vld [vmem:[%s274 + $0x1038] sm:$0xff]
        %v1224 = vld [vmem:[%s274 + $0x1040] sm:$0xff]
        %v1225 = vld [vmem:[%s274 + $0x1048] sm:$0xff]
        %v1226 = vld [vmem:[%s274 + $0x1050] sm:$0xff]
        %v1227 = vld [vmem:[%s274 + $0x1058] sm:$0xff]
        %v1228 = vld [vmem:[%s274 + $0x1060] sm:$0xff]
        %v1229 = vld [vmem:[%s274 + $0x1068] sm:$0xff]
        %v1230 = vld [vmem:[%s274 + $0x1070] sm:$0xff]
        %v1231 = vld [vmem:[%s274 + $0x1078] sm:$0xff]
        %v1232 = vld [vmem:[%s274 + $0x1080] sm:$0xff]
        %v1233 = vld [vmem:[%s274 + $0x1088] sm:$0xff]
        %v1234 = vld [vmem:[%s274 + $0x1090] sm:$0xff]
        %v1235 = vld [vmem:[%s274 + $0x1098] sm:$0xff]
        %v1236 = vld [vmem:[%s274 + $0x10a0] sm:$0xff]
        %v1237 = vld [vmem:[%s274 + $0x10a8] sm:$0xff]
        %v1238 = vld [vmem:[%s274 + $0x10b0] sm:$0xff]
        %v1239 = vld [vmem:[%s274 + $0x10b8] sm:$0xff]
        %v1240 = vld [vmem:[%s274 + $0x10c0] sm:$0xff]
        %v1241 = vld [vmem:[%s274 + $0x10c8] sm:$0xff]
        %v1242 = vld [vmem:[%s274 + $0x10d0] sm:$0xff]
        %v1243 = vld [vmem:[%s274 + $0x10d8] sm:$0xff]
        %v1244 = vld [vmem:[%s274 + $0x10e0] sm:$0xff]
        %v1245 = vld [vmem:[%s274 + $0x10e8] sm:$0xff]
        %v1246 = vld [vmem:[%s274 + $0x10f0] sm:$0xff]
        %v1247 = vld [vmem:[%s274 + $0x10f8] sm:$0xff]
        %v1248 = vld [vmem:[%s274 + $0x1100] sm:$0xff]
        %v1249 = vld [vmem:[%s274 + $0x1108] sm:$0xff]
        %v1250 = vld [vmem:[%s274 + $0x1110] sm:$0xff]
        %v1251 = vld [vmem:[%s274 + $0x1118] sm:$0xff]
        %v1252 = vld [vmem:[%s274 + $0x1120] sm:$0xff]
        %v1253 = vld [vmem:[%s274 + $0x1128] sm:$0xff]
        %v1254 = vld [vmem:[%s274 + $0x1130] sm:$0xff]
        %v1255 = vld [vmem:[%s274 + $0x1138] sm:$0xff]
        %v1256 = vld [vmem:[%s274 + $0x1140] sm:$0xff]
        %v1257 = vld [vmem:[%s274 + $0x1148] sm:$0xff]
        %v1258 = vld [vmem:[%s274 + $0x1150] sm:$0xff]
        %v1259 = vld [vmem:[%s274 + $0x1158] sm:$0xff]
        %v1260 = vld [vmem:[%s274 + $0x1160] sm:$0xff]
        %v1261 = vld [vmem:[%s274 + $0x1168] sm:$0xff]
        %v1262 = vld [vmem:[%s274 + $0x1170] sm:$0xff]
        %v1263 = vld [vmem:[%s274 + $0x1178] sm:$0xff]
        %v1264 = vld [vmem:[%s274 + $0x1180] sm:$0xff]
        %v1265 = vld [vmem:[%s274 + $0x1188] sm:$0xff]
        %v1266 = vld [vmem:[%s274 + $0x1190] sm:$0xff]
        %v1267 = vld [vmem:[%s274 + $0x1198] sm:$0xff]
        %v1268 = vld [vmem:[%s274 + $0x11a0] sm:$0xff]
        %v1269 = vld [vmem:[%s274 + $0x11a8] sm:$0xff]
        %v1270 = vld [vmem:[%s274 + $0x11b0] sm:$0xff]
        %v1271 = vld [vmem:[%s274 + $0x11b8] sm:$0xff]
        %v1272 = vld [vmem:[%s274 + $0x11c0] sm:$0xff]
        %v1273 = vld [vmem:[%s274 + $0x11c8] sm:$0xff]
        %v1274 = vld [vmem:[%s274 + $0x11d0] sm:$0xff]
        %v1275 = vld [vmem:[%s274 + $0x11d8] sm:$0xff]
        %v1276 = vld [vmem:[%s274 + $0x11e0] sm:$0xff]
        %v1277 = vld [vmem:[%s274 + $0x11e8] sm:$0xff]
        %v1278 = vld [vmem:[%s274 + $0x11f0] sm:$0xff]
        %v1279 = vld [vmem:[%s274 + $0x11f8] sm:$0xff]
        %v1280 = vld [vmem:[%s274 + $0x1200] sm:$0xff]
        %v1281 = vld [vmem:[%s274 + $0x1208] sm:$0xff]
        %v1282 = vld [vmem:[%s274 + $0x1210] sm:$0xff]
        %v1283 = vld [vmem:[%s274 + $0x1218] sm:$0xff]
        %v1284 = vld [vmem:[%s274 + $0x1220] sm:$0xff]
        %v1285 = vld [vmem:[%s274 + $0x1228] sm:$0xff]
        %v1286 = vld [vmem:[%s274 + $0x1230] sm:$0xff]
        %v1287 = vld [vmem:[%s274 + $0x1238] sm:$0xff]
        %v1288 = vld [vmem:[%s274 + $0x1240] sm:$0xff]
        %v1289 = vld [vmem:[%s274 + $0x1248] sm:$0xff]
        %v1290 = vld [vmem:[%s274 + $0x1250] sm:$0xff]
        %v1291 = vld [vmem:[%s274 + $0x1258] sm:$0xff]
        %v1292 = vld [vmem:[%s274 + $0x1260] sm:$0xff]
        %v1293 = vld [vmem:[%s274 + $0x1268] sm:$0xff]
        %v1294 = vld [vmem:[%s274 + $0x1270] sm:$0xff]
        %v1295 = vld [vmem:[%s274 + $0x1278] sm:$0xff]
        %v1296 = vld [vmem:[%s274 + $0x1280] sm:$0xff]
        %v1297 = vld [vmem:[%s274 + $0x1288] sm:$0xff]
        %v1298 = vld [vmem:[%s274 + $0x1290] sm:$0xff]
        %v1299 = vld [vmem:[%s274 + $0x1298] sm:$0xff]
        %v1300 = vld [vmem:[%s274 + $0x12a0] sm:$0xff]
        %v1301 = vld [vmem:[%s274 + $0x12a8] sm:$0xff]
        %v1302 = vld [vmem:[%s274 + $0x12b0] sm:$0xff]
        %v1303 = vld [vmem:[%s274 + $0x12b8] sm:$0xff]
        %v1304 = vld [vmem:[%s283] sm:$0xff]
        %v1305 = vld [vmem:[%s283 + $0x8] sm:$0xff]
        %v1308 = vlaneseq
        %v1309 = vshrl.u32 %v1308, 7
        %v1310 = vsub.s32 0, %v1309
        %v1311 = vrot.slane %v1304, %v1310
        %v1312 = vlaneseq
        %v1313 = vshrl.u32 %v1312, 7
        %v1314 = vsub.s32 1, %v1313
        %v1315 = vrot.slane %v1304, %v1314
        %v1316 = vlaneseq
        %v1317 = vshrl.u32 %v1316, 7
        %v1318 = vsub.s32 2, %v1317
        %v1319 = vrot.slane %v1304, %v1318
        %v1320 = vlaneseq
        %v1321 = vshrl.u32 %v1320, 7
        %v1322 = vsub.s32 3, %v1321
        %v1323 = vrot.slane %v1304, %v1322
        %v1324 = vlaneseq
        %v1325 = vshrl.u32 %v1324, 7
        %v1326 = vsub.s32 4, %v1325
        %v1327 = vrot.slane %v1304, %v1326
        %v1328 = vlaneseq
        %v1329 = vshrl.u32 %v1328, 7
        %v1330 = vsub.s32 5, %v1329
        %v1331 = vrot.slane %v1304, %v1330
        %v1332 = vlaneseq
        %v1333 = vshrl.u32 %v1332, 7
        %v1334 = vsub.s32 6, %v1333
        %v1335 = vrot.slane %v1304, %v1334
        %v1336 = vlaneseq
        %v1337 = vshrl.u32 %v1336, 7
        %v1338 = vsub.s32 7, %v1337
        %v1339 = vrot.slane %v1304, %v1338
        %v1340 = vlaneseq
        %v1341 = vshrl.u32 %v1340, 7
        %v1342 = vsub.s32 0, %v1341
        %v1343 = vrot.slane %v1305, %v1342
        %v1344 = vlaneseq
        %v1345 = vshrl.u32 %v1344, 7
        %v1346 = vsub.s32 1, %v1345
        %v1347 = vrot.slane %v1305, %v1346
        %v1348 = vlaneseq
        %v1349 = vshrl.u32 %v1348, 7
        %v1350 = vsub.s32 2, %v1349
        %v1351 = vrot.slane %v1305, %v1350
        %v1352 = vlaneseq
        %v1353 = vshrl.u32 %v1352, 7
        %v1354 = vsub.s32 3, %v1353
        %v1355 = vrot.slane %v1305, %v1354
        %v1356 = vlaneseq
        %v1357 = vshrl.u32 %v1356, 7
        %v1358 = vsub.s32 4, %v1357
        %v1359 = vrot.slane %v1305, %v1358
        %v1360 = vlaneseq
        %v1361 = vshrl.u32 %v1360, 7
        %v1362 = vsub.s32 5, %v1361
        %v1363 = vrot.slane %v1305, %v1362
        %v1364 = vlaneseq
        %v1365 = vshrl.u32 %v1364, 7
        %v1366 = vsub.s32 6, %v1365
        %v1367 = vrot.slane %v1305, %v1366
        %v1368 = vlaneseq
        %v1369 = vshrl.u32 %v1368, 7
        %v1370 = vsub.s32 7, %v1369
        %v1371 = vrot.slane %v1305, %v1370
        %v1988 = vunpack.c.l.b16 %v704
        %v1989 = vunpack.c.h.b16 %v704
        %v1990 = vunpack.c.l.b16 %v705
        %v1991 = vunpack.c.h.b16 %v705
        %v1992 = vunpack.c.l.b16 %v706
        %v1993 = vunpack.c.h.b16 %v706
        %v1994 = vunpack.c.l.b16 %v707
        %v1995 = vunpack.c.h.b16 %v707
        %v1996 = vunpack.c.l.b16 %v708
        %v1997 = vunpack.c.h.b16 %v708
        %v1998 = vunpack.c.l.b16 %v709
        %v1999 = vunpack.c.h.b16 %v709
        %v2000 = vunpack.c.l.b16 %v710
        %v2001 = vunpack.c.h.b16 %v710
        %v2002 = vunpack.c.l.b16 %v711
        %v2003 = vunpack.c.h.b16 %v711
        %v2004 = vunpack.c.l.b16 %v712
        %v2005 = vunpack.c.h.b16 %v712
        %v2006 = vunpack.c.l.b16 %v713
        %v2007 = vunpack.c.h.b16 %v713
        %v2008 = vunpack.c.l.b16 %v714
        %v2009 = vunpack.c.h.b16 %v714
        %v2010 = vunpack.c.l.b16 %v715
        %v2011 = vunpack.c.h.b16 %v715
        %v2012 = vunpack.c.l.b16 %v716
        %v2013 = vunpack.c.h.b16 %v716
        %v2014 = vunpack.c.l.b16 %v717
        %v2015 = vunpack.c.h.b16 %v717
        %v2016 = vunpack.c.l.b16 %v718
        %v2017 = vunpack.c.h.b16 %v718
        %v2018 = vunpack.c.l.b16 %v719
        %v2019 = vunpack.c.h.b16 %v719
        %v2020 = vunpack.c.l.b16 %v720
        %v2021 = vunpack.c.h.b16 %v720
        %v2022 = vunpack.c.l.b16 %v721
        %v2023 = vunpack.c.h.b16 %v721
        %v2024 = vunpack.c.l.b16 %v722
        %v2025 = vunpack.c.h.b16 %v722
        %v2026 = vunpack.c.l.b16 %v723
        %v2027 = vunpack.c.h.b16 %v723
        %v2028 = vunpack.c.l.b16 %v724
        %v2029 = vunpack.c.h.b16 %v724
        %v2030 = vunpack.c.l.b16 %v725
        %v2031 = vunpack.c.h.b16 %v725
        %v2032 = vunpack.c.l.b16 %v726
        %v2033 = vunpack.c.h.b16 %v726
        %v2034 = vunpack.c.l.b16 %v727
        %v2035 = vunpack.c.h.b16 %v727
        %v2036 = vunpack.c.l.b16 %v728
        %v2037 = vunpack.c.h.b16 %v728
        %v2038 = vunpack.c.l.b16 %v729
        %v2039 = vunpack.c.h.b16 %v729
        %v2040 = vunpack.c.l.b16 %v730
        %v2041 = vunpack.c.h.b16 %v730
        %v2042 = vunpack.c.l.b16 %v731
        %v2043 = vunpack.c.h.b16 %v731
        %v2044 = vunpack.c.l.b16 %v732
        %v2045 = vunpack.c.h.b16 %v732
        %v2046 = vunpack.c.l.b16 %v733
        %v2047 = vunpack.c.h.b16 %v733
        %v2048 = vunpack.c.l.b16 %v734
        %v2049 = vunpack.c.h.b16 %v734
        %v2050 = vunpack.c.l.b16 %v735
        %v2051 = vunpack.c.h.b16 %v735
        %v2052 = vunpack.c.l.b16 %v736
        %v2053 = vunpack.c.h.b16 %v736
        %v2054 = vunpack.c.l.b16 %v737
        %v2055 = vunpack.c.h.b16 %v737
        %v2056 = vunpack.c.l.b16 %v738
        %v2057 = vunpack.c.h.b16 %v738
        %v2058 = vunpack.c.l.b16 %v739
        %v2059 = vunpack.c.h.b16 %v739
        %v2060 = vunpack.c.l.b16 %v740
        %v2061 = vunpack.c.h.b16 %v740
        %v2062 = vunpack.c.l.b16 %v741
        %v2063 = vunpack.c.h.b16 %v741
        %v2064 = vunpack.c.l.b16 %v742
        %v2065 = vunpack.c.h.b16 %v742
        %v2066 = vunpack.c.l.b16 %v743
        %v2067 = vunpack.c.h.b16 %v743
        %v2068 = vunpack.c.l.b16 %v744
        %v2069 = vunpack.c.h.b16 %v744
        %v2070 = vunpack.c.l.b16 %v745
        %v2071 = vunpack.c.h.b16 %v745
        %v2072 = vunpack.c.l.b16 %v746
        %v2073 = vunpack.c.h.b16 %v746
        %v2074 = vunpack.c.l.b16 %v747
        %v2075 = vunpack.c.h.b16 %v747
        %v2076 = vunpack.c.l.b16 %v748
        %v2077 = vunpack.c.h.b16 %v748
        %v2078 = vunpack.c.l.b16 %v749
        %v2079 = vunpack.c.h.b16 %v749
        %v2080 = vunpack.c.l.b16 %v750
        %v2081 = vunpack.c.h.b16 %v750
        %v2082 = vunpack.c.l.b16 %v751
        %v2083 = vunpack.c.h.b16 %v751
        %v2084 = vunpack.c.l.b16 %v752
        %v2085 = vunpack.c.h.b16 %v752
        %v2086 = vunpack.c.l.b16 %v753
        %v2087 = vunpack.c.h.b16 %v753
        %v2088 = vunpack.c.l.b16 %v754
        %v2089 = vunpack.c.h.b16 %v754
        %v2090 = vunpack.c.l.b16 %v755
        %v2091 = vunpack.c.h.b16 %v755
        %v2092 = vunpack.c.l.b16 %v756
        %v2093 = vunpack.c.h.b16 %v756
        %v2094 = vunpack.c.l.b16 %v757
        %v2095 = vunpack.c.h.b16 %v757
        %v2096 = vunpack.c.l.b16 %v758
        %v2097 = vunpack.c.h.b16 %v758
        %v2098 = vunpack.c.l.b16 %v759
        %v2099 = vunpack.c.h.b16 %v759
        %v2100 = vunpack.c.l.b16 %v760
        %v2101 = vunpack.c.h.b16 %v760
        %v2102 = vunpack.c.l.b16 %v761
        %v2103 = vunpack.c.h.b16 %v761
        %v2104 = vunpack.c.l.b16 %v762
        %v2105 = vunpack.c.h.b16 %v762
        %v2106 = vunpack.c.l.b16 %v763
        %v2107 = vunpack.c.h.b16 %v763
        %v2108 = vunpack.c.l.b16 %v764
        %v2109 = vunpack.c.h.b16 %v764
        %v2110 = vunpack.c.l.b16 %v765
        %v2111 = vunpack.c.h.b16 %v765
        %v2112 = vunpack.c.l.b16 %v766
        %v2113 = vunpack.c.h.b16 %v766
        %v2114 = vunpack.c.l.b16 %v767
        %v2115 = vunpack.c.h.b16 %v767
        %v2116 = vunpack.c.l.b16 %v768
        %v2117 = vunpack.c.h.b16 %v768
        %v2118 = vunpack.c.l.b16 %v769
        %v2119 = vunpack.c.h.b16 %v769
        %v2120 = vunpack.c.l.b16 %v770
        %v2121 = vunpack.c.h.b16 %v770
        %v2122 = vunpack.c.l.b16 %v771
        %v2123 = vunpack.c.h.b16 %v771
        %v2124 = vunpack.c.l.b16 %v772
        %v2125 = vunpack.c.h.b16 %v772
        %v2126 = vunpack.c.l.b16 %v773
        %v2127 = vunpack.c.h.b16 %v773
        %v2128 = vunpack.c.l.b16 %v774
        %v2129 = vunpack.c.h.b16 %v774
        %v2130 = vunpack.c.l.b16 %v775
        %v2131 = vunpack.c.h.b16 %v775
        %v2132 = vunpack.c.l.b16 %v776
        %v2133 = vunpack.c.h.b16 %v776
        %v2134 = vunpack.c.l.b16 %v777
        %v2135 = vunpack.c.h.b16 %v777
        %v2136 = vunpack.c.l.b16 %v778
        %v2137 = vunpack.c.h.b16 %v778
        %v2138 = vunpack.c.l.b16 %v779
        %v2139 = vunpack.c.h.b16 %v779
        %v2140 = vunpack.c.l.b16 %v780
        %v2141 = vunpack.c.h.b16 %v780
        %v2142 = vunpack.c.l.b16 %v781
        %v2143 = vunpack.c.h.b16 %v781
        %v2144 = vunpack.c.l.b16 %v782
        %v2145 = vunpack.c.h.b16 %v782
        %v2146 = vunpack.c.l.b16 %v783
        %v2147 = vunpack.c.h.b16 %v783
        %v2148 = vunpack.c.l.b16 %v784
        %v2149 = vunpack.c.h.b16 %v784
        %v2150 = vunpack.c.l.b16 %v785
        %v2151 = vunpack.c.h.b16 %v785
        %v2152 = vunpack.c.l.b16 %v786
        %v2153 = vunpack.c.h.b16 %v786
        %v2154 = vunpack.c.l.b16 %v787
        %v2155 = vunpack.c.h.b16 %v787
        %v2156 = vunpack.c.l.b16 %v788
        %v2157 = vunpack.c.h.b16 %v788
        %v2158 = vunpack.c.l.b16 %v789
        %v2159 = vunpack.c.h.b16 %v789
        %v2160 = vunpack.c.l.b16 %v790
        %v2161 = vunpack.c.h.b16 %v790
        %v2162 = vunpack.c.l.b16 %v791
        %v2163 = vunpack.c.h.b16 %v791
        %v2164 = vunpack.c.l.b16 %v792
        %v2165 = vunpack.c.h.b16 %v792
        %v2166 = vunpack.c.l.b16 %v793
        %v2167 = vunpack.c.h.b16 %v793
        %v2168 = vunpack.c.l.b16 %v794
        %v2169 = vunpack.c.h.b16 %v794
        %v2170 = vunpack.c.l.b16 %v795
        %v2171 = vunpack.c.h.b16 %v795
        %v2172 = vunpack.c.l.b16 %v796
        %v2173 = vunpack.c.h.b16 %v796
        %v2174 = vunpack.c.l.b16 %v797
        %v2175 = vunpack.c.h.b16 %v797
        %v2176 = vunpack.c.l.b16 %v798
        %v2177 = vunpack.c.h.b16 %v798
        %v2178 = vunpack.c.l.b16 %v799
        %v2179 = vunpack.c.h.b16 %v799
        %v2180 = vunpack.c.l.b16 %v800
        %v2181 = vunpack.c.h.b16 %v800
        %v2182 = vunpack.c.l.b16 %v801
        %v2183 = vunpack.c.h.b16 %v801
        %v2184 = vunpack.c.l.b16 %v802
        %v2185 = vunpack.c.h.b16 %v802
        %v2186 = vunpack.c.l.b16 %v803
        %v2187 = vunpack.c.h.b16 %v803
        %v2188 = vunpack.c.l.b16 %v804
        %v2189 = vunpack.c.h.b16 %v804
        %v2190 = vunpack.c.l.b16 %v805
        %v2191 = vunpack.c.h.b16 %v805
        %v2192 = vunpack.c.l.b16 %v806
        %v2193 = vunpack.c.h.b16 %v806
        %v2194 = vunpack.c.l.b16 %v807
        %v2195 = vunpack.c.h.b16 %v807
        %v2196 = vunpack.c.l.b16 %v808
        %v2197 = vunpack.c.h.b16 %v808
        %v2198 = vunpack.c.l.b16 %v809
        %v2199 = vunpack.c.h.b16 %v809
        %v2200 = vunpack.c.l.b16 %v810
        %v2201 = vunpack.c.h.b16 %v810
        %v2202 = vunpack.c.l.b16 %v811
        %v2203 = vunpack.c.h.b16 %v811
        %v2204 = vunpack.c.l.b16 %v812
        %v2205 = vunpack.c.h.b16 %v812
        %v2206 = vunpack.c.l.b16 %v813
        %v2207 = vunpack.c.h.b16 %v813
        %v2208 = vunpack.c.l.b16 %v814
        %v2209 = vunpack.c.h.b16 %v814
        %v2210 = vunpack.c.l.b16 %v815
        %v2211 = vunpack.c.h.b16 %v815
        %v2212 = vunpack.c.l.b16 %v816
        %v2213 = vunpack.c.h.b16 %v816
        %v2214 = vunpack.c.l.b16 %v817
        %v2215 = vunpack.c.h.b16 %v817
        %v2216 = vunpack.c.l.b16 %v818
        %v2217 = vunpack.c.h.b16 %v818
        %v2218 = vunpack.c.l.b16 %v819
        %v2219 = vunpack.c.h.b16 %v819
        %v2220 = vunpack.c.l.b16 %v820
        %v2221 = vunpack.c.h.b16 %v820
        %v2222 = vunpack.c.l.b16 %v821
        %v2223 = vunpack.c.h.b16 %v821
        %v2224 = vunpack.c.l.b16 %v822
        %v2225 = vunpack.c.h.b16 %v822
        %v2226 = vunpack.c.l.b16 %v823
        %v2227 = vunpack.c.h.b16 %v823
        %v2228 = vunpack.c.l.b16 %v824
        %v2229 = vunpack.c.h.b16 %v824
        %v2230 = vunpack.c.l.b16 %v825
        %v2231 = vunpack.c.h.b16 %v825
        %v2232 = vunpack.c.l.b16 %v826
        %v2233 = vunpack.c.h.b16 %v826
        %v2234 = vunpack.c.l.b16 %v827
        %v2235 = vunpack.c.h.b16 %v827
        %v2236 = vunpack.c.l.b16 %v828
        %v2237 = vunpack.c.h.b16 %v828
        %v2238 = vunpack.c.l.b16 %v829
        %v2239 = vunpack.c.h.b16 %v829
        %v2240 = vunpack.c.l.b16 %v830
        %v2241 = vunpack.c.h.b16 %v830
        %v2242 = vunpack.c.l.b16 %v831
        %v2243 = vunpack.c.h.b16 %v831
        %v2244 = vunpack.c.l.b16 %v832
        %v2245 = vunpack.c.h.b16 %v832
        %v2246 = vunpack.c.l.b16 %v833
        %v2247 = vunpack.c.h.b16 %v833
        %v2248 = vunpack.c.l.b16 %v834
        %v2249 = vunpack.c.h.b16 %v834
        %v2250 = vunpack.c.l.b16 %v835
        %v2251 = vunpack.c.h.b16 %v835
        %v2252 = vunpack.c.l.b16 %v836
        %v2253 = vunpack.c.h.b16 %v836
        %v2254 = vunpack.c.l.b16 %v837
        %v2255 = vunpack.c.h.b16 %v837
        %v2256 = vunpack.c.l.b16 %v838
        %v2257 = vunpack.c.h.b16 %v838
        %v2258 = vunpack.c.l.b16 %v839
        %v2259 = vunpack.c.h.b16 %v839
        %v2260 = vunpack.c.l.b16 %v840
        %v2261 = vunpack.c.h.b16 %v840
        %v2262 = vunpack.c.l.b16 %v841
        %v2263 = vunpack.c.h.b16 %v841
        %v2264 = vunpack.c.l.b16 %v842
        %v2265 = vunpack.c.h.b16 %v842
        %v2266 = vunpack.c.l.b16 %v843
        %v2267 = vunpack.c.h.b16 %v843
        %v2268 = vunpack.c.l.b16 %v844
        %v2269 = vunpack.c.h.b16 %v844
        %v2270 = vunpack.c.l.b16 %v845
        %v2271 = vunpack.c.h.b16 %v845
        %v2272 = vunpack.c.l.b16 %v846
        %v2273 = vunpack.c.h.b16 %v846
        %v2274 = vunpack.c.l.b16 %v847
        %v2275 = vunpack.c.h.b16 %v847
        %v2276 = vunpack.c.l.b16 %v848
        %v2277 = vunpack.c.h.b16 %v848
        %v2278 = vunpack.c.l.b16 %v849
        %v2279 = vunpack.c.h.b16 %v849
        %v2280 = vunpack.c.l.b16 %v850
        %v2281 = vunpack.c.h.b16 %v850
        %v2282 = vunpack.c.l.b16 %v851
        %v2283 = vunpack.c.h.b16 %v851
        %v2284 = vunpack.c.l.b16 %v852
        %v2285 = vunpack.c.h.b16 %v852
        %v2286 = vunpack.c.l.b16 %v853
        %v2287 = vunpack.c.h.b16 %v853
        %v2288 = vunpack.c.l.b16 %v854
        %v2289 = vunpack.c.h.b16 %v854
        %v2290 = vunpack.c.l.b16 %v855
        %v2291 = vunpack.c.h.b16 %v855
        %v2292 = vunpack.c.l.b16 %v856
        %v2293 = vunpack.c.h.b16 %v856
        %v2294 = vunpack.c.l.b16 %v857
        %v2295 = vunpack.c.h.b16 %v857
        %v2296 = vunpack.c.l.b16 %v858
        %v2297 = vunpack.c.h.b16 %v858
        %v2298 = vunpack.c.l.b16 %v859
        %v2299 = vunpack.c.h.b16 %v859
        %v2300 = vunpack.c.l.b16 %v860
        %v2301 = vunpack.c.h.b16 %v860
        %v2302 = vunpack.c.l.b16 %v861
        %v2303 = vunpack.c.h.b16 %v861
        %v2304 = vunpack.c.l.b16 %v862
        %v2305 = vunpack.c.h.b16 %v862
        %v2306 = vunpack.c.l.b16 %v863
        %v2307 = vunpack.c.h.b16 %v863
        %v2308 = vunpack.c.l.b16 %v864
        %v2309 = vunpack.c.h.b16 %v864
        %v2310 = vunpack.c.l.b16 %v865
        %v2311 = vunpack.c.h.b16 %v865
        %v2312 = vunpack.c.l.b16 %v866
        %v2313 = vunpack.c.h.b16 %v866
        %v2314 = vunpack.c.l.b16 %v867
        %v2315 = vunpack.c.h.b16 %v867
        %v2316 = vunpack.c.l.b16 %v868
        %v2317 = vunpack.c.h.b16 %v868
        %v2318 = vunpack.c.l.b16 %v869
        %v2319 = vunpack.c.h.b16 %v869
        %v2320 = vunpack.c.l.b16 %v870
        %v2321 = vunpack.c.h.b16 %v870
        %v2322 = vunpack.c.l.b16 %v871
        %v2323 = vunpack.c.h.b16 %v871
        %v2324 = vunpack.c.l.b16 %v872
        %v2325 = vunpack.c.h.b16 %v872
        %v2326 = vunpack.c.l.b16 %v873
        %v2327 = vunpack.c.h.b16 %v873
        %v2328 = vunpack.c.l.b16 %v874
        %v2329 = vunpack.c.h.b16 %v874
        %v2330 = vunpack.c.l.b16 %v875
        %v2331 = vunpack.c.h.b16 %v875
        %v2332 = vunpack.c.l.b16 %v876
        %v2333 = vunpack.c.h.b16 %v876
        %v2334 = vunpack.c.l.b16 %v877
        %v2335 = vunpack.c.h.b16 %v877
        %v2336 = vunpack.c.l.b16 %v878
        %v2337 = vunpack.c.h.b16 %v878
        %v2338 = vunpack.c.l.b16 %v879
        %v2339 = vunpack.c.h.b16 %v879
        %v2340 = vunpack.c.l.b16 %v880
        %v2341 = vunpack.c.h.b16 %v880
        %v2342 = vunpack.c.l.b16 %v881
        %v2343 = vunpack.c.h.b16 %v881
        %v2344 = vunpack.c.l.b16 %v882
        %v2345 = vunpack.c.h.b16 %v882
        %v2346 = vunpack.c.l.b16 %v883
        %v2347 = vunpack.c.h.b16 %v883
        %v2348 = vunpack.c.l.b16 %v884
        %v2349 = vunpack.c.h.b16 %v884
        %v2350 = vunpack.c.l.b16 %v885
        %v2351 = vunpack.c.h.b16 %v885
        %v2352 = vunpack.c.l.b16 %v886
        %v2353 = vunpack.c.h.b16 %v886
        %v2354 = vunpack.c.l.b16 %v887
        %v2355 = vunpack.c.h.b16 %v887
        %v2356 = vunpack.c.l.b16 %v888
        %v2357 = vunpack.c.h.b16 %v888
        %v2358 = vunpack.c.l.b16 %v889
        %v2359 = vunpack.c.h.b16 %v889
        %v2360 = vunpack.c.l.b16 %v890
        %v2361 = vunpack.c.h.b16 %v890
        %v2362 = vunpack.c.l.b16 %v891
        %v2363 = vunpack.c.h.b16 %v891
        %v2364 = vunpack.c.l.b16 %v892
        %v2365 = vunpack.c.h.b16 %v892
        %v2366 = vunpack.c.l.b16 %v893
        %v2367 = vunpack.c.h.b16 %v893
        %v2368 = vunpack.c.l.b16 %v894
        %v2369 = vunpack.c.h.b16 %v894
        %v2370 = vunpack.c.l.b16 %v895
        %v2371 = vunpack.c.h.b16 %v895
        %v2372 = vunpack.c.l.b16 %v896
        %v2373 = vunpack.c.h.b16 %v896
        %v2374 = vunpack.c.l.b16 %v897
        %v2375 = vunpack.c.h.b16 %v897
        %v2376 = vunpack.c.l.b16 %v898
        %v2377 = vunpack.c.h.b16 %v898
        %v2378 = vunpack.c.l.b16 %v899
        %v2379 = vunpack.c.h.b16 %v899
        %v2380 = vunpack.c.l.b16 %v900
        %v2381 = vunpack.c.h.b16 %v900
        %v2382 = vunpack.c.l.b16 %v901
        %v2383 = vunpack.c.h.b16 %v901
        %v2384 = vunpack.c.l.b16 %v902
        %v2385 = vunpack.c.h.b16 %v902
        %v2386 = vunpack.c.l.b16 %v903
        %v2387 = vunpack.c.h.b16 %v903
        %v2388 = vunpack.c.l.b16 %v904
        %v2389 = vunpack.c.h.b16 %v904
        %v2390 = vunpack.c.l.b16 %v905
        %v2391 = vunpack.c.h.b16 %v905
        %v2392 = vunpack.c.l.b16 %v906
        %v2393 = vunpack.c.h.b16 %v906
        %v2394 = vunpack.c.l.b16 %v907
        %v2395 = vunpack.c.h.b16 %v907
        %v2396 = vunpack.c.l.b16 %v908
        %v2397 = vunpack.c.h.b16 %v908
        %v2398 = vunpack.c.l.b16 %v909
        %v2399 = vunpack.c.h.b16 %v909
        %v2400 = vunpack.c.l.b16 %v910
        %v2401 = vunpack.c.h.b16 %v910
        %v2402 = vunpack.c.l.b16 %v911
        %v2403 = vunpack.c.h.b16 %v911
        %v2404 = vunpack.c.l.b16 %v912
        %v2405 = vunpack.c.h.b16 %v912
        %v2406 = vunpack.c.l.b16 %v913
        %v2407 = vunpack.c.h.b16 %v913
        %v2408 = vunpack.c.l.b16 %v914
        %v2409 = vunpack.c.h.b16 %v914
        %v2410 = vunpack.c.l.b16 %v915
        %v2411 = vunpack.c.h.b16 %v915
        %v2412 = vunpack.c.l.b16 %v916
        %v2413 = vunpack.c.h.b16 %v916
        %v2414 = vunpack.c.l.b16 %v917
        %v2415 = vunpack.c.h.b16 %v917
        %v2416 = vunpack.c.l.b16 %v918
        %v2417 = vunpack.c.h.b16 %v918
        %v2418 = vunpack.c.l.b16 %v919
        %v2419 = vunpack.c.h.b16 %v919
        %v2420 = vunpack.c.l.b16 %v920
        %v2421 = vunpack.c.h.b16 %v920
        %v2422 = vunpack.c.l.b16 %v921
        %v2423 = vunpack.c.h.b16 %v921
        %v2424 = vunpack.c.l.b16 %v922
        %v2425 = vunpack.c.h.b16 %v922
        %v2426 = vunpack.c.l.b16 %v923
        %v2427 = vunpack.c.h.b16 %v923
        %v2428 = vunpack.c.l.b16 %v924
        %v2429 = vunpack.c.h.b16 %v924
        %v2430 = vunpack.c.l.b16 %v925
        %v2431 = vunpack.c.h.b16 %v925
        %v2432 = vunpack.c.l.b16 %v926
        %v2433 = vunpack.c.h.b16 %v926
        %v2434 = vunpack.c.l.b16 %v927
        %v2435 = vunpack.c.h.b16 %v927
        %v2436 = vunpack.c.l.b16 %v928
        %v2437 = vunpack.c.h.b16 %v928
        %v2438 = vunpack.c.l.b16 %v929
        %v2439 = vunpack.c.h.b16 %v929
        %v2440 = vunpack.c.l.b16 %v930
        %v2441 = vunpack.c.h.b16 %v930
        %v2442 = vunpack.c.l.b16 %v931
        %v2443 = vunpack.c.h.b16 %v931
        %v2444 = vunpack.c.l.b16 %v932
        %v2445 = vunpack.c.h.b16 %v932
        %v2446 = vunpack.c.l.b16 %v933
        %v2447 = vunpack.c.h.b16 %v933
        %v2448 = vunpack.c.l.b16 %v934
        %v2449 = vunpack.c.h.b16 %v934
        %v2450 = vunpack.c.l.b16 %v935
        %v2451 = vunpack.c.h.b16 %v935
        %v2452 = vunpack.c.l.b16 %v936
        %v2453 = vunpack.c.h.b16 %v936
        %v2454 = vunpack.c.l.b16 %v937
        %v2455 = vunpack.c.h.b16 %v937
        %v2456 = vunpack.c.l.b16 %v938
        %v2457 = vunpack.c.h.b16 %v938
        %v2458 = vunpack.c.l.b16 %v939
        %v2459 = vunpack.c.h.b16 %v939
        %v2460 = vunpack.c.l.b16 %v940
        %v2461 = vunpack.c.h.b16 %v940
        %v2462 = vunpack.c.l.b16 %v941
        %v2463 = vunpack.c.h.b16 %v941
        %v2464 = vunpack.c.l.b16 %v942
        %v2465 = vunpack.c.h.b16 %v942
        %v2466 = vunpack.c.l.b16 %v943
        %v2467 = vunpack.c.h.b16 %v943
        %v2468 = vunpack.c.l.b16 %v944
        %v2469 = vunpack.c.h.b16 %v944
        %v2470 = vunpack.c.l.b16 %v945
        %v2471 = vunpack.c.h.b16 %v945
        %v2472 = vunpack.c.l.b16 %v946
        %v2473 = vunpack.c.h.b16 %v946
        %v2474 = vunpack.c.l.b16 %v947
        %v2475 = vunpack.c.h.b16 %v947
        %v2476 = vunpack.c.l.b16 %v948
        %v2477 = vunpack.c.h.b16 %v948
        %v2478 = vunpack.c.l.b16 %v949
        %v2479 = vunpack.c.h.b16 %v949
        %v2480 = vunpack.c.l.b16 %v950
        %v2481 = vunpack.c.h.b16 %v950
        %v2482 = vunpack.c.l.b16 %v951
        %v2483 = vunpack.c.h.b16 %v951
        %v2484 = vunpack.c.l.b16 %v952
        %v2485 = vunpack.c.h.b16 %v952
        %v2486 = vunpack.c.l.b16 %v953
        %v2487 = vunpack.c.h.b16 %v953
        %v2488 = vunpack.c.l.b16 %v954
        %v2489 = vunpack.c.h.b16 %v954
        %v2490 = vunpack.c.l.b16 %v955
        %v2491 = vunpack.c.h.b16 %v955
        %v2492 = vunpack.c.l.b16 %v956
        %v2493 = vunpack.c.h.b16 %v956
        %v2494 = vunpack.c.l.b16 %v957
        %v2495 = vunpack.c.h.b16 %v957
        %v2496 = vunpack.c.l.b16 %v958
        %v2497 = vunpack.c.h.b16 %v958
        %v2498 = vunpack.c.l.b16 %v959
        %v2499 = vunpack.c.h.b16 %v959
        %v2500 = vunpack.c.l.b16 %v960
        %v2501 = vunpack.c.h.b16 %v960
        %v2502 = vunpack.c.l.b16 %v961
        %v2503 = vunpack.c.h.b16 %v961
        %v2504 = vunpack.c.l.b16 %v962
        %v2505 = vunpack.c.h.b16 %v962
        %v2506 = vunpack.c.l.b16 %v963
        %v2507 = vunpack.c.h.b16 %v963
        %v2508 = vunpack.c.l.b16 %v964
        %v2509 = vunpack.c.h.b16 %v964
        %v2510 = vunpack.c.l.b16 %v965
        %v2511 = vunpack.c.h.b16 %v965
        %v2512 = vunpack.c.l.b16 %v966
        %v2513 = vunpack.c.h.b16 %v966
        %v2514 = vunpack.c.l.b16 %v967
        %v2515 = vunpack.c.h.b16 %v967
        %v2516 = vunpack.c.l.b16 %v968
        %v2517 = vunpack.c.h.b16 %v968
        %v2518 = vunpack.c.l.b16 %v969
        %v2519 = vunpack.c.h.b16 %v969
        %v2520 = vunpack.c.l.b16 %v970
        %v2521 = vunpack.c.h.b16 %v970
        %v2522 = vunpack.c.l.b16 %v971
        %v2523 = vunpack.c.h.b16 %v971
        %v2524 = vunpack.c.l.b16 %v972
        %v2525 = vunpack.c.h.b16 %v972
        %v2526 = vunpack.c.l.b16 %v973
        %v2527 = vunpack.c.h.b16 %v973
        %v2528 = vunpack.c.l.b16 %v974
        %v2529 = vunpack.c.h.b16 %v974
        %v2530 = vunpack.c.l.b16 %v975
        %v2531 = vunpack.c.h.b16 %v975
        %v2532 = vunpack.c.l.b16 %v976
        %v2533 = vunpack.c.h.b16 %v976
        %v2534 = vunpack.c.l.b16 %v977
        %v2535 = vunpack.c.h.b16 %v977
        %v2536 = vunpack.c.l.b16 %v978
        %v2537 = vunpack.c.h.b16 %v978
        %v2538 = vunpack.c.l.b16 %v979
        %v2539 = vunpack.c.h.b16 %v979
        %v2540 = vunpack.c.l.b16 %v980
        %v2541 = vunpack.c.h.b16 %v980
        %v2542 = vunpack.c.l.b16 %v981
        %v2543 = vunpack.c.h.b16 %v981
        %v2544 = vunpack.c.l.b16 %v982
        %v2545 = vunpack.c.h.b16 %v982
        %v2546 = vunpack.c.l.b16 %v983
        %v2547 = vunpack.c.h.b16 %v983
        %v2548 = vunpack.c.l.b16 %v984
        %v2549 = vunpack.c.h.b16 %v984
        %v2550 = vunpack.c.l.b16 %v985
        %v2551 = vunpack.c.h.b16 %v985
        %v2552 = vunpack.c.l.b16 %v986
        %v2553 = vunpack.c.h.b16 %v986
        %v2554 = vunpack.c.l.b16 %v987
        %v2555 = vunpack.c.h.b16 %v987
        %v2556 = vunpack.c.l.b16 %v988
        %v2557 = vunpack.c.h.b16 %v988
        %v2558 = vunpack.c.l.b16 %v989
        %v2559 = vunpack.c.h.b16 %v989
        %v2560 = vunpack.c.l.b16 %v990
        %v2561 = vunpack.c.h.b16 %v990
        %v2562 = vunpack.c.l.b16 %v991
        %v2563 = vunpack.c.h.b16 %v991
        %v2564 = vunpack.c.l.b16 %v992
        %v2565 = vunpack.c.h.b16 %v992
        %v2566 = vunpack.c.l.b16 %v993
        %v2567 = vunpack.c.h.b16 %v993
        %v2568 = vunpack.c.l.b16 %v994
        %v2569 = vunpack.c.h.b16 %v994
        %v2570 = vunpack.c.l.b16 %v995
        %v2571 = vunpack.c.h.b16 %v995
        %v2572 = vunpack.c.l.b16 %v996
        %v2573 = vunpack.c.h.b16 %v996
        %v2574 = vunpack.c.l.b16 %v997
        %v2575 = vunpack.c.h.b16 %v997
        %v2576 = vunpack.c.l.b16 %v998
        %v2577 = vunpack.c.h.b16 %v998
        %v2578 = vunpack.c.l.b16 %v999
        %v2579 = vunpack.c.h.b16 %v999
        %v2580 = vunpack.c.l.b16 %v1000
        %v2581 = vunpack.c.h.b16 %v1000
        %v2582 = vunpack.c.l.b16 %v1001
        %v2583 = vunpack.c.h.b16 %v1001
        %v2584 = vunpack.c.l.b16 %v1002
        %v2585 = vunpack.c.h.b16 %v1002
        %v2586 = vunpack.c.l.b16 %v1003
        %v2587 = vunpack.c.h.b16 %v1003
        %v2588 = vunpack.c.l.b16 %v1004
        %v2589 = vunpack.c.h.b16 %v1004
        %v2590 = vunpack.c.l.b16 %v1005
        %v2591 = vunpack.c.h.b16 %v1005
        %v2592 = vunpack.c.l.b16 %v1006
        %v2593 = vunpack.c.h.b16 %v1006
        %v2594 = vunpack.c.l.b16 %v1007
        %v2595 = vunpack.c.h.b16 %v1007
        %v2596 = vunpack.c.l.b16 %v1008
        %v2597 = vunpack.c.h.b16 %v1008
        %v2598 = vunpack.c.l.b16 %v1009
        %v2599 = vunpack.c.h.b16 %v1009
        %v2600 = vunpack.c.l.b16 %v1010
        %v2601 = vunpack.c.h.b16 %v1010
        %v2602 = vunpack.c.l.b16 %v1011
        %v2603 = vunpack.c.h.b16 %v1011
        %v2604 = vunpack.c.l.b16 %v1012
        %v2605 = vunpack.c.h.b16 %v1012
        %v2606 = vunpack.c.l.b16 %v1013
        %v2607 = vunpack.c.h.b16 %v1013
        %v2608 = vunpack.c.l.b16 %v1014
        %v2609 = vunpack.c.h.b16 %v1014
        %v2610 = vunpack.c.l.b16 %v1015
        %v2611 = vunpack.c.h.b16 %v1015
        %v2612 = vunpack.c.l.b16 %v1016
        %v2613 = vunpack.c.h.b16 %v1016
        %v2614 = vunpack.c.l.b16 %v1017
        %v2615 = vunpack.c.h.b16 %v1017
        %v2616 = vunpack.c.l.b16 %v1018
        %v2617 = vunpack.c.h.b16 %v1018
        %v2618 = vunpack.c.l.b16 %v1019
        %v2619 = vunpack.c.h.b16 %v1019
        %v2620 = vunpack.c.l.b16 %v1020
        %v2621 = vunpack.c.h.b16 %v1020
        %v2622 = vunpack.c.l.b16 %v1021
        %v2623 = vunpack.c.h.b16 %v1021
        %v2624 = vunpack.c.l.b16 %v1022
        %v2625 = vunpack.c.h.b16 %v1022
        %v2626 = vunpack.c.l.b16 %v1023
        %v2627 = vunpack.c.h.b16 %v1023
        %v2628 = vunpack.c.l.b16 %v1024
        %v2629 = vunpack.c.h.b16 %v1024
        %v2630 = vunpack.c.l.b16 %v1025
        %v2631 = vunpack.c.h.b16 %v1025
        %v2632 = vunpack.c.l.b16 %v1026
        %v2633 = vunpack.c.h.b16 %v1026
        %v2634 = vunpack.c.l.b16 %v1027
        %v2635 = vunpack.c.h.b16 %v1027
        %v2636 = vunpack.c.l.b16 %v1028
        %v2637 = vunpack.c.h.b16 %v1028
        %v2638 = vunpack.c.l.b16 %v1029
        %v2639 = vunpack.c.h.b16 %v1029
        %v2640 = vunpack.c.l.b16 %v1030
        %v2641 = vunpack.c.h.b16 %v1030
        %v2642 = vunpack.c.l.b16 %v1031
        %v2643 = vunpack.c.h.b16 %v1031
        %v2644 = vunpack.c.l.b16 %v1032
        %v2645 = vunpack.c.h.b16 %v1032
        %v2646 = vunpack.c.l.b16 %v1033
        %v2647 = vunpack.c.h.b16 %v1033
        %v2648 = vunpack.c.l.b16 %v1034
        %v2649 = vunpack.c.h.b16 %v1034
        %v2650 = vunpack.c.l.b16 %v1035
        %v2651 = vunpack.c.h.b16 %v1035
        %v2652 = vunpack.c.l.b16 %v1036
        %v2653 = vunpack.c.h.b16 %v1036
        %v2654 = vunpack.c.l.b16 %v1037
        %v2655 = vunpack.c.h.b16 %v1037
        %v2656 = vunpack.c.l.b16 %v1038
        %v2657 = vunpack.c.h.b16 %v1038
        %v2658 = vunpack.c.l.b16 %v1039
        %v2659 = vunpack.c.h.b16 %v1039
        %v2660 = vunpack.c.l.b16 %v1040
        %v2661 = vunpack.c.h.b16 %v1040
        %v2662 = vunpack.c.l.b16 %v1041
        %v2663 = vunpack.c.h.b16 %v1041
        %v2664 = vunpack.c.l.b16 %v1042
        %v2665 = vunpack.c.h.b16 %v1042
        %v2666 = vunpack.c.l.b16 %v1043
        %v2667 = vunpack.c.h.b16 %v1043
        %v2668 = vunpack.c.l.b16 %v1044
        %v2669 = vunpack.c.h.b16 %v1044
        %v2670 = vunpack.c.l.b16 %v1045
        %v2671 = vunpack.c.h.b16 %v1045
        %v2672 = vunpack.c.l.b16 %v1046
        %v2673 = vunpack.c.h.b16 %v1046
        %v2674 = vunpack.c.l.b16 %v1047
        %v2675 = vunpack.c.h.b16 %v1047
        %v2676 = vunpack.c.l.b16 %v1048
        %v2677 = vunpack.c.h.b16 %v1048
        %v2678 = vunpack.c.l.b16 %v1049
        %v2679 = vunpack.c.h.b16 %v1049
        %v2680 = vunpack.c.l.b16 %v1050
        %v2681 = vunpack.c.h.b16 %v1050
        %v2682 = vunpack.c.l.b16 %v1051
        %v2683 = vunpack.c.h.b16 %v1051
        %v2684 = vunpack.c.l.b16 %v1052
        %v2685 = vunpack.c.h.b16 %v1052
        %v2686 = vunpack.c.l.b16 %v1053
        %v2687 = vunpack.c.h.b16 %v1053
        %v2688 = vunpack.c.l.b16 %v1054
        %v2689 = vunpack.c.h.b16 %v1054
        %v2690 = vunpack.c.l.b16 %v1055
        %v2691 = vunpack.c.h.b16 %v1055
        %v2692 = vunpack.c.l.b16 %v1056
        %v2693 = vunpack.c.h.b16 %v1056
        %v2694 = vunpack.c.l.b16 %v1057
        %v2695 = vunpack.c.h.b16 %v1057
        %v2696 = vunpack.c.l.b16 %v1058
        %v2697 = vunpack.c.h.b16 %v1058
        %v2698 = vunpack.c.l.b16 %v1059
        %v2699 = vunpack.c.h.b16 %v1059
        %v2700 = vunpack.c.l.b16 %v1060
        %v2701 = vunpack.c.h.b16 %v1060
        %v2702 = vunpack.c.l.b16 %v1061
        %v2703 = vunpack.c.h.b16 %v1061
        %v2704 = vunpack.c.l.b16 %v1062
        %v2705 = vunpack.c.h.b16 %v1062
        %v2706 = vunpack.c.l.b16 %v1063
        %v2707 = vunpack.c.h.b16 %v1063
        %v2708 = vunpack.c.l.b16 %v1064
        %v2709 = vunpack.c.h.b16 %v1064
        %v2710 = vunpack.c.l.b16 %v1065
        %v2711 = vunpack.c.h.b16 %v1065
        %v2712 = vunpack.c.l.b16 %v1066
        %v2713 = vunpack.c.h.b16 %v1066
        %v2714 = vunpack.c.l.b16 %v1067
        %v2715 = vunpack.c.h.b16 %v1067
        %v2716 = vunpack.c.l.b16 %v1068
        %v2717 = vunpack.c.h.b16 %v1068
        %v2718 = vunpack.c.l.b16 %v1069
        %v2719 = vunpack.c.h.b16 %v1069
        %v2720 = vunpack.c.l.b16 %v1070
        %v2721 = vunpack.c.h.b16 %v1070
        %v2722 = vunpack.c.l.b16 %v1071
        %v2723 = vunpack.c.h.b16 %v1071
        %v2724 = vunpack.c.l.b16 %v1072
        %v2725 = vunpack.c.h.b16 %v1072
        %v2726 = vunpack.c.l.b16 %v1073
        %v2727 = vunpack.c.h.b16 %v1073
        %v2728 = vunpack.c.l.b16 %v1074
        %v2729 = vunpack.c.h.b16 %v1074
        %v2730 = vunpack.c.l.b16 %v1075
        %v2731 = vunpack.c.h.b16 %v1075
        %v2732 = vunpack.c.l.b16 %v1076
        %v2733 = vunpack.c.h.b16 %v1076
        %v2734 = vunpack.c.l.b16 %v1077
        %v2735 = vunpack.c.h.b16 %v1077
        %v2736 = vunpack.c.l.b16 %v1078
        %v2737 = vunpack.c.h.b16 %v1078
        %v2738 = vunpack.c.l.b16 %v1079
        %v2739 = vunpack.c.h.b16 %v1079
        %v2740 = vunpack.c.l.b16 %v1080
        %v2741 = vunpack.c.h.b16 %v1080
        %v2742 = vunpack.c.l.b16 %v1081
        %v2743 = vunpack.c.h.b16 %v1081
        %v2744 = vunpack.c.l.b16 %v1082
        %v2745 = vunpack.c.h.b16 %v1082
        %v2746 = vunpack.c.l.b16 %v1083
        %v2747 = vunpack.c.h.b16 %v1083
        %v2748 = vunpack.c.l.b16 %v1084
        %v2749 = vunpack.c.h.b16 %v1084
        %v2750 = vunpack.c.l.b16 %v1085
        %v2751 = vunpack.c.h.b16 %v1085
        %v2752 = vunpack.c.l.b16 %v1086
        %v2753 = vunpack.c.h.b16 %v1086
        %v2754 = vunpack.c.l.b16 %v1087
        %v2755 = vunpack.c.h.b16 %v1087
        %v2756 = vunpack.c.l.b16 %v1088
        %v2757 = vunpack.c.h.b16 %v1088
        %v2758 = vunpack.c.l.b16 %v1089
        %v2759 = vunpack.c.h.b16 %v1089
        %v2760 = vunpack.c.l.b16 %v1090
        %v2761 = vunpack.c.h.b16 %v1090
        %v2762 = vunpack.c.l.b16 %v1091
        %v2763 = vunpack.c.h.b16 %v1091
        %v2764 = vunpack.c.l.b16 %v1092
        %v2765 = vunpack.c.h.b16 %v1092
        %v2766 = vunpack.c.l.b16 %v1093
        %v2767 = vunpack.c.h.b16 %v1093
        %v2768 = vunpack.c.l.b16 %v1094
        %v2769 = vunpack.c.h.b16 %v1094
        %v2770 = vunpack.c.l.b16 %v1095
        %v2771 = vunpack.c.h.b16 %v1095
        %v2772 = vunpack.c.l.b16 %v1096
        %v2773 = vunpack.c.h.b16 %v1096
        %v2774 = vunpack.c.l.b16 %v1097
        %v2775 = vunpack.c.h.b16 %v1097
        %v2776 = vunpack.c.l.b16 %v1098
        %v2777 = vunpack.c.h.b16 %v1098
        %v2778 = vunpack.c.l.b16 %v1099
        %v2779 = vunpack.c.h.b16 %v1099
        %v2780 = vunpack.c.l.b16 %v1100
        %v2781 = vunpack.c.h.b16 %v1100
        %v2782 = vunpack.c.l.b16 %v1101
        %v2783 = vunpack.c.h.b16 %v1101
        %v2784 = vunpack.c.l.b16 %v1102
        %v2785 = vunpack.c.h.b16 %v1102
        %v2786 = vunpack.c.l.b16 %v1103
        %v2787 = vunpack.c.h.b16 %v1103
        %v2788 = vunpack.c.l.b16 %v1104
        %v2789 = vunpack.c.h.b16 %v1104
        %v2790 = vunpack.c.l.b16 %v1105
        %v2791 = vunpack.c.h.b16 %v1105
        %v2792 = vunpack.c.l.b16 %v1106
        %v2793 = vunpack.c.h.b16 %v1106
        %v2794 = vunpack.c.l.b16 %v1107
        %v2795 = vunpack.c.h.b16 %v1107
        %v2796 = vunpack.c.l.b16 %v1108
        %v2797 = vunpack.c.h.b16 %v1108
        %v2798 = vunpack.c.l.b16 %v1109
        %v2799 = vunpack.c.h.b16 %v1109
        %v2800 = vunpack.c.l.b16 %v1110
        %v2801 = vunpack.c.h.b16 %v1110
        %v2802 = vunpack.c.l.b16 %v1111
        %v2803 = vunpack.c.h.b16 %v1111
        %v2804 = vunpack.c.l.b16 %v1112
        %v2805 = vunpack.c.h.b16 %v1112
        %v2806 = vunpack.c.l.b16 %v1113
        %v2807 = vunpack.c.h.b16 %v1113
        %v2808 = vunpack.c.l.b16 %v1114
        %v2809 = vunpack.c.h.b16 %v1114
        %v2810 = vunpack.c.l.b16 %v1115
        %v2811 = vunpack.c.h.b16 %v1115
        %v2812 = vunpack.c.l.b16 %v1116
        %v2813 = vunpack.c.h.b16 %v1116
        %v2814 = vunpack.c.l.b16 %v1117
        %v2815 = vunpack.c.h.b16 %v1117
        %v2816 = vunpack.c.l.b16 %v1118
        %v2817 = vunpack.c.h.b16 %v1118
        %v2818 = vunpack.c.l.b16 %v1119
        %v2819 = vunpack.c.h.b16 %v1119
        %v2820 = vunpack.c.l.b16 %v1120
        %v2821 = vunpack.c.h.b16 %v1120
        %v2822 = vunpack.c.l.b16 %v1121
        %v2823 = vunpack.c.h.b16 %v1121
        %v2824 = vunpack.c.l.b16 %v1122
        %v2825 = vunpack.c.h.b16 %v1122
        %v2826 = vunpack.c.l.b16 %v1123
        %v2827 = vunpack.c.h.b16 %v1123
        %v2828 = vunpack.c.l.b16 %v1124
        %v2829 = vunpack.c.h.b16 %v1124
        %v2830 = vunpack.c.l.b16 %v1125
        %v2831 = vunpack.c.h.b16 %v1125
        %v2832 = vunpack.c.l.b16 %v1126
        %v2833 = vunpack.c.h.b16 %v1126
        %v2834 = vunpack.c.l.b16 %v1127
        %v2835 = vunpack.c.h.b16 %v1127
        %v2836 = vunpack.c.l.b16 %v1128
        %v2837 = vunpack.c.h.b16 %v1128
        %v2838 = vunpack.c.l.b16 %v1129
        %v2839 = vunpack.c.h.b16 %v1129
        %v2840 = vunpack.c.l.b16 %v1130
        %v2841 = vunpack.c.h.b16 %v1130
        %v2842 = vunpack.c.l.b16 %v1131
        %v2843 = vunpack.c.h.b16 %v1131
        %v2844 = vunpack.c.l.b16 %v1132
        %v2845 = vunpack.c.h.b16 %v1132
        %v2846 = vunpack.c.l.b16 %v1133
        %v2847 = vunpack.c.h.b16 %v1133
        %v2848 = vunpack.c.l.b16 %v1134
        %v2849 = vunpack.c.h.b16 %v1134
        %v2850 = vunpack.c.l.b16 %v1135
        %v2851 = vunpack.c.h.b16 %v1135
        %v2852 = vunpack.c.l.b16 %v1136
        %v2853 = vunpack.c.h.b16 %v1136
        %v2854 = vunpack.c.l.b16 %v1137
        %v2855 = vunpack.c.h.b16 %v1137
        %v2856 = vunpack.c.l.b16 %v1138
        %v2857 = vunpack.c.h.b16 %v1138
        %v2858 = vunpack.c.l.b16 %v1139
        %v2859 = vunpack.c.h.b16 %v1139
        %v2860 = vunpack.c.l.b16 %v1140
        %v2861 = vunpack.c.h.b16 %v1140
        %v2862 = vunpack.c.l.b16 %v1141
        %v2863 = vunpack.c.h.b16 %v1141
        %v2864 = vunpack.c.l.b16 %v1142
        %v2865 = vunpack.c.h.b16 %v1142
        %v2866 = vunpack.c.l.b16 %v1143
        %v2867 = vunpack.c.h.b16 %v1143
        %v2868 = vunpack.c.l.b16 %v1144
        %v2869 = vunpack.c.h.b16 %v1144
        %v2870 = vunpack.c.l.b16 %v1145
        %v2871 = vunpack.c.h.b16 %v1145
        %v2872 = vunpack.c.l.b16 %v1146
        %v2873 = vunpack.c.h.b16 %v1146
        %v2874 = vunpack.c.l.b16 %v1147
        %v2875 = vunpack.c.h.b16 %v1147
        %v2876 = vunpack.c.l.b16 %v1148
        %v2877 = vunpack.c.h.b16 %v1148
        %v2878 = vunpack.c.l.b16 %v1149
        %v2879 = vunpack.c.h.b16 %v1149
        %v2880 = vunpack.c.l.b16 %v1150
        %v2881 = vunpack.c.h.b16 %v1150
        %v2882 = vunpack.c.l.b16 %v1151
        %v2883 = vunpack.c.h.b16 %v1151
        %v2884 = vunpack.c.l.b16 %v1152
        %v2885 = vunpack.c.h.b16 %v1152
        %v2886 = vunpack.c.l.b16 %v1153
        %v2887 = vunpack.c.h.b16 %v1153
        %v2888 = vunpack.c.l.b16 %v1154
        %v2889 = vunpack.c.h.b16 %v1154
        %v2890 = vunpack.c.l.b16 %v1155
        %v2891 = vunpack.c.h.b16 %v1155
        %v2892 = vunpack.c.l.b16 %v1156
        %v2893 = vunpack.c.h.b16 %v1156
        %v2894 = vunpack.c.l.b16 %v1157
        %v2895 = vunpack.c.h.b16 %v1157
        %v2896 = vunpack.c.l.b16 %v1158
        %v2897 = vunpack.c.h.b16 %v1158
        %v2898 = vunpack.c.l.b16 %v1159
        %v2899 = vunpack.c.h.b16 %v1159
        %v2900 = vunpack.c.l.b16 %v1160
        %v2901 = vunpack.c.h.b16 %v1160
        %v2902 = vunpack.c.l.b16 %v1161
        %v2903 = vunpack.c.h.b16 %v1161
        %v2904 = vunpack.c.l.b16 %v1162
        %v2905 = vunpack.c.h.b16 %v1162
        %v2906 = vunpack.c.l.b16 %v1163
        %v2907 = vunpack.c.h.b16 %v1163
        %v2908 = vunpack.c.l.b16 %v1164
        %v2909 = vunpack.c.h.b16 %v1164
        %v2910 = vunpack.c.l.b16 %v1165
        %v2911 = vunpack.c.h.b16 %v1165
        %v2912 = vunpack.c.l.b16 %v1166
        %v2913 = vunpack.c.h.b16 %v1166
        %v2914 = vunpack.c.l.b16 %v1167
        %v2915 = vunpack.c.h.b16 %v1167
        %v2916 = vunpack.c.l.b16 %v1168
        %v2917 = vunpack.c.h.b16 %v1168
        %v2918 = vunpack.c.l.b16 %v1169
        %v2919 = vunpack.c.h.b16 %v1169
        %v2920 = vunpack.c.l.b16 %v1170
        %v2921 = vunpack.c.h.b16 %v1170
        %v2922 = vunpack.c.l.b16 %v1171
        %v2923 = vunpack.c.h.b16 %v1171
        %v2924 = vunpack.c.l.b16 %v1172
        %v2925 = vunpack.c.h.b16 %v1172
        %v2926 = vunpack.c.l.b16 %v1173
        %v2927 = vunpack.c.h.b16 %v1173
        %v2928 = vunpack.c.l.b16 %v1174
        %v2929 = vunpack.c.h.b16 %v1174
        %v2930 = vunpack.c.l.b16 %v1175
        %v2931 = vunpack.c.h.b16 %v1175
        %v2932 = vunpack.c.l.b16 %v1176
        %v2933 = vunpack.c.h.b16 %v1176
        %v2934 = vunpack.c.l.b16 %v1177
        %v2935 = vunpack.c.h.b16 %v1177
        %v2936 = vunpack.c.l.b16 %v1178
        %v2937 = vunpack.c.h.b16 %v1178
        %v2938 = vunpack.c.l.b16 %v1179
        %v2939 = vunpack.c.h.b16 %v1179
        %v2940 = vunpack.c.l.b16 %v1180
        %v2941 = vunpack.c.h.b16 %v1180
        %v2942 = vunpack.c.l.b16 %v1181
        %v2943 = vunpack.c.h.b16 %v1181
        %v2944 = vunpack.c.l.b16 %v1182
        %v2945 = vunpack.c.h.b16 %v1182
        %v2946 = vunpack.c.l.b16 %v1183
        %v2947 = vunpack.c.h.b16 %v1183
        %v2948 = vunpack.c.l.b16 %v1184
        %v2949 = vunpack.c.h.b16 %v1184
        %v2950 = vunpack.c.l.b16 %v1185
        %v2951 = vunpack.c.h.b16 %v1185
        %v2952 = vunpack.c.l.b16 %v1186
        %v2953 = vunpack.c.h.b16 %v1186
        %v2954 = vunpack.c.l.b16 %v1187
        %v2955 = vunpack.c.h.b16 %v1187
        %v2956 = vunpack.c.l.b16 %v1188
        %v2957 = vunpack.c.h.b16 %v1188
        %v2958 = vunpack.c.l.b16 %v1189
        %v2959 = vunpack.c.h.b16 %v1189
        %v2960 = vunpack.c.l.b16 %v1190
        %v2961 = vunpack.c.h.b16 %v1190
        %v2962 = vunpack.c.l.b16 %v1191
        %v2963 = vunpack.c.h.b16 %v1191
        %v2964 = vunpack.c.l.b16 %v1192
        %v2965 = vunpack.c.h.b16 %v1192
        %v2966 = vunpack.c.l.b16 %v1193
        %v2967 = vunpack.c.h.b16 %v1193
        %v2968 = vunpack.c.l.b16 %v1194
        %v2969 = vunpack.c.h.b16 %v1194
        %v2970 = vunpack.c.l.b16 %v1195
        %v2971 = vunpack.c.h.b16 %v1195
        %v2972 = vunpack.c.l.b16 %v1196
        %v2973 = vunpack.c.h.b16 %v1196
        %v2974 = vunpack.c.l.b16 %v1197
        %v2975 = vunpack.c.h.b16 %v1197
        %v2976 = vunpack.c.l.b16 %v1198
        %v2977 = vunpack.c.h.b16 %v1198
        %v2978 = vunpack.c.l.b16 %v1199
        %v2979 = vunpack.c.h.b16 %v1199
        %v2980 = vunpack.c.l.b16 %v1200
        %v2981 = vunpack.c.h.b16 %v1200
        %v2982 = vunpack.c.l.b16 %v1201
        %v2983 = vunpack.c.h.b16 %v1201
        %v2984 = vunpack.c.l.b16 %v1202
        %v2985 = vunpack.c.h.b16 %v1202
        %v2986 = vunpack.c.l.b16 %v1203
        %v2987 = vunpack.c.h.b16 %v1203
        %v2988 = vunpack.c.l.b16 %v1204
        %v2989 = vunpack.c.h.b16 %v1204
        %v2990 = vunpack.c.l.b16 %v1205
        %v2991 = vunpack.c.h.b16 %v1205
        %v2992 = vunpack.c.l.b16 %v1206
        %v2993 = vunpack.c.h.b16 %v1206
        %v2994 = vunpack.c.l.b16 %v1207
        %v2995 = vunpack.c.h.b16 %v1207
        %v2996 = vunpack.c.l.b16 %v1208
        %v2997 = vunpack.c.h.b16 %v1208
        %v2998 = vunpack.c.l.b16 %v1209
        %v2999 = vunpack.c.h.b16 %v1209
        %v3000 = vunpack.c.l.b16 %v1210
        %v3001 = vunpack.c.h.b16 %v1210
        %v3002 = vunpack.c.l.b16 %v1211
        %v3003 = vunpack.c.h.b16 %v1211
        %v3004 = vunpack.c.l.b16 %v1212
        %v3005 = vunpack.c.h.b16 %v1212
        %v3006 = vunpack.c.l.b16 %v1213
        %v3007 = vunpack.c.h.b16 %v1213
        %v3008 = vunpack.c.l.b16 %v1214
        %v3009 = vunpack.c.h.b16 %v1214
        %v3010 = vunpack.c.l.b16 %v1215
        %v3011 = vunpack.c.h.b16 %v1215
        %v3012 = vunpack.c.l.b16 %v1216
        %v3013 = vunpack.c.h.b16 %v1216
        %v3014 = vunpack.c.l.b16 %v1217
        %v3015 = vunpack.c.h.b16 %v1217
        %v3016 = vunpack.c.l.b16 %v1218
        %v3017 = vunpack.c.h.b16 %v1218
        %v3018 = vunpack.c.l.b16 %v1219
        %v3019 = vunpack.c.h.b16 %v1219
        %v3020 = vunpack.c.l.b16 %v1220
        %v3021 = vunpack.c.h.b16 %v1220
        %v3022 = vunpack.c.l.b16 %v1221
        %v3023 = vunpack.c.h.b16 %v1221
        %v3024 = vunpack.c.l.b16 %v1222
        %v3025 = vunpack.c.h.b16 %v1222
        %v3026 = vunpack.c.l.b16 %v1223
        %v3027 = vunpack.c.h.b16 %v1223
        %v3028 = vunpack.c.l.b16 %v1224
        %v3029 = vunpack.c.h.b16 %v1224
        %v3030 = vunpack.c.l.b16 %v1225
        %v3031 = vunpack.c.h.b16 %v1225
        %v3032 = vunpack.c.l.b16 %v1226
        %v3033 = vunpack.c.h.b16 %v1226
        %v3034 = vunpack.c.l.b16 %v1227
        %v3035 = vunpack.c.h.b16 %v1227
        %v3036 = vunpack.c.l.b16 %v1228
        %v3037 = vunpack.c.h.b16 %v1228
        %v3038 = vunpack.c.l.b16 %v1229
        %v3039 = vunpack.c.h.b16 %v1229
        %v3040 = vunpack.c.l.b16 %v1230
        %v3041 = vunpack.c.h.b16 %v1230
        %v3042 = vunpack.c.l.b16 %v1231
        %v3043 = vunpack.c.h.b16 %v1231
        %v3044 = vunpack.c.l.b16 %v1232
        %v3045 = vunpack.c.h.b16 %v1232
        %v3046 = vunpack.c.l.b16 %v1233
        %v3047 = vunpack.c.h.b16 %v1233
        %v3048 = vunpack.c.l.b16 %v1234
        %v3049 = vunpack.c.h.b16 %v1234
        %v3050 = vunpack.c.l.b16 %v1235
        %v3051 = vunpack.c.h.b16 %v1235
        %v3052 = vunpack.c.l.b16 %v1236
        %v3053 = vunpack.c.h.b16 %v1236
        %v3054 = vunpack.c.l.b16 %v1237
        %v3055 = vunpack.c.h.b16 %v1237
        %v3056 = vunpack.c.l.b16 %v1238
        %v3057 = vunpack.c.h.b16 %v1238
        %v3058 = vunpack.c.l.b16 %v1239
        %v3059 = vunpack.c.h.b16 %v1239
        %v3060 = vunpack.c.l.b16 %v1240
        %v3061 = vunpack.c.h.b16 %v1240
        %v3062 = vunpack.c.l.b16 %v1241
        %v3063 = vunpack.c.h.b16 %v1241
        %v3064 = vunpack.c.l.b16 %v1242
        %v3065 = vunpack.c.h.b16 %v1242
        %v3066 = vunpack.c.l.b16 %v1243
        %v3067 = vunpack.c.h.b16 %v1243
        %v3068 = vunpack.c.l.b16 %v1244
        %v3069 = vunpack.c.h.b16 %v1244
        %v3070 = vunpack.c.l.b16 %v1245
        %v3071 = vunpack.c.h.b16 %v1245
        %v3072 = vunpack.c.l.b16 %v1246
        %v3073 = vunpack.c.h.b16 %v1246
        %v3074 = vunpack.c.l.b16 %v1247
        %v3075 = vunpack.c.h.b16 %v1247
        %v3076 = vunpack.c.l.b16 %v1248
        %v3077 = vunpack.c.h.b16 %v1248
        %v3078 = vunpack.c.l.b16 %v1249
        %v3079 = vunpack.c.h.b16 %v1249
        %v3080 = vunpack.c.l.b16 %v1250
        %v3081 = vunpack.c.h.b16 %v1250
        %v3082 = vunpack.c.l.b16 %v1251
        %v3083 = vunpack.c.h.b16 %v1251
        %v3084 = vunpack.c.l.b16 %v1252
        %v3085 = vunpack.c.h.b16 %v1252
        %v3086 = vunpack.c.l.b16 %v1253
        %v3087 = vunpack.c.h.b16 %v1253
        %v3088 = vunpack.c.l.b16 %v1254
        %v3089 = vunpack.c.h.b16 %v1254
        %v3090 = vunpack.c.l.b16 %v1255
        %v3091 = vunpack.c.h.b16 %v1255
        %v3092 = vunpack.c.l.b16 %v1256
        %v3093 = vunpack.c.h.b16 %v1256
        %v3094 = vunpack.c.l.b16 %v1257
        %v3095 = vunpack.c.h.b16 %v1257
        %v3096 = vunpack.c.l.b16 %v1258
        %v3097 = vunpack.c.h.b16 %v1258
        %v3098 = vunpack.c.l.b16 %v1259
        %v3099 = vunpack.c.h.b16 %v1259
        %v3100 = vunpack.c.l.b16 %v1260
        %v3101 = vunpack.c.h.b16 %v1260
        %v3102 = vunpack.c.l.b16 %v1261
        %v3103 = vunpack.c.h.b16 %v1261
        %v3104 = vunpack.c.l.b16 %v1262
        %v3105 = vunpack.c.h.b16 %v1262
        %v3106 = vunpack.c.l.b16 %v1263
        %v3107 = vunpack.c.h.b16 %v1263
        %v3108 = vunpack.c.l.b16 %v1264
        %v3109 = vunpack.c.h.b16 %v1264
        %v3110 = vunpack.c.l.b16 %v1265
        %v3111 = vunpack.c.h.b16 %v1265
        %v3112 = vunpack.c.l.b16 %v1266
        %v3113 = vunpack.c.h.b16 %v1266
        %v3114 = vunpack.c.l.b16 %v1267
        %v3115 = vunpack.c.h.b16 %v1267
        %v3116 = vunpack.c.l.b16 %v1268
        %v3117 = vunpack.c.h.b16 %v1268
        %v3118 = vunpack.c.l.b16 %v1269
        %v3119 = vunpack.c.h.b16 %v1269
        %v3120 = vunpack.c.l.b16 %v1270
        %v3121 = vunpack.c.h.b16 %v1270
        %v3122 = vunpack.c.l.b16 %v1271
        %v3123 = vunpack.c.h.b16 %v1271
        %v3124 = vunpack.c.l.b16 %v1272
        %v3125 = vunpack.c.h.b16 %v1272
        %v3126 = vunpack.c.l.b16 %v1273
        %v3127 = vunpack.c.h.b16 %v1273
        %v3128 = vunpack.c.l.b16 %v1274
        %v3129 = vunpack.c.h.b16 %v1274
        %v3130 = vunpack.c.l.b16 %v1275
        %v3131 = vunpack.c.h.b16 %v1275
        %v3132 = vunpack.c.l.b16 %v1276
        %v3133 = vunpack.c.h.b16 %v1276
        %v3134 = vunpack.c.l.b16 %v1277
        %v3135 = vunpack.c.h.b16 %v1277
        %v3136 = vunpack.c.l.b16 %v1278
        %v3137 = vunpack.c.h.b16 %v1278
        %v3138 = vunpack.c.l.b16 %v1279
        %v3139 = vunpack.c.h.b16 %v1279
        %v3140 = vunpack.c.l.b16 %v1280
        %v3141 = vunpack.c.h.b16 %v1280
        %v3142 = vunpack.c.l.b16 %v1281
        %v3143 = vunpack.c.h.b16 %v1281
        %v3144 = vunpack.c.l.b16 %v1282
        %v3145 = vunpack.c.h.b16 %v1282
        %v3146 = vunpack.c.l.b16 %v1283
        %v3147 = vunpack.c.h.b16 %v1283
        %v3148 = vunpack.c.l.b16 %v1284
        %v3149 = vunpack.c.h.b16 %v1284
        %v3150 = vunpack.c.l.b16 %v1285
        %v3151 = vunpack.c.h.b16 %v1285
        %v3152 = vunpack.c.l.b16 %v1286
        %v3153 = vunpack.c.h.b16 %v1286
        %v3154 = vunpack.c.l.b16 %v1287
        %v3155 = vunpack.c.h.b16 %v1287
        %v3156 = vunpack.c.l.b16 %v1288
        %v3157 = vunpack.c.h.b16 %v1288
        %v3158 = vunpack.c.l.b16 %v1289
        %v3159 = vunpack.c.h.b16 %v1289
        %v3160 = vunpack.c.l.b16 %v1290
        %v3161 = vunpack.c.h.b16 %v1290
        %v3162 = vunpack.c.l.b16 %v1291
        %v3163 = vunpack.c.h.b16 %v1291
        %v3164 = vunpack.c.l.b16 %v1292
        %v3165 = vunpack.c.h.b16 %v1292
        %v3166 = vunpack.c.l.b16 %v1293
        %v3167 = vunpack.c.h.b16 %v1293
        %v3168 = vunpack.c.l.b16 %v1294
        %v3169 = vunpack.c.h.b16 %v1294
        %v3170 = vunpack.c.l.b16 %v1295
        %v3171 = vunpack.c.h.b16 %v1295
        %v3172 = vunpack.c.l.b16 %v1296
        %v3173 = vunpack.c.h.b16 %v1296
        %v3174 = vunpack.c.l.b16 %v1297
        %v3175 = vunpack.c.h.b16 %v1297
        %v3176 = vunpack.c.l.b16 %v1298
        %v3177 = vunpack.c.h.b16 %v1298
        %v3178 = vunpack.c.l.b16 %v1299
        %v3179 = vunpack.c.h.b16 %v1299
        %v3180 = vunpack.c.l.b16 %v1300
        %v3181 = vunpack.c.h.b16 %v1300
        %v3182 = vunpack.c.l.b16 %v1301
        %v3183 = vunpack.c.h.b16 %v1301
        %v3184 = vunpack.c.l.b16 %v1302
        %v3185 = vunpack.c.h.b16 %v1302
        %v3186 = vunpack.c.l.b16 %v1303
        %v3187 = vunpack.c.h.b16 %v1303
        %v3188 = vpack.c.b16 %v2004, %v1988
        %v3189 = vpack.c.b16 %v2005, %v1989
        %v3190 = vpack.c.b16 %v2006, %v1990
        %v3191 = vpack.c.b16 %v2007, %v1991
        %v3192 = vpack.c.b16 %v2008, %v1992
        %v3193 = vpack.c.b16 %v2009, %v1993
        %v3194 = vpack.c.b16 %v2010, %v1994
        %v3195 = vpack.c.b16 %v2011, %v1995
        %v3196 = vpack.c.b16 %v2012, %v1996
        %v3197 = vpack.c.b16 %v2013, %v1997
        %v3198 = vpack.c.b16 %v2014, %v1998
        %v3199 = vpack.c.b16 %v2015, %v1999
        %v3200 = vpack.c.b16 %v2016, %v2000
        %v3201 = vpack.c.b16 %v2017, %v2001
        %v3202 = vpack.c.b16 %v2018, %v2002
        %v3203 = vpack.c.b16 %v2019, %v2003
        %v3204 = vpack.c.b16 %v2036, %v2020
        %v3205 = vpack.c.b16 %v2037, %v2021
        %v3206 = vpack.c.b16 %v2038, %v2022
        %v3207 = vpack.c.b16 %v2039, %v2023
        %v3208 = vpack.c.b16 %v2040, %v2024
        %v3209 = vpack.c.b16 %v2041, %v2025
        %v3210 = vpack.c.b16 %v2042, %v2026
        %v3211 = vpack.c.b16 %v2043, %v2027
        %v3212 = vpack.c.b16 %v2044, %v2028
        %v3213 = vpack.c.b16 %v2045, %v2029
        %v3214 = vpack.c.b16 %v2046, %v2030
        %v3215 = vpack.c.b16 %v2047, %v2031
        %v3216 = vpack.c.b16 %v2048, %v2032
        %v3217 = vpack.c.b16 %v2049, %v2033
        %v3218 = vpack.c.b16 %v2050, %v2034
        %v3219 = vpack.c.b16 %v2051, %v2035
        %v3220 = vpack.c.b16 %v2068, %v2052
        %v3221 = vpack.c.b16 %v2069, %v2053
        %v3222 = vpack.c.b16 %v2070, %v2054
        %v3223 = vpack.c.b16 %v2071, %v2055
        %v3224 = vpack.c.b16 %v2072, %v2056
        %v3225 = vpack.c.b16 %v2073, %v2057
        %v3226 = vpack.c.b16 %v2074, %v2058
        %v3227 = vpack.c.b16 %v2075, %v2059
        %v3228 = vpack.c.b16 %v2076, %v2060
        %v3229 = vpack.c.b16 %v2077, %v2061
        %v3230 = vpack.c.b16 %v2078, %v2062
        %v3231 = vpack.c.b16 %v2079, %v2063
        %v3232 = vpack.c.b16 %v2080, %v2064
        %v3233 = vpack.c.b16 %v2081, %v2065
        %v3234 = vpack.c.b16 %v2082, %v2066
        %v3235 = vpack.c.b16 %v2083, %v2067
        %v3236 = vpack.c.b16 %v2100, %v2084
        %v3237 = vpack.c.b16 %v2101, %v2085
        %v3238 = vpack.c.b16 %v2102, %v2086
        %v3239 = vpack.c.b16 %v2103, %v2087
        %v3240 = vpack.c.b16 %v2104, %v2088
        %v3241 = vpack.c.b16 %v2105, %v2089
        %v3242 = vpack.c.b16 %v2106, %v2090
        %v3243 = vpack.c.b16 %v2107, %v2091
        %v3244 = vpack.c.b16 %v2108, %v2092
        %v3245 = vpack.c.b16 %v2109, %v2093
        %v3246 = vpack.c.b16 %v2110, %v2094
        %v3247 = vpack.c.b16 %v2111, %v2095
        %v3248 = vpack.c.b16 %v2112, %v2096
        %v3249 = vpack.c.b16 %v2113, %v2097
        %v3250 = vpack.c.b16 %v2114, %v2098
        %v3251 = vpack.c.b16 %v2115, %v2099
        %v3252 = vpack.c.b16 %v2132, %v2116
        %v3253 = vpack.c.b16 %v2133, %v2117
        %v3254 = vpack.c.b16 %v2134, %v2118
        %v3255 = vpack.c.b16 %v2135, %v2119
        %v3256 = vpack.c.b16 %v2136, %v2120
        %v3257 = vpack.c.b16 %v2137, %v2121
        %v3258 = vpack.c.b16 %v2138, %v2122
        %v3259 = vpack.c.b16 %v2139, %v2123
        %v3260 = vpack.c.b16 %v2140, %v2124
        %v3261 = vpack.c.b16 %v2141, %v2125
        %v3262 = vpack.c.b16 %v2142, %v2126
        %v3263 = vpack.c.b16 %v2143, %v2127
        %v3264 = vpack.c.b16 %v2144, %v2128
        %v3265 = vpack.c.b16 %v2145, %v2129
        %v3266 = vpack.c.b16 %v2146, %v2130
        %v3267 = vpack.c.b16 %v2147, %v2131
        %v3268 = vpack.c.b16 %v2164, %v2148
        %v3269 = vpack.c.b16 %v2165, %v2149
        %v3270 = vpack.c.b16 %v2166, %v2150
        %v3271 = vpack.c.b16 %v2167, %v2151
        %v3272 = vpack.c.b16 %v2168, %v2152
        %v3273 = vpack.c.b16 %v2169, %v2153
        %v3274 = vpack.c.b16 %v2170, %v2154
        %v3275 = vpack.c.b16 %v2171, %v2155
        %v3276 = vpack.c.b16 %v2172, %v2156
        %v3277 = vpack.c.b16 %v2173, %v2157
        %v3278 = vpack.c.b16 %v2174, %v2158
        %v3279 = vpack.c.b16 %v2175, %v2159
        %v3280 = vpack.c.b16 %v2176, %v2160
        %v3281 = vpack.c.b16 %v2177, %v2161
        %v3282 = vpack.c.b16 %v2178, %v2162
        %v3283 = vpack.c.b16 %v2179, %v2163
        %v3284 = vpack.c.b16 %v2196, %v2180
        %v3285 = vpack.c.b16 %v2197, %v2181
        %v3286 = vpack.c.b16 %v2198, %v2182
        %v3287 = vpack.c.b16 %v2199, %v2183
        %v3288 = vpack.c.b16 %v2200, %v2184
        %v3289 = vpack.c.b16 %v2201, %v2185
        %v3290 = vpack.c.b16 %v2202, %v2186
        %v3291 = vpack.c.b16 %v2203, %v2187
        %v3292 = vpack.c.b16 %v2204, %v2188
        %v3293 = vpack.c.b16 %v2205, %v2189
        %v3294 = vpack.c.b16 %v2206, %v2190
        %v3295 = vpack.c.b16 %v2207, %v2191
        %v3296 = vpack.c.b16 %v2208, %v2192
        %v3297 = vpack.c.b16 %v2209, %v2193
        %v3298 = vpack.c.b16 %v2210, %v2194
        %v3299 = vpack.c.b16 %v2211, %v2195
        %v3300 = vpack.c.b16 %v2228, %v2212
        %v3301 = vpack.c.b16 %v2229, %v2213
        %v3302 = vpack.c.b16 %v2230, %v2214
        %v3303 = vpack.c.b16 %v2231, %v2215
        %v3304 = vpack.c.b16 %v2232, %v2216
        %v3305 = vpack.c.b16 %v2233, %v2217
        %v3306 = vpack.c.b16 %v2234, %v2218
        %v3307 = vpack.c.b16 %v2235, %v2219
        %v3308 = vpack.c.b16 %v2236, %v2220
        %v3309 = vpack.c.b16 %v2237, %v2221
        %v3310 = vpack.c.b16 %v2238, %v2222
        %v3311 = vpack.c.b16 %v2239, %v2223
        %v3312 = vpack.c.b16 %v2240, %v2224
        %v3313 = vpack.c.b16 %v2241, %v2225
        %v3314 = vpack.c.b16 %v2242, %v2226
        %v3315 = vpack.c.b16 %v2243, %v2227
        %v3316 = vpack.c.b16 %v2260, %v2244
        %v3317 = vpack.c.b16 %v2261, %v2245
        %v3318 = vpack.c.b16 %v2262, %v2246
        %v3319 = vpack.c.b16 %v2263, %v2247
        %v3320 = vpack.c.b16 %v2264, %v2248
        %v3321 = vpack.c.b16 %v2265, %v2249
        %v3322 = vpack.c.b16 %v2266, %v2250
        %v3323 = vpack.c.b16 %v2267, %v2251
        %v3324 = vpack.c.b16 %v2268, %v2252
        %v3325 = vpack.c.b16 %v2269, %v2253
        %v3326 = vpack.c.b16 %v2270, %v2254
        %v3327 = vpack.c.b16 %v2271, %v2255
        %v3328 = vpack.c.b16 %v2272, %v2256
        %v3329 = vpack.c.b16 %v2273, %v2257
        %v3330 = vpack.c.b16 %v2274, %v2258
        %v3331 = vpack.c.b16 %v2275, %v2259
        %v3332 = vpack.c.b16 %v2292, %v2276
        %v3333 = vpack.c.b16 %v2293, %v2277
        %v3334 = vpack.c.b16 %v2294, %v2278
        %v3335 = vpack.c.b16 %v2295, %v2279
        %v3336 = vpack.c.b16 %v2296, %v2280
        %v3337 = vpack.c.b16 %v2297, %v2281
        %v3338 = vpack.c.b16 %v2298, %v2282
        %v3339 = vpack.c.b16 %v2299, %v2283
        %v3340 = vpack.c.b16 %v2300, %v2284
        %v3341 = vpack.c.b16 %v2301, %v2285
        %v3342 = vpack.c.b16 %v2302, %v2286
        %v3343 = vpack.c.b16 %v2303, %v2287
        %v3344 = vpack.c.b16 %v2304, %v2288
        %v3345 = vpack.c.b16 %v2305, %v2289
        %v3346 = vpack.c.b16 %v2306, %v2290
        %v3347 = vpack.c.b16 %v2307, %v2291
        %v3348 = vpack.c.b16 %v2324, %v2308
        %v3349 = vpack.c.b16 %v2325, %v2309
        %v3350 = vpack.c.b16 %v2326, %v2310
        %v3351 = vpack.c.b16 %v2327, %v2311
        %v3352 = vpack.c.b16 %v2328, %v2312
        %v3353 = vpack.c.b16 %v2329, %v2313
        %v3354 = vpack.c.b16 %v2330, %v2314
        %v3355 = vpack.c.b16 %v2331, %v2315
        %v3356 = vpack.c.b16 %v2332, %v2316
        %v3357 = vpack.c.b16 %v2333, %v2317
        %v3358 = vpack.c.b16 %v2334, %v2318
        %v3359 = vpack.c.b16 %v2335, %v2319
        %v3360 = vpack.c.b16 %v2336, %v2320
        %v3361 = vpack.c.b16 %v2337, %v2321
        %v3362 = vpack.c.b16 %v2338, %v2322
        %v3363 = vpack.c.b16 %v2339, %v2323
        %v3364 = vpack.c.b16 %v2356, %v2340
        %v3365 = vpack.c.b16 %v2357, %v2341
        %v3366 = vpack.c.b16 %v2358, %v2342
        %v3367 = vpack.c.b16 %v2359, %v2343
        %v3368 = vpack.c.b16 %v2360, %v2344
        %v3369 = vpack.c.b16 %v2361, %v2345
        %v3370 = vpack.c.b16 %v2362, %v2346
        %v3371 = vpack.c.b16 %v2363, %v2347
        %v3372 = vpack.c.b16 %v2364, %v2348
        %v3373 = vpack.c.b16 %v2365, %v2349
        %v3374 = vpack.c.b16 %v2366, %v2350
        %v3375 = vpack.c.b16 %v2367, %v2351
        %v3376 = vpack.c.b16 %v2368, %v2352
        %v3377 = vpack.c.b16 %v2369, %v2353
        %v3378 = vpack.c.b16 %v2370, %v2354
        %v3379 = vpack.c.b16 %v2371, %v2355
        %v3380 = vpack.c.b16 %v2388, %v2372
        %v3381 = vpack.c.b16 %v2389, %v2373
        %v3382 = vpack.c.b16 %v2390, %v2374
        %v3383 = vpack.c.b16 %v2391, %v2375
        %v3384 = vpack.c.b16 %v2392, %v2376
        %v3385 = vpack.c.b16 %v2393, %v2377
        %v3386 = vpack.c.b16 %v2394, %v2378
        %v3387 = vpack.c.b16 %v2395, %v2379
        %v3388 = vpack.c.b16 %v2396, %v2380
        %v3389 = vpack.c.b16 %v2397, %v2381
        %v3390 = vpack.c.b16 %v2398, %v2382
        %v3391 = vpack.c.b16 %v2399, %v2383
        %v3392 = vpack.c.b16 %v2400, %v2384
        %v3393 = vpack.c.b16 %v2401, %v2385
        %v3394 = vpack.c.b16 %v2402, %v2386
        %v3395 = vpack.c.b16 %v2403, %v2387
        %v3396 = vpack.c.b16 %v2420, %v2404
        %v3397 = vpack.c.b16 %v2421, %v2405
        %v3398 = vpack.c.b16 %v2422, %v2406
        %v3399 = vpack.c.b16 %v2423, %v2407
        %v3400 = vpack.c.b16 %v2424, %v2408
        %v3401 = vpack.c.b16 %v2425, %v2409
        %v3402 = vpack.c.b16 %v2426, %v2410
        %v3403 = vpack.c.b16 %v2427, %v2411
        %v3404 = vpack.c.b16 %v2428, %v2412
        %v3405 = vpack.c.b16 %v2429, %v2413
        %v3406 = vpack.c.b16 %v2430, %v2414
        %v3407 = vpack.c.b16 %v2431, %v2415
        %v3408 = vpack.c.b16 %v2432, %v2416
        %v3409 = vpack.c.b16 %v2433, %v2417
        %v3410 = vpack.c.b16 %v2434, %v2418
        %v3411 = vpack.c.b16 %v2435, %v2419
        %v3412 = vpack.c.b16 %v2452, %v2436
        %v3413 = vpack.c.b16 %v2453, %v2437
        %v3414 = vpack.c.b16 %v2454, %v2438
        %v3415 = vpack.c.b16 %v2455, %v2439
        %v3416 = vpack.c.b16 %v2456, %v2440
        %v3417 = vpack.c.b16 %v2457, %v2441
        %v3418 = vpack.c.b16 %v2458, %v2442
        %v3419 = vpack.c.b16 %v2459, %v2443
        %v3420 = vpack.c.b16 %v2460, %v2444
        %v3421 = vpack.c.b16 %v2461, %v2445
        %v3422 = vpack.c.b16 %v2462, %v2446
        %v3423 = vpack.c.b16 %v2463, %v2447
        %v3424 = vpack.c.b16 %v2464, %v2448
        %v3425 = vpack.c.b16 %v2465, %v2449
        %v3426 = vpack.c.b16 %v2466, %v2450
        %v3427 = vpack.c.b16 %v2467, %v2451
        %v3428 = vpack.c.b16 %v2484, %v2468
        %v3429 = vpack.c.b16 %v2485, %v2469
        %v3430 = vpack.c.b16 %v2486, %v2470
        %v3431 = vpack.c.b16 %v2487, %v2471
        %v3432 = vpack.c.b16 %v2488, %v2472
        %v3433 = vpack.c.b16 %v2489, %v2473
        %v3434 = vpack.c.b16 %v2490, %v2474
        %v3435 = vpack.c.b16 %v2491, %v2475
        %v3436 = vpack.c.b16 %v2492, %v2476
        %v3437 = vpack.c.b16 %v2493, %v2477
        %v3438 = vpack.c.b16 %v2494, %v2478
        %v3439 = vpack.c.b16 %v2495, %v2479
        %v3440 = vpack.c.b16 %v2496, %v2480
        %v3441 = vpack.c.b16 %v2497, %v2481
        %v3442 = vpack.c.b16 %v2498, %v2482
        %v3443 = vpack.c.b16 %v2499, %v2483
        %v3444 = vpack.c.b16 %v2516, %v2500
        %v3445 = vpack.c.b16 %v2517, %v2501
        %v3446 = vpack.c.b16 %v2518, %v2502
        %v3447 = vpack.c.b16 %v2519, %v2503
        %v3448 = vpack.c.b16 %v2520, %v2504
        %v3449 = vpack.c.b16 %v2521, %v2505
        %v3450 = vpack.c.b16 %v2522, %v2506
        %v3451 = vpack.c.b16 %v2523, %v2507
        %v3452 = vpack.c.b16 %v2524, %v2508
        %v3453 = vpack.c.b16 %v2525, %v2509
        %v3454 = vpack.c.b16 %v2526, %v2510
        %v3455 = vpack.c.b16 %v2527, %v2511
        %v3456 = vpack.c.b16 %v2528, %v2512
        %v3457 = vpack.c.b16 %v2529, %v2513
        %v3458 = vpack.c.b16 %v2530, %v2514
        %v3459 = vpack.c.b16 %v2531, %v2515
        %v3460 = vpack.c.b16 %v2548, %v2532
        %v3461 = vpack.c.b16 %v2549, %v2533
        %v3462 = vpack.c.b16 %v2550, %v2534
        %v3463 = vpack.c.b16 %v2551, %v2535
        %v3464 = vpack.c.b16 %v2552, %v2536
        %v3465 = vpack.c.b16 %v2553, %v2537
        %v3466 = vpack.c.b16 %v2554, %v2538
        %v3467 = vpack.c.b16 %v2555, %v2539
        %v3468 = vpack.c.b16 %v2556, %v2540
        %v3469 = vpack.c.b16 %v2557, %v2541
        %v3470 = vpack.c.b16 %v2558, %v2542
        %v3471 = vpack.c.b16 %v2559, %v2543
        %v3472 = vpack.c.b16 %v2560, %v2544
        %v3473 = vpack.c.b16 %v2561, %v2545
        %v3474 = vpack.c.b16 %v2562, %v2546
        %v3475 = vpack.c.b16 %v2563, %v2547
        %v3476 = vpack.c.b16 %v2580, %v2564
        %v3477 = vpack.c.b16 %v2581, %v2565
        %v3478 = vpack.c.b16 %v2582, %v2566
        %v3479 = vpack.c.b16 %v2583, %v2567
        %v3480 = vpack.c.b16 %v2584, %v2568
        %v3481 = vpack.c.b16 %v2585, %v2569
        %v3482 = vpack.c.b16 %v2586, %v2570
        %v3483 = vpack.c.b16 %v2587, %v2571
        %v3484 = vpack.c.b16 %v2588, %v2572
        %v3485 = vpack.c.b16 %v2589, %v2573
        %v3486 = vpack.c.b16 %v2590, %v2574
        %v3487 = vpack.c.b16 %v2591, %v2575
        %v3488 = vpack.c.b16 %v2592, %v2576
        %v3489 = vpack.c.b16 %v2593, %v2577
        %v3490 = vpack.c.b16 %v2594, %v2578
        %v3491 = vpack.c.b16 %v2595, %v2579
        %v3492 = vpack.c.b16 %v2612, %v2596
        %v3493 = vpack.c.b16 %v2613, %v2597
        %v3494 = vpack.c.b16 %v2614, %v2598
        %v3495 = vpack.c.b16 %v2615, %v2599
        %v3496 = vpack.c.b16 %v2616, %v2600
        %v3497 = vpack.c.b16 %v2617, %v2601
        %v3498 = vpack.c.b16 %v2618, %v2602
        %v3499 = vpack.c.b16 %v2619, %v2603
        %v3500 = vpack.c.b16 %v2620, %v2604
        %v3501 = vpack.c.b16 %v2621, %v2605
        %v3502 = vpack.c.b16 %v2622, %v2606
        %v3503 = vpack.c.b16 %v2623, %v2607
        %v3504 = vpack.c.b16 %v2624, %v2608
        %v3505 = vpack.c.b16 %v2625, %v2609
        %v3506 = vpack.c.b16 %v2626, %v2610
        %v3507 = vpack.c.b16 %v2627, %v2611
        %v3508 = vpack.c.b16 %v2644, %v2628
        %v3509 = vpack.c.b16 %v2645, %v2629
        %v3510 = vpack.c.b16 %v2646, %v2630
        %v3511 = vpack.c.b16 %v2647, %v2631
        %v3512 = vpack.c.b16 %v2648, %v2632
        %v3513 = vpack.c.b16 %v2649, %v2633
        %v3514 = vpack.c.b16 %v2650, %v2634
        %v3515 = vpack.c.b16 %v2651, %v2635
        %v3516 = vpack.c.b16 %v2652, %v2636
        %v3517 = vpack.c.b16 %v2653, %v2637
        %v3518 = vpack.c.b16 %v2654, %v2638
        %v3519 = vpack.c.b16 %v2655, %v2639
        %v3520 = vpack.c.b16 %v2656, %v2640
        %v3521 = vpack.c.b16 %v2657, %v2641
        %v3522 = vpack.c.b16 %v2658, %v2642
        %v3523 = vpack.c.b16 %v2659, %v2643
        %v3524 = vpack.c.b16 %v2676, %v2660
        %v3525 = vpack.c.b16 %v2677, %v2661
        %v3526 = vpack.c.b16 %v2678, %v2662
        %v3527 = vpack.c.b16 %v2679, %v2663
        %v3528 = vpack.c.b16 %v2680, %v2664
        %v3529 = vpack.c.b16 %v2681, %v2665
        %v3530 = vpack.c.b16 %v2682, %v2666
        %v3531 = vpack.c.b16 %v2683, %v2667
        %v3532 = vpack.c.b16 %v2684, %v2668
        %v3533 = vpack.c.b16 %v2685, %v2669
        %v3534 = vpack.c.b16 %v2686, %v2670
        %v3535 = vpack.c.b16 %v2687, %v2671
        %v3536 = vpack.c.b16 %v2688, %v2672
        %v3537 = vpack.c.b16 %v2689, %v2673
        %v3538 = vpack.c.b16 %v2690, %v2674
        %v3539 = vpack.c.b16 %v2691, %v2675
        %v3540 = vpack.c.b16 %v2708, %v2692
        %v3541 = vpack.c.b16 %v2709, %v2693
        %v3542 = vpack.c.b16 %v2710, %v2694
        %v3543 = vpack.c.b16 %v2711, %v2695
        %v3544 = vpack.c.b16 %v2712, %v2696
        %v3545 = vpack.c.b16 %v2713, %v2697
        %v3546 = vpack.c.b16 %v2714, %v2698
        %v3547 = vpack.c.b16 %v2715, %v2699
        %v3548 = vpack.c.b16 %v2716, %v2700
        %v3549 = vpack.c.b16 %v2717, %v2701
        %v3550 = vpack.c.b16 %v2718, %v2702
        %v3551 = vpack.c.b16 %v2719, %v2703
        %v3552 = vpack.c.b16 %v2720, %v2704
        %v3553 = vpack.c.b16 %v2721, %v2705
        %v3554 = vpack.c.b16 %v2722, %v2706
        %v3555 = vpack.c.b16 %v2723, %v2707
        %v3556 = vpack.c.b16 %v2740, %v2724
        %v3557 = vpack.c.b16 %v2741, %v2725
        %v3558 = vpack.c.b16 %v2742, %v2726
        %v3559 = vpack.c.b16 %v2743, %v2727
        %v3560 = vpack.c.b16 %v2744, %v2728
        %v3561 = vpack.c.b16 %v2745, %v2729
        %v3562 = vpack.c.b16 %v2746, %v2730
        %v3563 = vpack.c.b16 %v2747, %v2731
        %v3564 = vpack.c.b16 %v2748, %v2732
        %v3565 = vpack.c.b16 %v2749, %v2733
        %v3566 = vpack.c.b16 %v2750, %v2734
        %v3567 = vpack.c.b16 %v2751, %v2735
        %v3568 = vpack.c.b16 %v2752, %v2736
        %v3569 = vpack.c.b16 %v2753, %v2737
        %v3570 = vpack.c.b16 %v2754, %v2738
        %v3571 = vpack.c.b16 %v2755, %v2739
        %v3572 = vpack.c.b16 %v2772, %v2756
        %v3573 = vpack.c.b16 %v2773, %v2757
        %v3574 = vpack.c.b16 %v2774, %v2758
        %v3575 = vpack.c.b16 %v2775, %v2759
        %v3576 = vpack.c.b16 %v2776, %v2760
        %v3577 = vpack.c.b16 %v2777, %v2761
        %v3578 = vpack.c.b16 %v2778, %v2762
        %v3579 = vpack.c.b16 %v2779, %v2763
        %v3580 = vpack.c.b16 %v2780, %v2764
        %v3581 = vpack.c.b16 %v2781, %v2765
        %v3582 = vpack.c.b16 %v2782, %v2766
        %v3583 = vpack.c.b16 %v2783, %v2767
        %v3584 = vpack.c.b16 %v2784, %v2768
        %v3585 = vpack.c.b16 %v2785, %v2769
        %v3586 = vpack.c.b16 %v2786, %v2770
        %v3587 = vpack.c.b16 %v2787, %v2771
        %v3588 = vpack.c.b16 %v2804, %v2788
        %v3589 = vpack.c.b16 %v2805, %v2789
        %v3590 = vpack.c.b16 %v2806, %v2790
        %v3591 = vpack.c.b16 %v2807, %v2791
        %v3592 = vpack.c.b16 %v2808, %v2792
        %v3593 = vpack.c.b16 %v2809, %v2793
        %v3594 = vpack.c.b16 %v2810, %v2794
        %v3595 = vpack.c.b16 %v2811, %v2795
        %v3596 = vpack.c.b16 %v2812, %v2796
        %v3597 = vpack.c.b16 %v2813, %v2797
        %v3598 = vpack.c.b16 %v2814, %v2798
        %v3599 = vpack.c.b16 %v2815, %v2799
        %v3600 = vpack.c.b16 %v2816, %v2800
        %v3601 = vpack.c.b16 %v2817, %v2801
        %v3602 = vpack.c.b16 %v2818, %v2802
        %v3603 = vpack.c.b16 %v2819, %v2803
        %v3604 = vpack.c.b16 %v2836, %v2820
        %v3605 = vpack.c.b16 %v2837, %v2821
        %v3606 = vpack.c.b16 %v2838, %v2822
        %v3607 = vpack.c.b16 %v2839, %v2823
        %v3608 = vpack.c.b16 %v2840, %v2824
        %v3609 = vpack.c.b16 %v2841, %v2825
        %v3610 = vpack.c.b16 %v2842, %v2826
        %v3611 = vpack.c.b16 %v2843, %v2827
        %v3612 = vpack.c.b16 %v2844, %v2828
        %v3613 = vpack.c.b16 %v2845, %v2829
        %v3614 = vpack.c.b16 %v2846, %v2830
        %v3615 = vpack.c.b16 %v2847, %v2831
        %v3616 = vpack.c.b16 %v2848, %v2832
        %v3617 = vpack.c.b16 %v2849, %v2833
        %v3618 = vpack.c.b16 %v2850, %v2834
        %v3619 = vpack.c.b16 %v2851, %v2835
        %v3620 = vpack.c.b16 %v2868, %v2852
        %v3621 = vpack.c.b16 %v2869, %v2853
        %v3622 = vpack.c.b16 %v2870, %v2854
        %v3623 = vpack.c.b16 %v2871, %v2855
        %v3624 = vpack.c.b16 %v2872, %v2856
        %v3625 = vpack.c.b16 %v2873, %v2857
        %v3626 = vpack.c.b16 %v2874, %v2858
        %v3627 = vpack.c.b16 %v2875, %v2859
        %v3628 = vpack.c.b16 %v2876, %v2860
        %v3629 = vpack.c.b16 %v2877, %v2861
        %v3630 = vpack.c.b16 %v2878, %v2862
        %v3631 = vpack.c.b16 %v2879, %v2863
        %v3632 = vpack.c.b16 %v2880, %v2864
        %v3633 = vpack.c.b16 %v2881, %v2865
        %v3634 = vpack.c.b16 %v2882, %v2866
        %v3635 = vpack.c.b16 %v2883, %v2867
        %v3636 = vpack.c.b16 %v2900, %v2884
        %v3637 = vpack.c.b16 %v2901, %v2885
        %v3638 = vpack.c.b16 %v2902, %v2886
        %v3639 = vpack.c.b16 %v2903, %v2887
        %v3640 = vpack.c.b16 %v2904, %v2888
        %v3641 = vpack.c.b16 %v2905, %v2889
        %v3642 = vpack.c.b16 %v2906, %v2890
        %v3643 = vpack.c.b16 %v2907, %v2891
        %v3644 = vpack.c.b16 %v2908, %v2892
        %v3645 = vpack.c.b16 %v2909, %v2893
        %v3646 = vpack.c.b16 %v2910, %v2894
        %v3647 = vpack.c.b16 %v2911, %v2895
        %v3648 = vpack.c.b16 %v2912, %v2896
        %v3649 = vpack.c.b16 %v2913, %v2897
        %v3650 = vpack.c.b16 %v2914, %v2898
        %v3651 = vpack.c.b16 %v2915, %v2899
        %v3652 = vpack.c.b16 %v2932, %v2916
        %v3653 = vpack.c.b16 %v2933, %v2917
        %v3654 = vpack.c.b16 %v2934, %v2918
        %v3655 = vpack.c.b16 %v2935, %v2919
        %v3656 = vpack.c.b16 %v2936, %v2920
        %v3657 = vpack.c.b16 %v2937, %v2921
        %v3658 = vpack.c.b16 %v2938, %v2922
        %v3659 = vpack.c.b16 %v2939, %v2923
        %v3660 = vpack.c.b16 %v2940, %v2924
        %v3661 = vpack.c.b16 %v2941, %v2925
        %v3662 = vpack.c.b16 %v2942, %v2926
        %v3663 = vpack.c.b16 %v2943, %v2927
        %v3664 = vpack.c.b16 %v2944, %v2928
        %v3665 = vpack.c.b16 %v2945, %v2929
        %v3666 = vpack.c.b16 %v2946, %v2930
        %v3667 = vpack.c.b16 %v2947, %v2931
        %v3668 = vpack.c.b16 %v2964, %v2948
        %v3669 = vpack.c.b16 %v2965, %v2949
        %v3670 = vpack.c.b16 %v2966, %v2950
        %v3671 = vpack.c.b16 %v2967, %v2951
        %v3672 = vpack.c.b16 %v2968, %v2952
        %v3673 = vpack.c.b16 %v2969, %v2953
        %v3674 = vpack.c.b16 %v2970, %v2954
        %v3675 = vpack.c.b16 %v2971, %v2955
        %v3676 = vpack.c.b16 %v2972, %v2956
        %v3677 = vpack.c.b16 %v2973, %v2957
        %v3678 = vpack.c.b16 %v2974, %v2958
        %v3679 = vpack.c.b16 %v2975, %v2959
        %v3680 = vpack.c.b16 %v2976, %v2960
        %v3681 = vpack.c.b16 %v2977, %v2961
        %v3682 = vpack.c.b16 %v2978, %v2962
        %v3683 = vpack.c.b16 %v2979, %v2963
        %v3684 = vpack.c.b16 %v2996, %v2980
        %v3685 = vpack.c.b16 %v2997, %v2981
        %v3686 = vpack.c.b16 %v2998, %v2982
        %v3687 = vpack.c.b16 %v2999, %v2983
        %v3688 = vpack.c.b16 %v3000, %v2984
        %v3689 = vpack.c.b16 %v3001, %v2985
        %v3690 = vpack.c.b16 %v3002, %v2986
        %v3691 = vpack.c.b16 %v3003, %v2987
        %v3692 = vpack.c.b16 %v3004, %v2988
        %v3693 = vpack.c.b16 %v3005, %v2989
        %v3694 = vpack.c.b16 %v3006, %v2990
        %v3695 = vpack.c.b16 %v3007, %v2991
        %v3696 = vpack.c.b16 %v3008, %v2992
        %v3697 = vpack.c.b16 %v3009, %v2993
        %v3698 = vpack.c.b16 %v3010, %v2994
        %v3699 = vpack.c.b16 %v3011, %v2995
        %v3700 = vpack.c.b16 %v3028, %v3012
        %v3701 = vpack.c.b16 %v3029, %v3013
        %v3702 = vpack.c.b16 %v3030, %v3014
        %v3703 = vpack.c.b16 %v3031, %v3015
        %v3704 = vpack.c.b16 %v3032, %v3016
        %v3705 = vpack.c.b16 %v3033, %v3017
        %v3706 = vpack.c.b16 %v3034, %v3018
        %v3707 = vpack.c.b16 %v3035, %v3019
        %v3708 = vpack.c.b16 %v3036, %v3020
        %v3709 = vpack.c.b16 %v3037, %v3021
        %v3710 = vpack.c.b16 %v3038, %v3022
        %v3711 = vpack.c.b16 %v3039, %v3023
        %v3712 = vpack.c.b16 %v3040, %v3024
        %v3713 = vpack.c.b16 %v3041, %v3025
        %v3714 = vpack.c.b16 %v3042, %v3026
        %v3715 = vpack.c.b16 %v3043, %v3027
        %v3716 = vpack.c.b16 %v3060, %v3044
        %v3717 = vpack.c.b16 %v3061, %v3045
        %v3718 = vpack.c.b16 %v3062, %v3046
        %v3719 = vpack.c.b16 %v3063, %v3047
        %v3720 = vpack.c.b16 %v3064, %v3048
        %v3721 = vpack.c.b16 %v3065, %v3049
        %v3722 = vpack.c.b16 %v3066, %v3050
        %v3723 = vpack.c.b16 %v3067, %v3051
        %v3724 = vpack.c.b16 %v3068, %v3052
        %v3725 = vpack.c.b16 %v3069, %v3053
        %v3726 = vpack.c.b16 %v3070, %v3054
        %v3727 = vpack.c.b16 %v3071, %v3055
        %v3728 = vpack.c.b16 %v3072, %v3056
        %v3729 = vpack.c.b16 %v3073, %v3057
        %v3730 = vpack.c.b16 %v3074, %v3058
        %v3731 = vpack.c.b16 %v3075, %v3059
        %v3732 = vpack.c.b16 %v3092, %v3076
        %v3733 = vpack.c.b16 %v3093, %v3077
        %v3734 = vpack.c.b16 %v3094, %v3078
        %v3735 = vpack.c.b16 %v3095, %v3079
        %v3736 = vpack.c.b16 %v3096, %v3080
        %v3737 = vpack.c.b16 %v3097, %v3081
        %v3738 = vpack.c.b16 %v3098, %v3082
        %v3739 = vpack.c.b16 %v3099, %v3083
        %v3740 = vpack.c.b16 %v3100, %v3084
        %v3741 = vpack.c.b16 %v3101, %v3085
        %v3742 = vpack.c.b16 %v3102, %v3086
        %v3743 = vpack.c.b16 %v3103, %v3087
        %v3744 = vpack.c.b16 %v3104, %v3088
        %v3745 = vpack.c.b16 %v3105, %v3089
        %v3746 = vpack.c.b16 %v3106, %v3090
        %v3747 = vpack.c.b16 %v3107, %v3091
        %v3748 = vpack.c.b16 %v3124, %v3108
        %v3749 = vpack.c.b16 %v3125, %v3109
        %v3750 = vpack.c.b16 %v3126, %v3110
        %v3751 = vpack.c.b16 %v3127, %v3111
        %v3752 = vpack.c.b16 %v3128, %v3112
        %v3753 = vpack.c.b16 %v3129, %v3113
        %v3754 = vpack.c.b16 %v3130, %v3114
        %v3755 = vpack.c.b16 %v3131, %v3115
        %v3756 = vpack.c.b16 %v3132, %v3116
        %v3757 = vpack.c.b16 %v3133, %v3117
        %v3758 = vpack.c.b16 %v3134, %v3118
        %v3759 = vpack.c.b16 %v3135, %v3119
        %v3760 = vpack.c.b16 %v3136, %v3120
        %v3761 = vpack.c.b16 %v3137, %v3121
        %v3762 = vpack.c.b16 %v3138, %v3122
        %v3763 = vpack.c.b16 %v3139, %v3123
        %v3764 = vpack.c.b16 %v3156, %v3140
        %v3765 = vpack.c.b16 %v3157, %v3141
        %v3766 = vpack.c.b16 %v3158, %v3142
        %v3767 = vpack.c.b16 %v3159, %v3143
        %v3768 = vpack.c.b16 %v3160, %v3144
        %v3769 = vpack.c.b16 %v3161, %v3145
        %v3770 = vpack.c.b16 %v3162, %v3146
        %v3771 = vpack.c.b16 %v3163, %v3147
        %v3772 = vpack.c.b16 %v3164, %v3148
        %v3773 = vpack.c.b16 %v3165, %v3149
        %v3774 = vpack.c.b16 %v3166, %v3150
        %v3775 = vpack.c.b16 %v3167, %v3151
        %v3776 = vpack.c.b16 %v3168, %v3152
        %v3777 = vpack.c.b16 %v3169, %v3153
        %v3778 = vpack.c.b16 %v3170, %v3154
        %v3779 = vpack.c.b16 %v3171, %v3155
        %v3780 = vpack.c.b16 %v3172, %v3172
        %v3781 = vpack.c.b16 %v3173, %v3173
        %v3782 = vpack.c.b16 %v3174, %v3174
        %v3783 = vpack.c.b16 %v3175, %v3175
        %v3784 = vpack.c.b16 %v3176, %v3176
        %v3785 = vpack.c.b16 %v3177, %v3177
        %v3786 = vpack.c.b16 %v3178, %v3178
        %v3787 = vpack.c.b16 %v3179, %v3179
        %v3788 = vpack.c.b16 %v3180, %v3180
        %v3789 = vpack.c.b16 %v3181, %v3181
        %v3790 = vpack.c.b16 %v3182, %v3182
        %v3791 = vpack.c.b16 %v3183, %v3183
        %v3792 = vpack.c.b16 %v3184, %v3184
        %v3793 = vpack.c.b16 %v3185, %v3185
        %v3794 = vpack.c.b16 %v3186, %v3186
        %v3795 = vpack.c.b16 %v3187, %v3187
        %vm4388 = vcmask 719872
        %v4390 = vsel %vm4388, %v703, 0
        %vm4392 = vcmask 1043456
        %v4394 = vsel %vm4392, %v3780, 0
        %v4397 = vsel %vm4392, %v3781, 0
        %v4400 = vsel %vm4392, %v3782, 0
        %v4403 = vsel %vm4392, %v3783, 0
        %v4406 = vsel %vm4392, %v3784, 0
        %v4409 = vsel %vm4392, %v3785, 0
        %v4412 = vsel %vm4392, %v3786, 0
        %v4415 = vsel %vm4392, %v3787, 0
        %v4418 = vsel %vm4392, %v3788, 0
        %v4421 = vsel %vm4392, %v3789, 0
        %v4424 = vsel %vm4392, %v3790, 0
        %v4427 = vsel %vm4392, %v3791, 0
        %v4430 = vsel %vm4392, %v3792, 0
        %v4433 = vsel %vm4392, %v3793, 0
        %v4436 = vsel %vm4392, %v3794, 0
        %v4439 = vsel %vm4392, %v3795, 0
        %4441 = vmatprep.subr.bf16.mxu0 %v3189
        %4442 = vmatpush1.bf16.msra.mxu0 %v3188
        %4443 = vmatprep.subr.bf16.mxu0 %v3205
        %4444 = vmatpush1.bf16.msra.mxu0 %v3204
        %4445 = vmatprep.subr.bf16.mxu0 %v3221
        %4446 = vmatpush1.bf16.msra.mxu0 %v3220
        %4447 = vmatprep.subr.bf16.mxu0 %v3237
        %4448 = vmatpush1.bf16.msra.mxu0 %v3236
        %4449 = vmatprep.subr.bf16.mxu0 %v3253
        %4450 = vmatpush1.bf16.msra.mxu0 %v3252
        %4451 = vmatprep.subr.bf16.mxu0 %v3269
        %4452 = vmatpush1.bf16.msra.mxu0 %v3268
        %4453 = vmatprep.subr.bf16.mxu0 %v3285
        %4454 = vmatpush1.bf16.msra.mxu0 %v3284
        %4455 = vmatprep.subr.bf16.mxu0 %v3301
        %4456 = vmatpush1.bf16.msra.mxu0 %v3300
        %4457 = vmatprep.subr.bf16.mxu0 %v3317
        %4458 = vmatpush1.bf16.msra.mxu0 %v3316
        %4459 = vmatprep.subr.bf16.mxu0 %v3333
        %4460 = vmatpush1.bf16.msra.mxu0 %v3332
        %4461 = vmatprep.subr.bf16.mxu0 %v3349
        %4462 = vmatpush1.bf16.msra.mxu0 %v3348
        %4463 = vmatprep.subr.bf16.mxu0 %v3365
        %4464 = vmatpush1.bf16.msra.mxu0 %v3364
        %4465 = vmatprep.subr.bf16.mxu0 %v3381
        %4466 = vmatpush1.bf16.msra.mxu0 %v3380
        %4467 = vmatprep.subr.bf16.mxu0 %v3397
        %4468 = vmatpush1.bf16.msra.mxu0 %v3396
        %4469 = vmatprep.subr.bf16.mxu0 %v3413
        %4470 = vmatpush1.bf16.msra.mxu0 %v3412
        %4471 = vmatprep.subr.bf16.mxu0 %v3429
        %4472 = vmatpush1.bf16.msra.mxu0 %v3428
        %4473 = vmatprep.mubr.bf16.mxu0 %v700
        %4474 = vmatmul.mubr.bf16.gmra.mrb[0].mxu0 %v699
        %v4475 = vpop.f32.mrb[0].mxu0
        %v4476 = vadd.f32 %v1311, %v4475
        %v4477 = vpop.f32.mrb[0].mxu0
        %v4478 = vadd.f32 %v1315, %v4477
        %v4479 = vpop.f32.mrb[0].mxu0
        %v4480 = vpop.f32.mrb[0].mxu0
        %4481 = vdwg.mxu0
        %4482 = vmatprep.subr.bf16.mxu0 %v3445
        %4483 = vmatpush1.bf16.msra.mxu0 %v3444
        %4484 = vmatprep.subr.bf16.mxu0 %v3461
        %4485 = vmatpush1.bf16.msra.mxu0 %v3460
        %4486 = vmatprep.subr.bf16.mxu0 %v3477
        %4487 = vmatpush1.bf16.msra.mxu0 %v3476
        %4488 = vmatprep.subr.bf16.mxu0 %v3493
        %4489 = vmatpush1.bf16.msra.mxu0 %v3492
        %4490 = vmatprep.subr.bf16.mxu0 %v3509
        %4491 = vmatpush1.bf16.msra.mxu0 %v3508
        %4492 = vmatprep.subr.bf16.mxu0 %v3525
        %4493 = vmatpush1.bf16.msra.mxu0 %v3524
        %4494 = vmatprep.subr.bf16.mxu0 %v3541
        %4495 = vmatpush1.bf16.msra.mxu0 %v3540
        %4496 = vmatprep.subr.bf16.mxu0 %v3557
        %4497 = vmatpush1.bf16.msra.mxu0 %v3556
        %4498 = vmatprep.subr.bf16.mxu0 %v3573
        %4499 = vmatpush1.bf16.msra.mxu0 %v3572
        %4500 = vmatprep.subr.bf16.mxu0 %v3589
        %4501 = vmatpush1.bf16.msra.mxu0 %v3588
        %4502 = vmatprep.subr.bf16.mxu0 %v3605
        %4503 = vmatpush1.bf16.msra.mxu0 %v3604
        %4504 = vmatprep.subr.bf16.mxu0 %v3621
        %4505 = vmatpush1.bf16.msra.mxu0 %v3620
        %4506 = vmatprep.subr.bf16.mxu0 %v3637
        %4507 = vmatpush1.bf16.msra.mxu0 %v3636
        %4508 = vmatprep.subr.bf16.mxu0 %v3653
        %4509 = vmatpush1.bf16.msra.mxu0 %v3652
        %4510 = vmatprep.subr.bf16.mxu0 %v3669
        %4511 = vmatpush1.bf16.msra.mxu0 %v3668
        %4512 = vmatprep.subr.bf16.mxu0 %v3685
        %4513 = vmatpush1.bf16.msra.mxu0 %v3684
        %4514 = vmatprep.mubr.bf16.mxu0 %v702
        %4515 = vmatmul.mubr.bf16.gmra.mrb[0].mxu0 %v701
        %v4516 = vpop.f32.mrb[0].mxu0
        %v4517 = vadd.f32 %v4476, %v4516
        %v4518 = vpop.f32.mrb[0].mxu0
        %v4519 = vadd.f32 %v4478, %v4518
        %v4520 = vpop.f32.mrb[0].mxu0
        %v4521 = vpop.f32.mrb[0].mxu0
        %4522 = vdwg.mxu0
        %4523 = vmatprep.subr.bf16.mxu0 %v3701
        %4524 = vmatpush1.bf16.msra.mxu0 %v3700
        %4525 = vmatprep.subr.bf16.mxu0 %v3717
        %4526 = vmatpush1.bf16.msra.mxu0 %v3716
        %4527 = vmatprep.subr.bf16.mxu0 %v3733
        %4528 = vmatpush1.bf16.msra.mxu0 %v3732
        %4529 = vmatprep.subr.bf16.mxu0 %v3749
        %4530 = vmatpush1.bf16.msra.mxu0 %v3748
        %4531 = vmatprep.subr.bf16.mxu0 %v3765
        %4532 = vmatpush1.bf16.msra.mxu0 %v3764
        %4533 = vmatprep.subr.bf16.mxu0 %v4397
        %4534 = vmatpush1.bf16.msra.mxu0 %v4394
        %4535 = vmatprep.subr.bf16.mxu0 0
        %4536 = vmatpush1.bf16.msra.mxu0 0
        %4537 = vmatprep.subr.bf16.mxu0 0
        %4538 = vmatpush1.bf16.msra.mxu0 0
        %4539 = vmatprep.subr.bf16.mxu0 0
        %4540 = vmatpush1.bf16.msra.mxu0 0
        %4541 = vmatprep.subr.bf16.mxu0 0
        %4542 = vmatpush1.bf16.msra.mxu0 0
        %4543 = vmatprep.subr.bf16.mxu0 0
        %4544 = vmatpush1.bf16.msra.mxu0 0
        %4545 = vmatprep.subr.bf16.mxu0 0
        %4546 = vmatpush1.bf16.msra.mxu0 0
        %4547 = vmatprep.subr.bf16.mxu0 0
        %4548 = vmatpush1.bf16.msra.mxu0 0
        %4549 = vmatprep.subr.bf16.mxu0 0
        %4550 = vmatpush1.bf16.msra.mxu0 0
        %4551 = vmatprep.subr.bf16.mxu0 0
        %4552 = vmatpush1.bf16.msra.mxu0 0
        %4553 = vmatprep.subr.bf16.mxu0 0
        %4554 = vmatpush1.bf16.msra.mxu0 0
        %4555 = vmatprep.mubr.bf16.mxu0 0
        %4556 = vmatmul.mubr.bf16.gmra.mrb[0].mxu0 %v4390
        %v4557 = vpop.f32.mrb[0].mxu0
        %v4558 = vadd.f32 %v4517, %v4557
        %v4559 = vpop.f32.mrb[0].mxu0
        %v4560 = vadd.f32 %v4519, %v4559
        %v4561 = vpop.f32.mrb[0].mxu0
        %v4562 = vpop.f32.mrb[0].mxu0
        %4563 = vdwg.mxu0
        %4564 = vmatprep.subr.bf16.mxu0 %v3191
        %4565 = vmatpush1.bf16.msra.mxu0 %v3190
        %4566 = vmatprep.subr.bf16.mxu0 %v3207
        %4567 = vmatpush1.bf16.msra.mxu0 %v3206
        %4568 = vmatprep.subr.bf16.mxu0 %v3223
        %4569 = vmatpush1.bf16.msra.mxu0 %v3222
        %4570 = vmatprep.subr.bf16.mxu0 %v3239
        %4571 = vmatpush1.bf16.msra.mxu0 %v3238
        %4572 = vmatprep.subr.bf16.mxu0 %v3255
        %4573 = vmatpush1.bf16.msra.mxu0 %v3254
        %4574 = vmatprep.subr.bf16.mxu0 %v3271
        %4575 = vmatpush1.bf16.msra.mxu0 %v3270
        %4576 = vmatprep.subr.bf16.mxu0 %v3287
        %4577 = vmatpush1.bf16.msra.mxu0 %v3286
        %4578 = vmatprep.subr.bf16.mxu0 %v3303
        %4579 = vmatpush1.bf16.msra.mxu0 %v3302
        %4580 = vmatprep.subr.bf16.mxu0 %v3319
        %4581 = vmatpush1.bf16.msra.mxu0 %v3318
        %4582 = vmatprep.subr.bf16.mxu0 %v3335
        %4583 = vmatpush1.bf16.msra.mxu0 %v3334
        %4584 = vmatprep.subr.bf16.mxu0 %v3351
        %4585 = vmatpush1.bf16.msra.mxu0 %v3350
        %4586 = vmatprep.subr.bf16.mxu0 %v3367
        %4587 = vmatpush1.bf16.msra.mxu0 %v3366
        %4588 = vmatprep.subr.bf16.mxu0 %v3383
        %4589 = vmatpush1.bf16.msra.mxu0 %v3382
        %4590 = vmatprep.subr.bf16.mxu0 %v3399
        %4591 = vmatpush1.bf16.msra.mxu0 %v3398
        %4592 = vmatprep.subr.bf16.mxu0 %v3415
        %4593 = vmatpush1.bf16.msra.mxu0 %v3414
        %4594 = vmatprep.subr.bf16.mxu0 %v3431
        %4595 = vmatpush1.bf16.msra.mxu0 %v3430
        %4596 = vmatprep.mubr.bf16.mxu0 %v700
        %4597 = vmatmul.mubr.bf16.gmra.mrb[0].mxu0 %v699
        %v4598 = vpop.f32.mrb[0].mxu0
        %v4599 = vadd.f32 %v1319, %v4598
        %v4600 = vpop.f32.mrb[0].mxu0
        %v4601 = vadd.f32 %v1323, %v4600
        %v4602 = vpop.f32.mrb[0].mxu0
        %v4603 = vpop.f32.mrb[0].mxu0
        %4604 = vdwg.mxu0
        %4605 = vmatprep.subr.bf16.mxu0 %v3447
        %4606 = vmatpush1.bf16.msra.mxu0 %v3446
        %4607 = vmatprep.subr.bf16.mxu0 %v3463
        %4608 = vmatpush1.bf16.msra.mxu0 %v3462
        %4609 = vmatprep.subr.bf16.mxu0 %v3479
        %4610 = vmatpush1.bf16.msra.mxu0 %v3478
        %4611 = vmatprep.subr.bf16.mxu0 %v3495
        %4612 = vmatpush1.bf16.msra.mxu0 %v3494
        %4613 = vmatprep.subr.bf16.mxu0 %v3511
        %4614 = vmatpush1.bf16.msra.mxu0 %v3510
        %4615 = vmatprep.subr.bf16.mxu0 %v3527
        %4616 = vmatpush1.bf16.msra.mxu0 %v3526
        %4617 = vmatprep.subr.bf16.mxu0 %v3543
        %4618 = vmatpush1.bf16.msra.mxu0 %v3542
        %4619 = vmatprep.subr.bf16.mxu0 %v3559
        %4620 = vmatpush1.bf16.msra.mxu0 %v3558
        %4621 = vmatprep.subr.bf16.mxu0 %v3575
        %4622 = vmatpush1.bf16.msra.mxu0 %v3574
        %4623 = vmatprep.subr.bf16.mxu0 %v3591
        %4624 = vmatpush1.bf16.msra.mxu0 %v3590
        %4625 = vmatprep.subr.bf16.mxu0 %v3607
        %4626 = vmatpush1.bf16.msra.mxu0 %v3606
        %4627 = vmatprep.subr.bf16.mxu0 %v3623
        %4628 = vmatpush1.bf16.msra.mxu0 %v3622
        %4629 = vmatprep.subr.bf16.mxu0 %v3639
        %4630 = vmatpush1.bf16.msra.mxu0 %v3638
        %4631 = vmatprep.subr.bf16.mxu0 %v3655
        %4632 = vmatpush1.bf16.msra.mxu0 %v3654
        %4633 = vmatprep.subr.bf16.mxu0 %v3671
        %4634 = vmatpush1.bf16.msra.mxu0 %v3670
        %4635 = vmatprep.subr.bf16.mxu0 %v3687
        %4636 = vmatpush1.bf16.msra.mxu0 %v3686
        %4637 = vmatprep.mubr.bf16.mxu0 %v702
        %4638 = vmatmul.mubr.bf16.gmra.mrb[0].mxu0 %v701
        %v4639 = vpop.f32.mrb[0].mxu0
        %v4640 = vadd.f32 %v4599, %v4639
        %v4641 = vpop.f32.mrb[0].mxu0
        %v4642 = vadd.f32 %v4601, %v4641
        %v4643 = vpop.f32.mrb[0].mxu0
        %v4644 = vpop.f32.mrb[0].mxu0
        %4645 = vdwg.mxu0
        %4646 = vmatprep.subr.bf16.mxu0 %v3703
        %4647 = vmatpush1.bf16.msra.mxu0 %v3702
        %4648 = vmatprep.subr.bf16.mxu0 %v3719
        %4649 = vmatpush1.bf16.msra.mxu0 %v3718
        %4650 = vmatprep.subr.bf16.mxu0 %v3735
        %4651 = vmatpush1.bf16.msra.mxu0 %v3734
        %4652 = vmatprep.subr.bf16.mxu0 %v3751
        %4653 = vmatpush1.bf16.msra.mxu0 %v3750
        %4654 = vmatprep.subr.bf16.mxu0 %v3767
        %4655 = vmatpush1.bf16.msra.mxu0 %v3766
        %4656 = vmatprep.subr.bf16.mxu0 %v4403
        %4657 = vmatpush1.bf16.msra.mxu0 %v4400
        %4658 = vmatprep.subr.bf16.mxu0 0
        %4659 = vmatpush1.bf16.msra.mxu0 0
        %4660 = vmatprep.subr.bf16.mxu0 0
        %4661 = vmatpush1.bf16.msra.mxu0 0
        %4662 = vmatprep.subr.bf16.mxu0 0
        %4663 = vmatpush1.bf16.msra.mxu0 0
        %4664 = vmatprep.subr.bf16.mxu0 0
        %4665 = vmatpush1.bf16.msra.mxu0 0
        %4666 = vmatprep.subr.bf16.mxu0 0
        %4667 = vmatpush1.bf16.msra.mxu0 0
        %4668 = vmatprep.subr.bf16.mxu0 0
        %4669 = vmatpush1.bf16.msra.mxu0 0
        %4670 = vmatprep.subr.bf16.mxu0 0
        %4671 = vmatpush1.bf16.msra.mxu0 0
        %4672 = vmatprep.subr.bf16.mxu0 0
        %4673 = vmatpush1.bf16.msra.mxu0 0
        %4674 = vmatprep.subr.bf16.mxu0 0
        %4675 = vmatpush1.bf16.msra.mxu0 0
        %4676 = vmatprep.subr.bf16.mxu0 0
        %4677 = vmatpush1.bf16.msra.mxu0 0
        %4678 = vmatprep.mubr.bf16.mxu0 0
        %4679 = vmatmul.mubr.bf16.gmra.mrb[0].mxu0 %v4390
        %v4680 = vpop.f32.mrb[0].mxu0
        %v4681 = vadd.f32 %v4640, %v4680
        %v4682 = vpop.f32.mrb[0].mxu0
        %v4683 = vadd.f32 %v4642, %v4682
        %v4684 = vpop.f32.mrb[0].mxu0
        %v4685 = vpop.f32.mrb[0].mxu0
        %4686 = vdwg.mxu0
        %4687 = vmatprep.subr.bf16.mxu0 %v3193
        %4688 = vmatpush1.bf16.msra.mxu0 %v3192
        %4689 = vmatprep.subr.bf16.mxu0 %v3209
        %4690 = vmatpush1.bf16.msra.mxu0 %v3208
        %4691 = vmatprep.subr.bf16.mxu0 %v3225
        %4692 = vmatpush1.bf16.msra.mxu0 %v3224
        %4693 = vmatprep.subr.bf16.mxu0 %v3241
        %4694 = vmatpush1.bf16.msra.mxu0 %v3240
        %4695 = vmatprep.subr.bf16.mxu0 %v3257
        %4696 = vmatpush1.bf16.msra.mxu0 %v3256
        %4697 = vmatprep.subr.bf16.mxu0 %v3273
        %4698 = vmatpush1.bf16.msra.mxu0 %v3272
        %4699 = vmatprep.subr.bf16.mxu0 %v3289
        %4700 = vmatpush1.bf16.msra.mxu0 %v3288
        %4701 = vmatprep.subr.bf16.mxu0 %v3305
        %4702 = vmatpush1.bf16.msra.mxu0 %v3304
        %4703 = vmatprep.subr.bf16.mxu0 %v3321
        %4704 = vmatpush1.bf16.msra.mxu0 %v3320
        %4705 = vmatprep.subr.bf16.mxu0 %v3337
        %4706 = vmatpush1.bf16.msra.mxu0 %v3336
        %4707 = vmatprep.subr.bf16.mxu0 %v3353
        %4708 = vmatpush1.bf16.msra.mxu0 %v3352
        %4709 = vmatprep.subr.bf16.mxu0 %v3369
        %4710 = vmatpush1.bf16.msra.mxu0 %v3368
        %4711 = vmatprep.subr.bf16.mxu0 %v3385
        %4712 = vmatpush1.bf16.msra.mxu0 %v3384
        %4713 = vmatprep.subr.bf16.mxu0 %v3401
        %4714 = vmatpush1.bf16.msra.mxu0 %v3400
        %4715 = vmatprep.subr.bf16.mxu0 %v3417
        %4716 = vmatpush1.bf16.msra.mxu0 %v3416
        %4717 = vmatprep.subr.bf16.mxu0 %v3433
        %4718 = vmatpush1.bf16.msra.mxu0 %v3432
        %4719 = vmatprep.mubr.bf16.mxu0 %v700
        %4720 = vmatmul.mubr.bf16.gmra.mrb[0].mxu0 %v699
        %v4721 = vpop.f32.mrb[0].mxu0
        %v4722 = vadd.f32 %v1327, %v4721
        %v4723 = vpop.f32.mrb[0].mxu0
        %v4724 = vadd.f32 %v1331, %v4723
        %v4725 = vpop.f32.mrb[0].mxu0
        %v4726 = vpop.f32.mrb[0].mxu0
        %4727 = vdwg.mxu0
        %4728 = vmatprep.subr.bf16.mxu0 %v3449
        %4729 = vmatpush1.bf16.msra.mxu0 %v3448
        %4730 = vmatprep.subr.bf16.mxu0 %v3465
        %4731 = vmatpush1.bf16.msra.mxu0 %v3464
        %4732 = vmatprep.subr.bf16.mxu0 %v3481
        %4733 = vmatpush1.bf16.msra.mxu0 %v3480
        %4734 = vmatprep.subr.bf16.mxu0 %v3497
        %4735 = vmatpush1.bf16.msra.mxu0 %v3496
        %4736 = vmatprep.subr.bf16.mxu0 %v3513
        %4737 = vmatpush1.bf16.msra.mxu0 %v3512
        %4738 = vmatprep.subr.bf16.mxu0 %v3529
        %4739 = vmatpush1.bf16.msra.mxu0 %v3528
        %4740 = vmatprep.subr.bf16.mxu0 %v3545
        %4741 = vmatpush1.bf16.msra.mxu0 %v3544
        %4742 = vmatprep.subr.bf16.mxu0 %v3561
        %4743 = vmatpush1.bf16.msra.mxu0 %v3560
        %4744 = vmatprep.subr.bf16.mxu0 %v3577
        %4745 = vmatpush1.bf16.msra.mxu0 %v3576
        %4746 = vmatprep.subr.bf16.mxu0 %v3593
        %4747 = vmatpush1.bf16.msra.mxu0 %v3592
        %4748 = vmatprep.subr.bf16.mxu0 %v3609
        %4749 = vmatpush1.bf16.msra.mxu0 %v3608
        %4750 = vmatprep.subr.bf16.mxu0 %v3625
        %4751 = vmatpush1.bf16.msra.mxu0 %v3624
        %4752 = vmatprep.subr.bf16.mxu0 %v3641
        %4753 = vmatpush1.bf16.msra.mxu0 %v3640
        %4754 = vmatprep.subr.bf16.mxu0 %v3657
        %4755 = vmatpush1.bf16.msra.mxu0 %v3656
        %4756 = vmatprep.subr.bf16.mxu0 %v3673
        %4757 = vmatpush1.bf16.msra.mxu0 %v3672
        %4758 = vmatprep.subr.bf16.mxu0 %v3689
        %4759 = vmatpush1.bf16.msra.mxu0 %v3688
        %4760 = vmatprep.mubr.bf16.mxu0 %v702
        %4761 = vmatmul.mubr.bf16.gmra.mrb[0].mxu0 %v701
        %v4762 = vpop.f32.mrb[0].mxu0
        %v4763 = vadd.f32 %v4722, %v4762
        %v4764 = vpop.f32.mrb[0].mxu0
        %v4765 = vadd.f32 %v4724, %v4764
        %v4766 = vpop.f32.mrb[0].mxu0
        %v4767 = vpop.f32.mrb[0].mxu0
        %4768 = vdwg.mxu0
        %4769 = vmatprep.subr.bf16.mxu0 %v3705
        %4770 = vmatpush1.bf16.msra.mxu0 %v3704
        %4771 = vmatprep.subr.bf16.mxu0 %v3721
        %4772 = vmatpush1.bf16.msra.mxu0 %v3720
        %4773 = vmatprep.subr.bf16.mxu0 %v3737
        %4774 = vmatpush1.bf16.msra.mxu0 %v3736
        %4775 = vmatprep.subr.bf16.mxu0 %v3753
        %4776 = vmatpush1.bf16.msra.mxu0 %v3752
        %4777 = vmatprep.subr.bf16.mxu0 %v3769
        %4778 = vmatpush1.bf16.msra.mxu0 %v3768
        %4779 = vmatprep.subr.bf16.mxu0 %v4409
        %4780 = vmatpush1.bf16.msra.mxu0 %v4406
        %4781 = vmatprep.subr.bf16.mxu0 0
        %4782 = vmatpush1.bf16.msra.mxu0 0
        %4783 = vmatprep.subr.bf16.mxu0 0
        %4784 = vmatpush1.bf16.msra.mxu0 0
        %4785 = vmatprep.subr.bf16.mxu0 0
        %4786 = vmatpush1.bf16.msra.mxu0 0
        %4787 = vmatprep.subr.bf16.mxu0 0
        %4788 = vmatpush1.bf16.msra.mxu0 0
        %4789 = vmatprep.subr.bf16.mxu0 0
        %4790 = vmatpush1.bf16.msra.mxu0 0
        %4791 = vmatprep.subr.bf16.mxu0 0
        %4792 = vmatpush1.bf16.msra.mxu0 0
        %4793 = vmatprep.subr.bf16.mxu0 0
        %4794 = vmatpush1.bf16.msra.mxu0 0
        %4795 = vmatprep.subr.bf16.mxu0 0
        %4796 = vmatpush1.bf16.msra.mxu0 0
        %4797 = vmatprep.subr.bf16.mxu0 0
        %4798 = vmatpush1.bf16.msra.mxu0 0
        %4799 = vmatprep.subr.bf16.mxu0 0
        %4800 = vmatpush1.bf16.msra.mxu0 0
        %4801 = vmatprep.mubr.bf16.mxu0 0
        %4802 = vmatmul.mubr.bf16.gmra.mrb[0].mxu0 %v4390
        %v4803 = vpop.f32.mrb[0].mxu0
        %v4804 = vadd.f32 %v4763, %v4803
        %v4805 = vpop.f32.mrb[0].mxu0
        %v4806 = vadd.f32 %v4765, %v4805
        %v4807 = vpop.f32.mrb[0].mxu0
        %v4808 = vpop.f32.mrb[0].mxu0
        %4809 = vdwg.mxu0
        %4810 = vmatprep.subr.bf16.mxu0 %v3195
        %4811 = vmatpush1.bf16.msra.mxu0 %v3194
        %4812 = vmatprep.subr.bf16.mxu0 %v3211
        %4813 = vmatpush1.bf16.msra.mxu0 %v3210
        %4814 = vmatprep.subr.bf16.mxu0 %v3227
        %4815 = vmatpush1.bf16.msra.mxu0 %v3226
        %4816 = vmatprep.subr.bf16.mxu0 %v3243
        %4817 = vmatpush1.bf16.msra.mxu0 %v3242
        %4818 = vmatprep.subr.bf16.mxu0 %v3259
        %4819 = vmatpush1.bf16.msra.mxu0 %v3258
        %4820 = vmatprep.subr.bf16.mxu0 %v3275
        %4821 = vmatpush1.bf16.msra.mxu0 %v3274
        %4822 = vmatprep.subr.bf16.mxu0 %v3291
        %4823 = vmatpush1.bf16.msra.mxu0 %v3290
        %4824 = vmatprep.subr.bf16.mxu0 %v3307
        %4825 = vmatpush1.bf16.msra.mxu0 %v3306
        %4826 = vmatprep.subr.bf16.mxu0 %v3323
        %4827 = vmatpush1.bf16.msra.mxu0 %v3322
        %4828 = vmatprep.subr.bf16.mxu0 %v3339
        %4829 = vmatpush1.bf16.msra.mxu0 %v3338
        %4830 = vmatprep.subr.bf16.mxu0 %v3355
        %4831 = vmatpush1.bf16.msra.mxu0 %v3354
        %4832 = vmatprep.subr.bf16.mxu0 %v3371
        %4833 = vmatpush1.bf16.msra.mxu0 %v3370
        %4834 = vmatprep.subr.bf16.mxu0 %v3387
        %4835 = vmatpush1.bf16.msra.mxu0 %v3386
        %4836 = vmatprep.subr.bf16.mxu0 %v3403
        %4837 = vmatpush1.bf16.msra.mxu0 %v3402
        %4838 = vmatprep.subr.bf16.mxu0 %v3419
        %4839 = vmatpush1.bf16.msra.mxu0 %v3418
        %4840 = vmatprep.subr.bf16.mxu0 %v3435
        %4841 = vmatpush1.bf16.msra.mxu0 %v3434
        %4842 = vmatprep.mubr.bf16.mxu0 %v700
        %4843 = vmatmul.mubr.bf16.gmra.mrb[0].mxu0 %v699
        %v4844 = vpop.f32.mrb[0].mxu0
        %v4845 = vadd.f32 %v1335, %v4844
        %v4846 = vpop.f32.mrb[0].mxu0
        %v4847 = vadd.f32 %v1339, %v4846
        %v4848 = vpop.f32.mrb[0].mxu0
        %v4849 = vpop.f32.mrb[0].mxu0
        %4850 = vdwg.mxu0
        %4851 = vmatprep.subr.bf16.mxu0 %v3451
        %4852 = vmatpush1.bf16.msra.mxu0 %v3450
        %4853 = vmatprep.subr.bf16.mxu0 %v3467
        %4854 = vmatpush1.bf16.msra.mxu0 %v3466
        %4855 = vmatprep.subr.bf16.mxu0 %v3483
        %4856 = vmatpush1.bf16.msra.mxu0 %v3482
        %4857 = vmatprep.subr.bf16.mxu0 %v3499
        %4858 = vmatpush1.bf16.msra.mxu0 %v3498
        %4859 = vmatprep.subr.bf16.mxu0 %v3515
        %4860 = vmatpush1.bf16.msra.mxu0 %v3514
        %4861 = vmatprep.subr.bf16.mxu0 %v3531
        %4862 = vmatpush1.bf16.msra.mxu0 %v3530
        %4863 = vmatprep.subr.bf16.mxu0 %v3547
        %4864 = vmatpush1.bf16.msra.mxu0 %v3546
        %4865 = vmatprep.subr.bf16.mxu0 %v3563
        %4866 = vmatpush1.bf16.msra.mxu0 %v3562
        %4867 = vmatprep.subr.bf16.mxu0 %v3579
        %4868 = vmatpush1.bf16.msra.mxu0 %v3578
        %4869 = vmatprep.subr.bf16.mxu0 %v3595
        %4870 = vmatpush1.bf16.msra.mxu0 %v3594
        %4871 = vmatprep.subr.bf16.mxu0 %v3611
        %4872 = vmatpush1.bf16.msra.mxu0 %v3610
        %4873 = vmatprep.subr.bf16.mxu0 %v3627
        %4874 = vmatpush1.bf16.msra.mxu0 %v3626
        %4875 = vmatprep.subr.bf16.mxu0 %v3643
        %4876 = vmatpush1.bf16.msra.mxu0 %v3642
        %4877 = vmatprep.subr.bf16.mxu0 %v3659
        %4878 = vmatpush1.bf16.msra.mxu0 %v3658
        %4879 = vmatprep.subr.bf16.mxu0 %v3675
        %4880 = vmatpush1.bf16.msra.mxu0 %v3674
        %4881 = vmatprep.subr.bf16.mxu0 %v3691
        %4882 = vmatpush1.bf16.msra.mxu0 %v3690
        %4883 = vmatprep.mubr.bf16.mxu0 %v702
        %4884 = vmatmul.mubr.bf16.gmra.mrb[0].mxu0 %v701
        %v4885 = vpop.f32.mrb[0].mxu0
        %v4886 = vadd.f32 %v4845, %v4885
        %v4887 = vpop.f32.mrb[0].mxu0
        %v4888 = vadd.f32 %v4847, %v4887
        %v4889 = vpop.f32.mrb[0].mxu0
        %v4890 = vpop.f32.mrb[0].mxu0
        %4891 = vdwg.mxu0
        %4892 = vmatprep.subr.bf16.mxu0 %v3707
        %4893 = vmatpush1.bf16.msra.mxu0 %v3706
        %4894 = vmatprep.subr.bf16.mxu0 %v3723
        %4895 = vmatpush1.bf16.msra.mxu0 %v3722
        %4896 = vmatprep.subr.bf16.mxu0 %v3739
        %4897 = vmatpush1.bf16.msra.mxu0 %v3738
        %4898 = vmatprep.subr.bf16.mxu0 %v3755
        %4899 = vmatpush1.bf16.msra.mxu0 %v3754
        %4900 = vmatprep.subr.bf16.mxu0 %v3771
        %4901 = vmatpush1.bf16.msra.mxu0 %v3770
        %4902 = vmatprep.subr.bf16.mxu0 %v4415
        %4903 = vmatpush1.bf16.msra.mxu0 %v4412
        %4904 = vmatprep.subr.bf16.mxu0 0
        %4905 = vmatpush1.bf16.msra.mxu0 0
        %4906 = vmatprep.subr.bf16.mxu0 0
        %4907 = vmatpush1.bf16.msra.mxu0 0
        %4908 = vmatprep.subr.bf16.mxu0 0
        %4909 = vmatpush1.bf16.msra.mxu0 0
        %4910 = vmatprep.subr.bf16.mxu0 0
        %4911 = vmatpush1.bf16.msra.mxu0 0
        %4912 = vmatprep.subr.bf16.mxu0 0
        %4913 = vmatpush1.bf16.msra.mxu0 0
        %4914 = vmatprep.subr.bf16.mxu0 0
        %4915 = vmatpush1.bf16.msra.mxu0 0
        %4916 = vmatprep.subr.bf16.mxu0 0
        %4917 = vmatpush1.bf16.msra.mxu0 0
        %4918 = vmatprep.subr.bf16.mxu0 0
        %4919 = vmatpush1.bf16.msra.mxu0 0
        %4920 = vmatprep.subr.bf16.mxu0 0
        %4921 = vmatpush1.bf16.msra.mxu0 0
        %4922 = vmatprep.subr.bf16.mxu0 0
        %4923 = vmatpush1.bf16.msra.mxu0 0
        %4924 = vmatprep.mubr.bf16.mxu0 0
        %4925 = vmatmul.mubr.bf16.gmra.mrb[0].mxu0 %v4390
        %v4926 = vpop.f32.mrb[0].mxu0
        %v4927 = vadd.f32 %v4886, %v4926
        %v4928 = vpop.f32.mrb[0].mxu0
        %v4929 = vadd.f32 %v4888, %v4928
        %v4930 = vpop.f32.mrb[0].mxu0
        %v4931 = vpop.f32.mrb[0].mxu0
        %4932 = vdwg.mxu0
        %4933 = vmatprep.subr.bf16.mxu0 %v3197
        %4934 = vmatpush1.bf16.msra.mxu0 %v3196
        %4935 = vmatprep.subr.bf16.mxu0 %v3213
        %4936 = vmatpush1.bf16.msra.mxu0 %v3212
        %4937 = vmatprep.subr.bf16.mxu0 %v3229
        %4938 = vmatpush1.bf16.msra.mxu0 %v3228
        %4939 = vmatprep.subr.bf16.mxu0 %v3245
        %4940 = vmatpush1.bf16.msra.mxu0 %v3244
        %4941 = vmatprep.subr.bf16.mxu0 %v3261
        %4942 = vmatpush1.bf16.msra.mxu0 %v3260
        %4943 = vmatprep.subr.bf16.mxu0 %v3277
        %4944 = vmatpush1.bf16.msra.mxu0 %v3276
        %4945 = vmatprep.subr.bf16.mxu0 %v3293
        %4946 = vmatpush1.bf16.msra.mxu0 %v3292
        %4947 = vmatprep.subr.bf16.mxu0 %v3309
        %4948 = vmatpush1.bf16.msra.mxu0 %v3308
        %4949 = vmatprep.subr.bf16.mxu0 %v3325
        %4950 = vmatpush1.bf16.msra.mxu0 %v3324
        %4951 = vmatprep.subr.bf16.mxu0 %v3341
        %4952 = vmatpush1.bf16.msra.mxu0 %v3340
        %4953 = vmatprep.subr.bf16.mxu0 %v3357
        %4954 = vmatpush1.bf16.msra.mxu0 %v3356
        %4955 = vmatprep.subr.bf16.mxu0 %v3373
        %4956 = vmatpush1.bf16.msra.mxu0 %v3372
        %4957 = vmatprep.subr.bf16.mxu0 %v3389
        %4958 = vmatpush1.bf16.msra.mxu0 %v3388
        %4959 = vmatprep.subr.bf16.mxu0 %v3405
        %4960 = vmatpush1.bf16.msra.mxu0 %v3404
        %4961 = vmatprep.subr.bf16.mxu0 %v3421
        %4962 = vmatpush1.bf16.msra.mxu0 %v3420
        %4963 = vmatprep.subr.bf16.mxu0 %v3437
        %4964 = vmatpush1.bf16.msra.mxu0 %v3436
        %4965 = vmatprep.mubr.bf16.mxu0 %v700
        %4966 = vmatmul.mubr.bf16.gmra.mrb[0].mxu0 %v699
        %v4967 = vpop.f32.mrb[0].mxu0
        %v4968 = vadd.f32 %v1343, %v4967
        %v4969 = vpop.f32.mrb[0].mxu0
        %v4970 = vadd.f32 %v1347, %v4969
        %v4971 = vpop.f32.mrb[0].mxu0
        %v4972 = vpop.f32.mrb[0].mxu0
        %4973 = vdwg.mxu0
        %4974 = vmatprep.subr.bf16.mxu0 %v3453
        %4975 = vmatpush1.bf16.msra.mxu0 %v3452
        %4976 = vmatprep.subr.bf16.mxu0 %v3469
        %4977 = vmatpush1.bf16.msra.mxu0 %v3468
        %4978 = vmatprep.subr.bf16.mxu0 %v3485
        %4979 = vmatpush1.bf16.msra.mxu0 %v3484
        %4980 = vmatprep.subr.bf16.mxu0 %v3501
        %4981 = vmatpush1.bf16.msra.mxu0 %v3500
        %4982 = vmatprep.subr.bf16.mxu0 %v3517
        %4983 = vmatpush1.bf16.msra.mxu0 %v3516
        %4984 = vmatprep.subr.bf16.mxu0 %v3533
        %4985 = vmatpush1.bf16.msra.mxu0 %v3532
        %4986 = vmatprep.subr.bf16.mxu0 %v3549
        %4987 = vmatpush1.bf16.msra.mxu0 %v3548
        %4988 = vmatprep.subr.bf16.mxu0 %v3565
        %4989 = vmatpush1.bf16.msra.mxu0 %v3564
        %4990 = vmatprep.subr.bf16.mxu0 %v3581
        %4991 = vmatpush1.bf16.msra.mxu0 %v3580
        %4992 = vmatprep.subr.bf16.mxu0 %v3597
        %4993 = vmatpush1.bf16.msra.mxu0 %v3596
        %4994 = vmatprep.subr.bf16.mxu0 %v3613
        %4995 = vmatpush1.bf16.msra.mxu0 %v3612
        %4996 = vmatprep.subr.bf16.mxu0 %v3629
        %4997 = vmatpush1.bf16.msra.mxu0 %v3628
        %4998 = vmatprep.subr.bf16.mxu0 %v3645
        %4999 = vmatpush1.bf16.msra.mxu0 %v3644
        %5000 = vmatprep.subr.bf16.mxu0 %v3661
        %5001 = vmatpush1.bf16.msra.mxu0 %v3660
        %5002 = vmatprep.subr.bf16.mxu0 %v3677
        %5003 = vmatpush1.bf16.msra.mxu0 %v3676
        %5004 = vmatprep.subr.bf16.mxu0 %v3693
        %5005 = vmatpush1.bf16.msra.mxu0 %v3692
        %5006 = vmatprep.mubr.bf16.mxu0 %v702
        %5007 = vmatmul.mubr.bf16.gmra.mrb[0].mxu0 %v701
        %v5008 = vpop.f32.mrb[0].mxu0
        %v5009 = vadd.f32 %v4968, %v5008
        %v5010 = vpop.f32.mrb[0].mxu0
        %v5011 = vadd.f32 %v4970, %v5010
        %v5012 = vpop.f32.mrb[0].mxu0
        %v5013 = vpop.f32.mrb[0].mxu0
        %5014 = vdwg.mxu0
        %5015 = vmatprep.subr.bf16.mxu0 %v3709
        %5016 = vmatpush1.bf16.msra.mxu0 %v3708
        %5017 = vmatprep.subr.bf16.mxu0 %v3725
        %5018 = vmatpush1.bf16.msra.mxu0 %v3724
        %5019 = vmatprep.subr.bf16.mxu0 %v3741
        %5020 = vmatpush1.bf16.msra.mxu0 %v3740
        %5021 = vmatprep.subr.bf16.mxu0 %v3757
        %5022 = vmatpush1.bf16.msra.mxu0 %v3756
        %5023 = vmatprep.subr.bf16.mxu0 %v3773
        %5024 = vmatpush1.bf16.msra.mxu0 %v3772
        %5025 = vmatprep.subr.bf16.mxu0 %v4421
        %5026 = vmatpush1.bf16.msra.mxu0 %v4418
        %5027 = vmatprep.subr.bf16.mxu0 0
        %5028 = vmatpush1.bf16.msra.mxu0 0
        %5029 = vmatprep.subr.bf16.mxu0 0
        %5030 = vmatpush1.bf16.msra.mxu0 0
        %5031 = vmatprep.subr.bf16.mxu0 0
        %5032 = vmatpush1.bf16.msra.mxu0 0
        %5033 = vmatprep.subr.bf16.mxu0 0
        %5034 = vmatpush1.bf16.msra.mxu0 0
        %5035 = vmatprep.subr.bf16.mxu0 0
        %5036 = vmatpush1.bf16.msra.mxu0 0
        %5037 = vmatprep.subr.bf16.mxu0 0
        %5038 = vmatpush1.bf16.msra.mxu0 0
        %5039 = vmatprep.subr.bf16.mxu0 0
        %5040 = vmatpush1.bf16.msra.mxu0 0
        %5041 = vmatprep.subr.bf16.mxu0 0
        %5042 = vmatpush1.bf16.msra.mxu0 0
        %5043 = vmatprep.subr.bf16.mxu0 0
        %5044 = vmatpush1.bf16.msra.mxu0 0
        %5045 = vmatprep.subr.bf16.mxu0 0
        %5046 = vmatpush1.bf16.msra.mxu0 0
        %5047 = vmatprep.mubr.bf16.mxu0 0
        %5048 = vmatmul.mubr.bf16.gmra.mrb[0].mxu0 %v4390
        %v5049 = vpop.f32.mrb[0].mxu0
        %v5050 = vadd.f32 %v5009, %v5049
        %v5051 = vpop.f32.mrb[0].mxu0
        %v5052 = vadd.f32 %v5011, %v5051
        %v5053 = vpop.f32.mrb[0].mxu0
        %v5054 = vpop.f32.mrb[0].mxu0
        %5055 = vdwg.mxu0
        %5056 = vmatprep.subr.bf16.mxu0 %v3199
        %5057 = vmatpush1.bf16.msra.mxu0 %v3198
        %5058 = vmatprep.subr.bf16.mxu0 %v3215
        %5059 = vmatpush1.bf16.msra.mxu0 %v3214
        %5060 = vmatprep.subr.bf16.mxu0 %v3231
        %5061 = vmatpush1.bf16.msra.mxu0 %v3230
        %5062 = vmatprep.subr.bf16.mxu0 %v3247
        %5063 = vmatpush1.bf16.msra.mxu0 %v3246
        %5064 = vmatprep.subr.bf16.mxu0 %v3263
        %5065 = vmatpush1.bf16.msra.mxu0 %v3262
        %5066 = vmatprep.subr.bf16.mxu0 %v3279
        %5067 = vmatpush1.bf16.msra.mxu0 %v3278
        %5068 = vmatprep.subr.bf16.mxu0 %v3295
        %5069 = vmatpush1.bf16.msra.mxu0 %v3294
        %5070 = vmatprep.subr.bf16.mxu0 %v3311
        %5071 = vmatpush1.bf16.msra.mxu0 %v3310
        %5072 = vmatprep.subr.bf16.mxu0 %v3327
        %5073 = vmatpush1.bf16.msra.mxu0 %v3326
        %5074 = vmatprep.subr.bf16.mxu0 %v3343
        %5075 = vmatpush1.bf16.msra.mxu0 %v3342
        %5076 = vmatprep.subr.bf16.mxu0 %v3359
        %5077 = vmatpush1.bf16.msra.mxu0 %v3358
        %5078 = vmatprep.subr.bf16.mxu0 %v3375
        %5079 = vmatpush1.bf16.msra.mxu0 %v3374
        %5080 = vmatprep.subr.bf16.mxu0 %v3391
        %5081 = vmatpush1.bf16.msra.mxu0 %v3390
        %5082 = vmatprep.subr.bf16.mxu0 %v3407
        %5083 = vmatpush1.bf16.msra.mxu0 %v3406
        %5084 = vmatprep.subr.bf16.mxu0 %v3423
        %5085 = vmatpush1.bf16.msra.mxu0 %v3422
        %5086 = vmatprep.subr.bf16.mxu0 %v3439
        %5087 = vmatpush1.bf16.msra.mxu0 %v3438
        %5088 = vmatprep.mubr.bf16.mxu0 %v700
        %5089 = vmatmul.mubr.bf16.gmra.mrb[0].mxu0 %v699
        %v5090 = vpop.f32.mrb[0].mxu0
        %v5091 = vadd.f32 %v1351, %v5090
        %v5092 = vpop.f32.mrb[0].mxu0
        %v5093 = vadd.f32 %v1355, %v5092
        %v5094 = vpop.f32.mrb[0].mxu0
        %v5095 = vpop.f32.mrb[0].mxu0
        %5096 = vdwg.mxu0
        %5097 = vmatprep.subr.bf16.mxu0 %v3455
        %5098 = vmatpush1.bf16.msra.mxu0 %v3454
        %5099 = vmatprep.subr.bf16.mxu0 %v3471
        %5100 = vmatpush1.bf16.msra.mxu0 %v3470
        %5101 = vmatprep.subr.bf16.mxu0 %v3487
        %5102 = vmatpush1.bf16.msra.mxu0 %v3486
        %5103 = vmatprep.subr.bf16.mxu0 %v3503
        %5104 = vmatpush1.bf16.msra.mxu0 %v3502
        %5105 = vmatprep.subr.bf16.mxu0 %v3519
        %5106 = vmatpush1.bf16.msra.mxu0 %v3518
        %5107 = vmatprep.subr.bf16.mxu0 %v3535
        %5108 = vmatpush1.bf16.msra.mxu0 %v3534
        %5109 = vmatprep.subr.bf16.mxu0 %v3551
        %5110 = vmatpush1.bf16.msra.mxu0 %v3550
        %5111 = vmatprep.subr.bf16.mxu0 %v3567
        %5112 = vmatpush1.bf16.msra.mxu0 %v3566
        %5113 = vmatprep.subr.bf16.mxu0 %v3583
        %5114 = vmatpush1.bf16.msra.mxu0 %v3582
        %5115 = vmatprep.subr.bf16.mxu0 %v3599
        %5116 = vmatpush1.bf16.msra.mxu0 %v3598
        %5117 = vmatprep.subr.bf16.mxu0 %v3615
        %5118 = vmatpush1.bf16.msra.mxu0 %v3614
        %5119 = vmatprep.subr.bf16.mxu0 %v3631
        %5120 = vmatpush1.bf16.msra.mxu0 %v3630
        %5121 = vmatprep.subr.bf16.mxu0 %v3647
        %5122 = vmatpush1.bf16.msra.mxu0 %v3646
        %5123 = vmatprep.subr.bf16.mxu0 %v3663
        %5124 = vmatpush1.bf16.msra.mxu0 %v3662
        %5125 = vmatprep.subr.bf16.mxu0 %v3679
        %5126 = vmatpush1.bf16.msra.mxu0 %v3678
        %5127 = vmatprep.subr.bf16.mxu0 %v3695
        %5128 = vmatpush1.bf16.msra.mxu0 %v3694
        %5129 = vmatprep.mubr.bf16.mxu0 %v702
        %5130 = vmatmul.mubr.bf16.gmra.mrb[0].mxu0 %v701
        %v5131 = vpop.f32.mrb[0].mxu0
        %v5132 = vadd.f32 %v5091, %v5131
        %v5133 = vpop.f32.mrb[0].mxu0
        %v5134 = vadd.f32 %v5093, %v5133
        %v5135 = vpop.f32.mrb[0].mxu0
        %v5136 = vpop.f32.mrb[0].mxu0
        %5137 = vdwg.mxu0
        %5138 = vmatprep.subr.bf16.mxu0 %v3711
        %5139 = vmatpush1.bf16.msra.mxu0 %v3710
        %5140 = vmatprep.subr.bf16.mxu0 %v3727
        %5141 = vmatpush1.bf16.msra.mxu0 %v3726
        %5142 = vmatprep.subr.bf16.mxu0 %v3743
        %5143 = vmatpush1.bf16.msra.mxu0 %v3742
        %5144 = vmatprep.subr.bf16.mxu0 %v3759
        %5145 = vmatpush1.bf16.msra.mxu0 %v3758
        %5146 = vmatprep.subr.bf16.mxu0 %v3775
        %5147 = vmatpush1.bf16.msra.mxu0 %v3774
        %5148 = vmatprep.subr.bf16.mxu0 %v4427
        %5149 = vmatpush1.bf16.msra.mxu0 %v4424
        %5150 = vmatprep.subr.bf16.mxu0 0
        %5151 = vmatpush1.bf16.msra.mxu0 0
        %5152 = vmatprep.subr.bf16.mxu0 0
        %5153 = vmatpush1.bf16.msra.mxu0 0
        %5154 = vmatprep.subr.bf16.mxu0 0
        %5155 = vmatpush1.bf16.msra.mxu0 0
        %5156 = vmatprep.subr.bf16.mxu0 0
        %5157 = vmatpush1.bf16.msra.mxu0 0
        %5158 = vmatprep.subr.bf16.mxu0 0
        %5159 = vmatpush1.bf16.msra.mxu0 0
        %5160 = vmatprep.subr.bf16.mxu0 0
        %5161 = vmatpush1.bf16.msra.mxu0 0
        %5162 = vmatprep.subr.bf16.mxu0 0
        %5163 = vmatpush1.bf16.msra.mxu0 0
        %5164 = vmatprep.subr.bf16.mxu0 0
        %5165 = vmatpush1.bf16.msra.mxu0 0
        %5166 = vmatprep.subr.bf16.mxu0 0
        %5167 = vmatpush1.bf16.msra.mxu0 0
        %5168 = vmatprep.subr.bf16.mxu0 0
        %5169 = vmatpush1.bf16.msra.mxu0 0
        %5170 = vmatprep.mubr.bf16.mxu0 0
        %5171 = vmatmul.mubr.bf16.gmra.mrb[0].mxu0 %v4390
        %v5172 = vpop.f32.mrb[0].mxu0
        %v5173 = vadd.f32 %v5132, %v5172
        %v5174 = vpop.f32.mrb[0].mxu0
        %v5175 = vadd.f32 %v5134, %v5174
        %v5176 = vpop.f32.mrb[0].mxu0
        %v5177 = vpop.f32.mrb[0].mxu0
        %5178 = vdwg.mxu0
        %5179 = vmatprep.subr.bf16.mxu0 %v3201
        %5180 = vmatpush1.bf16.msra.mxu0 %v3200
        %5181 = vmatprep.subr.bf16.mxu0 %v3217
        %5182 = vmatpush1.bf16.msra.mxu0 %v3216
        %5183 = vmatprep.subr.bf16.mxu0 %v3233
        %5184 = vmatpush1.bf16.msra.mxu0 %v3232
        %5185 = vmatprep.subr.bf16.mxu0 %v3249
        %5186 = vmatpush1.bf16.msra.mxu0 %v3248
        %5187 = vmatprep.subr.bf16.mxu0 %v3265
        %5188 = vmatpush1.bf16.msra.mxu0 %v3264
        %5189 = vmatprep.subr.bf16.mxu0 %v3281
        %5190 = vmatpush1.bf16.msra.mxu0 %v3280
        %5191 = vmatprep.subr.bf16.mxu0 %v3297
        %5192 = vmatpush1.bf16.msra.mxu0 %v3296
        %5193 = vmatprep.subr.bf16.mxu0 %v3313
        %5194 = vmatpush1.bf16.msra.mxu0 %v3312
        %5195 = vmatprep.subr.bf16.mxu0 %v3329
        %5196 = vmatpush1.bf16.msra.mxu0 %v3328
        %5197 = vmatprep.subr.bf16.mxu0 %v3345
        %5198 = vmatpush1.bf16.msra.mxu0 %v3344
        %5199 = vmatprep.subr.bf16.mxu0 %v3361
        %5200 = vmatpush1.bf16.msra.mxu0 %v3360
        %5201 = vmatprep.subr.bf16.mxu0 %v3377
        %5202 = vmatpush1.bf16.msra.mxu0 %v3376
        %5203 = vmatprep.subr.bf16.mxu0 %v3393
        %5204 = vmatpush1.bf16.msra.mxu0 %v3392
        %5205 = vmatprep.subr.bf16.mxu0 %v3409
        %5206 = vmatpush1.bf16.msra.mxu0 %v3408
        %5207 = vmatprep.subr.bf16.mxu0 %v3425
        %5208 = vmatpush1.bf16.msra.mxu0 %v3424
        %5209 = vmatprep.subr.bf16.mxu0 %v3441
        %5210 = vmatpush1.bf16.msra.mxu0 %v3440
        %5211 = vmatprep.mubr.bf16.mxu0 %v700
        %5212 = vmatmul.mubr.bf16.gmra.mrb[0].mxu0 %v699
        %v5213 = vpop.f32.mrb[0].mxu0
        %v5214 = vadd.f32 %v1359, %v5213
        %v5215 = vpop.f32.mrb[0].mxu0
        %v5216 = vadd.f32 %v1363, %v5215
        %v5217 = vpop.f32.mrb[0].mxu0
        %v5218 = vpop.f32.mrb[0].mxu0
        %5219 = vdwg.mxu0
        %5220 = vmatprep.subr.bf16.mxu0 %v3457
        %5221 = vmatpush1.bf16.msra.mxu0 %v3456
        %5222 = vmatprep.subr.bf16.mxu0 %v3473
        %5223 = vmatpush1.bf16.msra.mxu0 %v3472
        %5224 = vmatprep.subr.bf16.mxu0 %v3489
        %5225 = vmatpush1.bf16.msra.mxu0 %v3488
        %5226 = vmatprep.subr.bf16.mxu0 %v3505
        %5227 = vmatpush1.bf16.msra.mxu0 %v3504
        %5228 = vmatprep.subr.bf16.mxu0 %v3521
        %5229 = vmatpush1.bf16.msra.mxu0 %v3520
        %5230 = vmatprep.subr.bf16.mxu0 %v3537
        %5231 = vmatpush1.bf16.msra.mxu0 %v3536
        %5232 = vmatprep.subr.bf16.mxu0 %v3553
        %5233 = vmatpush1.bf16.msra.mxu0 %v3552
        %5234 = vmatprep.subr.bf16.mxu0 %v3569
        %5235 = vmatpush1.bf16.msra.mxu0 %v3568
        %5236 = vmatprep.subr.bf16.mxu0 %v3585
        %5237 = vmatpush1.bf16.msra.mxu0 %v3584
        %5238 = vmatprep.subr.bf16.mxu0 %v3601
        %5239 = vmatpush1.bf16.msra.mxu0 %v3600
        %5240 = vmatprep.subr.bf16.mxu0 %v3617
        %5241 = vmatpush1.bf16.msra.mxu0 %v3616
        %5242 = vmatprep.subr.bf16.mxu0 %v3633
        %5243 = vmatpush1.bf16.msra.mxu0 %v3632
        %5244 = vmatprep.subr.bf16.mxu0 %v3649
        %5245 = vmatpush1.bf16.msra.mxu0 %v3648
        %5246 = vmatprep.subr.bf16.mxu0 %v3665
        %5247 = vmatpush1.bf16.msra.mxu0 %v3664
        %5248 = vmatprep.subr.bf16.mxu0 %v3681
        %5249 = vmatpush1.bf16.msra.mxu0 %v3680
        %5250 = vmatprep.subr.bf16.mxu0 %v3697
        %5251 = vmatpush1.bf16.msra.mxu0 %v3696
        %5252 = vmatprep.mubr.bf16.mxu0 %v702
        %5253 = vmatmul.mubr.bf16.gmra.mrb[0].mxu0 %v701
        %v5254 = vpop.f32.mrb[0].mxu0
        %v5255 = vadd.f32 %v5214, %v5254
        %v5256 = vpop.f32.mrb[0].mxu0
        %v5257 = vadd.f32 %v5216, %v5256
        %v5258 = vpop.f32.mrb[0].mxu0
        %v5259 = vpop.f32.mrb[0].mxu0
        %5260 = vdwg.mxu0
        %5261 = vmatprep.subr.bf16.mxu0 %v3713
        %5262 = vmatpush1.bf16.msra.mxu0 %v3712
        %5263 = vmatprep.subr.bf16.mxu0 %v3729
        %5264 = vmatpush1.bf16.msra.mxu0 %v3728
        %5265 = vmatprep.subr.bf16.mxu0 %v3745
        %5266 = vmatpush1.bf16.msra.mxu0 %v3744
        %5267 = vmatprep.subr.bf16.mxu0 %v3761
        %5268 = vmatpush1.bf16.msra.mxu0 %v3760
        %5269 = vmatprep.subr.bf16.mxu0 %v3777
        %5270 = vmatpush1.bf16.msra.mxu0 %v3776
        %5271 = vmatprep.subr.bf16.mxu0 %v4433
        %5272 = vmatpush1.bf16.msra.mxu0 %v4430
        %5273 = vmatprep.subr.bf16.mxu0 0
        %5274 = vmatpush1.bf16.msra.mxu0 0
        %5275 = vmatprep.subr.bf16.mxu0 0
        %5276 = vmatpush1.bf16.msra.mxu0 0
        %5277 = vmatprep.subr.bf16.mxu0 0
        %5278 = vmatpush1.bf16.msra.mxu0 0
        %5279 = vmatprep.subr.bf16.mxu0 0
        %5280 = vmatpush1.bf16.msra.mxu0 0
        %5281 = vmatprep.subr.bf16.mxu0 0
        %5282 = vmatpush1.bf16.msra.mxu0 0
        %5283 = vmatprep.subr.bf16.mxu0 0
        %5284 = vmatpush1.bf16.msra.mxu0 0
        %5285 = vmatprep.subr.bf16.mxu0 0
        %5286 = vmatpush1.bf16.msra.mxu0 0
        %5287 = vmatprep.subr.bf16.mxu0 0
        %5288 = vmatpush1.bf16.msra.mxu0 0
        %5289 = vmatprep.subr.bf16.mxu0 0
        %5290 = vmatpush1.bf16.msra.mxu0 0
        %5291 = vmatprep.subr.bf16.mxu0 0
        %5292 = vmatpush1.bf16.msra.mxu0 0
        %5293 = vmatprep.mubr.bf16.mxu0 0
        %5294 = vmatmul.mubr.bf16.gmra.mrb[0].mxu0 %v4390
        %v5295 = vpop.f32.mrb[0].mxu0
        %v5296 = vadd.f32 %v5255, %v5295
        %v5297 = vpop.f32.mrb[0].mxu0
        %v5298 = vadd.f32 %v5257, %v5297
        %v5299 = vpop.f32.mrb[0].mxu0
        %v5300 = vpop.f32.mrb[0].mxu0
        %5301 = vdwg.mxu0
        %5302 = vmatprep.subr.bf16.mxu0 %v3203
        %5303 = vmatpush1.bf16.msra.mxu0 %v3202
        %5304 = vmatprep.subr.bf16.mxu0 %v3219
        %5305 = vmatpush1.bf16.msra.mxu0 %v3218
        %5306 = vmatprep.subr.bf16.mxu0 %v3235
        %5307 = vmatpush1.bf16.msra.mxu0 %v3234
        %5308 = vmatprep.subr.bf16.mxu0 %v3251
        %5309 = vmatpush1.bf16.msra.mxu0 %v3250
        %5310 = vmatprep.subr.bf16.mxu0 %v3267
        %5311 = vmatpush1.bf16.msra.mxu0 %v3266
        %5312 = vmatprep.subr.bf16.mxu0 %v3283
        %5313 = vmatpush1.bf16.msra.mxu0 %v3282
        %5314 = vmatprep.subr.bf16.mxu0 %v3299
        %5315 = vmatpush1.bf16.msra.mxu0 %v3298
        %5316 = vmatprep.subr.bf16.mxu0 %v3315
        %5317 = vmatpush1.bf16.msra.mxu0 %v3314
        %5318 = vmatprep.subr.bf16.mxu0 %v3331
        %5319 = vmatpush1.bf16.msra.mxu0 %v3330
        %5320 = vmatprep.subr.bf16.mxu0 %v3347
        %5321 = vmatpush1.bf16.msra.mxu0 %v3346
        %5322 = vmatprep.subr.bf16.mxu0 %v3363
        %5323 = vmatpush1.bf16.msra.mxu0 %v3362
        %5324 = vmatprep.subr.bf16.mxu0 %v3379
        %5325 = vmatpush1.bf16.msra.mxu0 %v3378
        %5326 = vmatprep.subr.bf16.mxu0 %v3395
        %5327 = vmatpush1.bf16.msra.mxu0 %v3394
        %5328 = vmatprep.subr.bf16.mxu0 %v3411
        %5329 = vmatpush1.bf16.msra.mxu0 %v3410
        %5330 = vmatprep.subr.bf16.mxu0 %v3427
        %5331 = vmatpush1.bf16.msra.mxu0 %v3426
        %5332 = vmatprep.subr.bf16.mxu0 %v3443
        %5333 = vmatpush1.bf16.msra.mxu0 %v3442
        %5334 = vmatprep.mubr.bf16.mxu0 %v700
        %5335 = vmatmul.mubr.bf16.gmra.mrb[0].mxu0 %v699
        %v5336 = vpop.f32.mrb[0].mxu0
        %v5337 = vadd.f32 %v1367, %v5336
        %v5338 = vpop.f32.mrb[0].mxu0
        %v5339 = vadd.f32 %v1371, %v5338
        %v5340 = vpop.f32.mrb[0].mxu0
        %v5341 = vpop.f32.mrb[0].mxu0
        %5342 = vdwg.mxu0
        %5343 = vmatprep.subr.bf16.mxu0 %v3459
        %5344 = vmatpush1.bf16.msra.mxu0 %v3458
        %5345 = vmatprep.subr.bf16.mxu0 %v3475
        %5346 = vmatpush1.bf16.msra.mxu0 %v3474
        %5347 = vmatprep.subr.bf16.mxu0 %v3491
        %5348 = vmatpush1.bf16.msra.mxu0 %v3490
        %5349 = vmatprep.subr.bf16.mxu0 %v3507
        %5350 = vmatpush1.bf16.msra.mxu0 %v3506
        %5351 = vmatprep.subr.bf16.mxu0 %v3523
        %5352 = vmatpush1.bf16.msra.mxu0 %v3522
        %5353 = vmatprep.subr.bf16.mxu0 %v3539
        %5354 = vmatpush1.bf16.msra.mxu0 %v3538
        %5355 = vmatprep.subr.bf16.mxu0 %v3555
        %5356 = vmatpush1.bf16.msra.mxu0 %v3554
        %5357 = vmatprep.subr.bf16.mxu0 %v3571
        %5358 = vmatpush1.bf16.msra.mxu0 %v3570
        %5359 = vmatprep.subr.bf16.mxu0 %v3587
        %5360 = vmatpush1.bf16.msra.mxu0 %v3586
        %5361 = vmatprep.subr.bf16.mxu0 %v3603
        %5362 = vmatpush1.bf16.msra.mxu0 %v3602
        %5363 = vmatprep.subr.bf16.mxu0 %v3619
        %5364 = vmatpush1.bf16.msra.mxu0 %v3618
        %5365 = vmatprep.subr.bf16.mxu0 %v3635
        %5366 = vmatpush1.bf16.msra.mxu0 %v3634
        %5367 = vmatprep.subr.bf16.mxu0 %v3651
        %5368 = vmatpush1.bf16.msra.mxu0 %v3650
        %5369 = vmatprep.subr.bf16.mxu0 %v3667
        %5370 = vmatpush1.bf16.msra.mxu0 %v3666
        %5371 = vmatprep.subr.bf16.mxu0 %v3683
        %5372 = vmatpush1.bf16.msra.mxu0 %v3682
        %5373 = vmatprep.subr.bf16.mxu0 %v3699
        %5374 = vmatpush1.bf16.msra.mxu0 %v3698
        %5375 = vmatprep.mubr.bf16.mxu0 %v702
        %5376 = vmatmul.mubr.bf16.gmra.mrb[0].mxu0 %v701
        %v5377 = vpop.f32.mrb[0].mxu0
        %v5378 = vadd.f32 %v5337, %v5377
        %v5379 = vpop.f32.mrb[0].mxu0
        %v5380 = vadd.f32 %v5339, %v5379
        %v5381 = vpop.f32.mrb[0].mxu0
        %v5382 = vpop.f32.mrb[0].mxu0
        %5383 = vdwg.mxu0
        %5384 = vmatprep.subr.bf16.mxu0 %v3715
        %5385 = vmatpush1.bf16.msra.mxu0 %v3714
        %5386 = vmatprep.subr.bf16.mxu0 %v3731
        %5387 = vmatpush1.bf16.msra.mxu0 %v3730
        %5388 = vmatprep.subr.bf16.mxu0 %v3747
        %5389 = vmatpush1.bf16.msra.mxu0 %v3746
        %5390 = vmatprep.subr.bf16.mxu0 %v3763
        %5391 = vmatpush1.bf16.msra.mxu0 %v3762
        %5392 = vmatprep.subr.bf16.mxu0 %v3779
        %5393 = vmatpush1.bf16.msra.mxu0 %v3778
        %5394 = vmatprep.subr.bf16.mxu0 %v4439
        %5395 = vmatpush1.bf16.msra.mxu0 %v4436
        %5396 = vmatprep.subr.bf16.mxu0 0
        %5397 = vmatpush1.bf16.msra.mxu0 0
        %5398 = vmatprep.subr.bf16.mxu0 0
        %5399 = vmatpush1.bf16.msra.mxu0 0
        %5400 = vmatprep.subr.bf16.mxu0 0
        %5401 = vmatpush1.bf16.msra.mxu0 0
        %5402 = vmatprep.subr.bf16.mxu0 0
        %5403 = vmatpush1.bf16.msra.mxu0 0
        %5404 = vmatprep.subr.bf16.mxu0 0
        %5405 = vmatpush1.bf16.msra.mxu0 0
        %5406 = vmatprep.subr.bf16.mxu0 0
        %5407 = vmatpush1.bf16.msra.mxu0 0
        %5408 = vmatprep.subr.bf16.mxu0 0
        %5409 = vmatpush1.bf16.msra.mxu0 0
        %5410 = vmatprep.subr.bf16.mxu0 0
        %5411 = vmatpush1.bf16.msra.mxu0 0
        %5412 = vmatprep.subr.bf16.mxu0 0
        %5413 = vmatpush1.bf16.msra.mxu0 0
        %5414 = vmatprep.subr.bf16.mxu0 0
        %5415 = vmatpush1.bf16.msra.mxu0 0
        %5416 = vmatprep.mubr.bf16.mxu0 0
        %5417 = vmatmul.mubr.bf16.gmra.mrb[0].mxu0 %v4390
        %v5418 = vpop.f32.mrb[0].mxu0
        %v5419 = vadd.f32 %v5378, %v5418
        %v5420 = vpop.f32.mrb[0].mxu0
        %v5421 = vadd.f32 %v5380, %v5420
        %v5422 = vpop.f32.mrb[0].mxu0
        %v5423 = vpop.f32.mrb[0].mxu0
        %5424 = vdwg.mxu0
        %5425 = vst [vmem:[%s321] sm:$0xff] %v4558
        %5426 = vst [vmem:[%s321 + $0x8] sm:$0xff] %v4560
        %5427 = vst [vmem:[%s321 + $0x10] sm:$0xff] %v4681
        %5428 = vst [vmem:[%s321 + $0x18] sm:$0xff] %v4683
        %5429 = vst [vmem:[%s321 + $0x20] sm:$0xff] %v4804
        %5430 = vst [vmem:[%s321 + $0x28] sm:$0xff] %v4806
        %5431 = vst [vmem:[%s321 + $0x30] sm:$0xff] %v4927
        %5432 = vst [vmem:[%s321 + $0x38] sm:$0xff] %v4929
        %5433 = vst [vmem:[%s321 + $0x40] sm:$0xff] %v5050
        %5434 = vst [vmem:[%s321 + $0x48] sm:$0xff] %v5052
        %5435 = vst [vmem:[%s321 + $0x50] sm:$0xff] %v5173
        %5436 = vst [vmem:[%s321 + $0x58] sm:$0xff] %v5175
        %5437 = vst [vmem:[%s321 + $0x60] sm:$0xff] %v5296
        %5438 = vst [vmem:[%s321 + $0x68] sm:$0xff] %v5298
        %5439 = vst [vmem:[%s321 + $0x70] sm:$0xff] %v5419
        %5440 = vst [vmem:[%s321 + $0x78] sm:$0xff] %v5421
        %s5441 = smul.u32 16, %s21
        %p5442 = scmp.lt.s32.totalorder %s5441, 159
        %s5443 = scalar_select %p5442, %s5441, 159
        %s5444 = smul.addr %s5443, 8
        %s5445 = scalar_lea.vmem %s5, %s5444
        // Predicated region
        $region61: #{decoder_forward.1} parent=39 // pred_check
          %p5446 = pneg %p154
        $region62: #{decoder_forward.1} parent=39 // pred_check_branch
          %5448 = sbr.rel (%p5446) target = $region64
        $region63: #{decoder_forward.1} parent=39 // pred_region
          %s5449 = smul.u32 16, %s21
        $region64: #{decoder_forward.1} parent=39 // pred_fallthru
          _
      $region40: #{decoder_forward.1} parent=5 // pred_fallthru
        _
      %p5450 = scmp.le.s32.totalorder 2, %s16
      // Predicated region
      $region65: #{decoder_forward.1} parent=5 // pred_check
        %p5451 = pneg %p5450
      $region66: #{decoder_forward.1} parent=5 // pred_check_branch
        %5453 = sbr.rel (%p5451) target = $region68
      $region67: #{decoder_forward.1} parent=5 // pred_region
        %s5454 = ssub.s32 %s16, 2
        // Predicated region
        $region69: #{decoder_forward.1} parent=67 // pred_check
          %p5455 = pneg %p160
        $region70: #{decoder_forward.1} parent=67 // pred_check_branch
          %5457 = sbr.rel (%p5455) target = $region72
        $region71: #{decoder_forward.1} parent=67 // pred_region
          %s5458 = smul.u32 16, %s22
          %p5459 = scmp.lt.s32.totalorder %s5458, 159
          %s5460 = scalar_select %p5459, %s5458, 159
          %s5461 = smul.addr %s5460, 8
          %s5462 = scalar_lea.vmem %s5, %s5461
        $region72: #{decoder_forward.1} parent=67 // pred_fallthru
          _
      $region68: #{decoder_forward.1} parent=5 // pred_fallthru
        _
    $region6: #{decoder_forward.1} parent=1 // loop_footer
      %s20 = sadd.s32 1, %s16
    $region7: #{decoder_forward.1} parent=1 // loop_footer_branch
      %15 = sbr.rel target = $region3
    $region8: #{decoder_forward.1} parent=1 // loop_exit
      _
    %5463 = vsyncpa [#allocation3], 1
    %s5464 = scalar_lea.sflag [#allocation3], 1
    %5465 = vsyncpa %s5464, 1
    %5466 = vsyncpa [#allocation5], 1
    %5467 = vsyncpa [#allocation8], 1
    %s5468 = scalar_lea.sflag [#allocation8], 1
    %5469 = vsyncpa %s5468, 1

</llo_original>
